<compile_context>
chip_gen: v7x
topology: tpu7x:2x2x1
jax: 0.10.0
libtpu: 0.0.40
codegen_flags: <defaults>
</compile_context>

<pallas_src>
import functools

import jax
import jax.numpy as jnp
from jax import lax
from jax.experimental import pallas as pl
from jax.experimental.pallas import tpu as pltpu


def _round_up(x, m):
    return ((x + m - 1) // m) * m


def _conv_bn_act_kernel(x_ref, halo_ref, w_ref, shift_ref, o_ref,
                        xb_ref, col_ref, *, bm, cin, tap_off):
    # Stage the contiguous row block + halo once, in bf16 (no fp32 staging,
    # no per-tap casts).
    xb_ref[:bm, :] = x_ref[...]
    xb_ref[bm:, :] = halo_ref[0]
    # Build the (bm, K*K*Cin) im2col tile with static shifted copies, then a
    # single MXU contraction over the full K*K*Cin depth.
    for t, d in enumerate(tap_off):
        col_ref[:, t * cin:(t + 1) * cin] = xb_ref[d:d + bm, :]
    z = jnp.dot(col_ref[...], w_ref[...], preferred_element_type=jnp.float32)
    z = z + shift_ref[...]                                    # folded BN shift
    o_ref[...] = (z * jax.nn.sigmoid(z)).astype(o_ref.dtype)  # SiLU, f32 math


def conv_bn_act(x_nchw, conv_w, gamma, beta, run_mean, run_var,
                *, eps=1e-5, block_m=512, block_n=256, out_dtype=jnp.bfloat16):
    """ConvBNAct forward: odd kernel, stride=1, groups=1, eval-mode BN, SiLU."""
    N, Cin, H, W = x_nchw.shape
    Cout, Cin_w, KH, KW = conv_w.shape
    assert Cin == Cin_w and KH == KW and KH % 2 == 1
    K = KH
    pad = (K - 1) // 2
    Hp, Wp = H + 2 * pad, W + 2 * pad

    Cout_p = _round_up(Cout, 128)                 # lane-dense output stores
    # Cout tile: 256-wide when possible (v6e/v7x 256-wide MXU), else 128 (v5e).
    tn = 256 if (block_n >= 256 and Cout_p % 256 == 0) else 128
    tn = min(tn, Cout_p)
    n_ct = Cout_p // tn

    # ---- fold eval-mode BatchNorm: scale goes into the weights, shift stays ----
    scale = gamma.astype(jnp.float32) * lax.rsqrt(run_var.astype(jnp.float32) + eps)
    shift = beta.astype(jnp.float32) - run_mean.astype(jnp.float32) * scale
    # conv_w (Cout, Cin, K, K) -> (K*K*Cin, Cout_p), BN-scaled, bf16 for the MXU.
    w = jnp.transpose(conv_w.astype(jnp.float32), (2, 3, 1, 0)).reshape(K * K * Cin, Cout)
    w = w * scale[None, :]
    w = jnp.pad(w, ((0, 0), (0, Cout_p - Cout))).astype(jnp.bfloat16)
    shift_p = jnp.pad(shift, (0, Cout_p - Cout)).reshape(1, Cout_p)

    # ---- NCHW -> zero-padded NHWC rows so tap (kh,kw) == row offset kh*Wp+kw ----
    # (NHWC callers could skip this transpose and the final one below.)
    x = jnp.transpose(x_nchw, (0, 2, 3, 1)).astype(jnp.bfloat16)   # (N, H, W, Cin)
    x = jnp.pad(x, ((0, 0), (pad, pad), (pad, pad), (0, 0)))       # (N, Hp, Wp, Cin)
    R = N * Hp * Wp
    x_flat = x.reshape(R, Cin)

    d_max = (K - 1) * Wp + (K - 1)                # largest flattened tap offset
    hp = _round_up(d_max, 32)                     # halo rows appended per block
    bm = max(_round_up(min(block_m, R), 32), hp)  # output rows per grid step
    nb = pl.cdiv(R, bm)
    r_main = nb * bm

    x_ext = jnp.pad(x_flat, ((0, r_main + bm - R), (0, 0)))        # (r_main+bm, Cin)
    x_main = x_ext[:r_main]
    # halo block i = rows [(i+1)*bm, (i+1)*bm + hp)  (tiny, built gather-free)
    halo = x_ext[bm:bm + r_main].reshape(nb, bm, Cin)[:, :hp, :]   # (nb, hp, Cin)

    tap_off = tuple(kh * Wp + kw for kh in range(K) for kw in range(K))

    kernel = functools.partial(_conv_bn_act_kernel, bm=bm, cin=Cin, tap_off=tap_off)

    out = pl.pallas_call(
        kernel,
        out_shape=jax.ShapeDtypeStruct((r_main, Cout_p), out_dtype),
        # Cout tiles OUTER -> weight tile stays resident across all row blocks.
        grid=(n_ct, nb),
        in_specs=[
            pl.BlockSpec((bm, Cin), lambda j, i: (i, 0)),                # row block
            pl.BlockSpec((1, hp, Cin), lambda j, i: (i, 0, 0)),          # halo rows
            pl.BlockSpec((K * K * Cin, tn), lambda j, i: (0, j)),        # weight tile
            pl.BlockSpec((1, tn), lambda j, i: (0, j)),                  # BN shift
        ],
        out_specs=pl.BlockSpec((bm, tn), lambda j, i: (i, j)),
        scratch_shapes=[
            pltpu.VMEM((bm + hp, Cin), jnp.bfloat16),       # staged block + halo
            pltpu.VMEM((bm, K * K * Cin), jnp.bfloat16),    # im2col tile
        ],
        compiler_params=pltpu.CompilerParams(
            dimension_semantics=("parallel", "parallel"),
            vmem_limit_bytes=48 * 1024 * 1024),
    )(x_main, halo, w, shift_p)

    # drop row/channel padding, back to the PyTorch NCHW convention
    out = out[:R].reshape(N, Hp, Wp, Cout_p)[:, :H, :W, :Cout]
    return jnp.transpose(out, (0, 3, 1, 2))


def reference_fp32(x, conv_w, gamma, beta, run_mean, run_var, eps=1e-5):
    pad = (conv_w.shape[-1] - 1) // 2
    y = lax.conv_general_dilated(
        x, conv_w, window_strides=(1, 1),
        padding=((pad, pad), (pad, pad)),
        dimension_numbers=("NCHW", "OIHW", "NCHW"),
        precision=lax.Precision.HIGHEST)
    scale = gamma / jnp.sqrt(run_var + eps)
    shift = beta - run_mean * scale
    y = y * scale[None, :, None, None] + shift[None, :, None, None]
    return y * jax.nn.sigmoid(y)


def reference_bf16_inputs(x, conv_w, gamma, beta, run_mean, run_var, eps=1e-5):
    """Same math as the kernel (bf16 operands, fp32 accum), fp32 output."""
    pad = (conv_w.shape[-1] - 1) // 2
    scale = gamma * lax.rsqrt(run_var + eps)
    shift = beta - run_mean * scale
    xq = x.astype(jnp.bfloat16).astype(jnp.float32)
    wq = (conv_w * scale[:, None, None, None]).astype(jnp.bfloat16).astype(jnp.float32)
    y = lax.conv_general_dilated(
        xq, wq, window_strides=(1, 1),
        padding=((pad, pad), (pad, pad)),
        dimension_numbers=("NCHW", "OIHW", "NCHW"),
        precision=lax.Precision.HIGHEST)
    y = y + shift[None, :, None, None]
    return y * jax.nn.sigmoid(y)


if __name__ == "__main__":
    # small shapes consistent with the module: batch=2, in_planes=4,
    # out_planes=8, spatial=16, kernel_size=3, stride=1, groups=1
    N, Cin, Cout, H, W, K = 2, 4, 8, 16, 16, 3

    key = jax.random.PRNGKey(0)
    k1, k2, k3, k4, k5, k6 = jax.random.split(key, 6)
    x = jax.random.normal(k1, (N, Cin, H, W), jnp.float32)
    conv_w = jax.random.normal(k2, (Cout, Cin, K, K), jnp.float32) * 0.1
    gamma = jax.random.uniform(k3, (Cout,), jnp.float32, 0.5, 1.5)
    beta = jax.random.normal(k4, (Cout,), jnp.float32) * 0.1
    run_mean = jax.random.normal(k5, (Cout,), jnp.float32) * 0.1
    run_var = jax.random.uniform(k6, (Cout,), jnp.float32, 0.5, 1.5)

    out = jax.jit(conv_bn_act)(x, conv_w, gamma, beta, run_mean, run_var)
    out = jax.block_until_ready(out)
    assert out.shape == (N, Cout, H, W), out.shape
    out_f32 = out.astype(jnp.float32)

    # check against the kernel's own math (bf16 operands, fp32 accumulation);
    # tolerance covers the bf16 rounding of the stored output.
    ref_q = jax.block_until_ready(
        reference_bf16_inputs(x, conv_w, gamma, beta, run_mean, run_var))
    assert jnp.allclose(out_f32, ref_q, atol=2e-2, rtol=2e-2), (
        float(jnp.max(jnp.abs(out_f32 - ref_q))))

    # sanity check against full-fp32 module semantics
    ref = jax.block_until_ready(
        reference_fp32(x, conv_w, gamma, beta, run_mean, run_var))
    assert jnp.allclose(out_f32, ref, atol=5e-2, rtol=5e-2), (
        float(jnp.max(jnp.abs(out_f32 - ref))))

    print("KERNEL_OK")
</pallas_src>

<mosaic_0001>
module attributes {stable_mosaic.version = 11 : i64} {
  func.func @_conv_bn_act_kernel(%arg0: i32, %arg1: i32, %arg2: memref<512x4xbf16, #tpu.memory_space<vmem>>, %arg3: memref<1x64x4xbf16, #tpu.memory_space<vmem>>, %arg4: memref<36x128xbf16, #tpu.memory_space<vmem>>, %arg5: memref<1x128xf32, #tpu.memory_space<vmem>>, %arg6: memref<512x128xbf16, #tpu.memory_space<vmem>>, %arg7: memref<576x4xbf16, #tpu.memory_space<vmem>>, %arg8: memref<512x36xbf16, #tpu.memory_space<vmem>>) attributes {dimension_semantics = [#tpu.dimension_semantics<parallel>, #tpu.dimension_semantics<parallel>], iteration_bounds = array<i64: 1, 2>, scalar_prefetch = 0 : i64, scratch_operands = 2 : i64, tpu.core_type = #tpu.core_type<tc>, window_params = [{transform_indices = @transform_0, window_bounds = array<i64: 512, 4>}, {transform_indices = @transform_1, window_bounds = array<i64: 1, 64, 4>}, {transform_indices = @transform_2, window_bounds = array<i64: 36, 128>}, {transform_indices = @transform_3, window_bounds = array<i64: 1, 128>}, {transform_indices = @transform_4, window_bounds = array<i64: 512, 128>}]} {
    %c0 = arith.constant 0 : index
    %c0_0 = arith.constant 0 : index
    %0 = vector.load %arg2[%c0, %c0_0] : memref<512x4xbf16, #tpu.memory_space<vmem>>, vector<512x4xbf16>
    %c0_1 = arith.constant 0 : index
    %c0_2 = arith.constant 0 : index
    %1 = vector.load %arg7[%c0_1, %c0_2] : memref<576x4xbf16, #tpu.memory_space<vmem>>, vector<512x4xbf16>
    tpu.vector_store %arg7[%c0_1, %c0_2], %0 {strides = array<i32>} : memref<576x4xbf16, #tpu.memory_space<vmem>>, vector<512x4xbf16>,
    %c0_3 = arith.constant 0 : index
    %c0_4 = arith.constant 0 : index
    %c0_5 = arith.constant 0 : index
    %2 = vector.load %arg3[%c0_3, %c0_4, %c0_5] : memref<1x64x4xbf16, #tpu.memory_space<vmem>>, vector<1x64x4xbf16>
    %3 = vector.shape_cast %2 : vector<1x64x4xbf16> to vector<64x4xbf16>
    %c512 = arith.constant 512 : index
    %c0_6 = arith.constant 0 : index
    %4 = vector.load %arg7[%c512, %c0_6] : memref<576x4xbf16, #tpu.memory_space<vmem>>, vector<64x4xbf16>
    tpu.vector_store %arg7[%c512, %c0_6], %3 {strides = array<i32>} : memref<576x4xbf16, #tpu.memory_space<vmem>>, vector<64x4xbf16>,
    %c0_7 = arith.constant 0 : index
    %c0_8 = arith.constant 0 : index
    %5 = vector.load %arg7[%c0_7, %c0_8] : memref<576x4xbf16, #tpu.memory_space<vmem>>, vector<512x4xbf16>
    %c0_9 = arith.constant 0 : index
    %c0_10 = arith.constant 0 : index
    %6 = vector.load %arg8[%c0_9, %c0_10] : memref<512x36xbf16, #tpu.memory_space<vmem>>, vector<512x4xbf16>
    tpu.vector_store %arg8[%c0_9, %c0_10], %5 {strides = array<i32>} : memref<512x36xbf16, #tpu.memory_space<vmem>>, vector<512x4xbf16>,
    %c1 = arith.constant 1 : index
    %c0_11 = arith.constant 0 : index
    %7 = vector.load %arg7[%c1, %c0_11] : memref<576x4xbf16, #tpu.memory_space<vmem>>, vector<512x4xbf16>
    %c0_12 = arith.constant 0 : index
    %c4 = arith.constant 4 : index
    %8 = vector.load %arg8[%c0_12, %c4] : memref<512x36xbf16, #tpu.memory_space<vmem>>, vector<512x4xbf16>
    tpu.vector_store %arg8[%c0_12, %c4], %7 {strides = array<i32>} : memref<512x36xbf16, #tpu.memory_space<vmem>>, vector<512x4xbf16>,
    %c2 = arith.constant 2 : index
    %c0_13 = arith.constant 0 : index
    %9 = vector.load %arg7[%c2, %c0_13] : memref<576x4xbf16, #tpu.memory_space<vmem>>, vector<512x4xbf16>
    %c0_14 = arith.constant 0 : index
    %c8 = arith.constant 8 : index
    %10 = vector.load %arg8[%c0_14, %c8] : memref<512x36xbf16, #tpu.memory_space<vmem>>, vector<512x4xbf16>
    tpu.vector_store %arg8[%c0_14, %c8], %9 {strides = array<i32>} : memref<512x36xbf16, #tpu.memory_space<vmem>>, vector<512x4xbf16>,
    %c18 = arith.constant 18 : index
    %c0_15 = arith.constant 0 : index
    %11 = vector.load %arg7[%c18, %c0_15] : memref<576x4xbf16, #tpu.memory_space<vmem>>, vector<512x4xbf16>
    %c0_16 = arith.constant 0 : index
    %c12 = arith.constant 12 : index
    %12 = vector.load %arg8[%c0_16, %c12] : memref<512x36xbf16, #tpu.memory_space<vmem>>, vector<512x4xbf16>
    tpu.vector_store %arg8[%c0_16, %c12], %11 {strides = array<i32>} : memref<512x36xbf16, #tpu.memory_space<vmem>>, vector<512x4xbf16>,
    %c19 = arith.constant 19 : index
    %c0_17 = arith.constant 0 : index
    %13 = vector.load %arg7[%c19, %c0_17] : memref<576x4xbf16, #tpu.memory_space<vmem>>, vector<512x4xbf16>
    %c0_18 = arith.constant 0 : index
    %c16 = arith.constant 16 : index
    %14 = vector.load %arg8[%c0_18, %c16] : memref<512x36xbf16, #tpu.memory_space<vmem>>, vector<512x4xbf16>
    tpu.vector_store %arg8[%c0_18, %c16], %13 {strides = array<i32>} : memref<512x36xbf16, #tpu.memory_space<vmem>>, vector<512x4xbf16>,
    %c20 = arith.constant 20 : index
    %c0_19 = arith.constant 0 : index
    %15 = vector.load %arg7[%c20, %c0_19] : memref<576x4xbf16, #tpu.memory_space<vmem>>, vector<512x4xbf16>
    %c0_20 = arith.constant 0 : index
    %c20_21 = arith.constant 20 : index
    %16 = vector.load %arg8[%c0_20, %c20_21] : memref<512x36xbf16, #tpu.memory_space<vmem>>, vector<512x4xbf16>
    tpu.vector_store %arg8[%c0_20, %c20_21], %15 {strides = array<i32>} : memref<512x36xbf16, #tpu.memory_space<vmem>>, vector<512x4xbf16>,
    %c36 = arith.constant 36 : index
    %c0_22 = arith.constant 0 : index
    %17 = vector.load %arg7[%c36, %c0_22] : memref<576x4xbf16, #tpu.memory_space<vmem>>, vector<512x4xbf16>
    %c0_23 = arith.constant 0 : index
    %c24 = arith.constant 24 : index
    %18 = vector.load %arg8[%c0_23, %c24] : memref<512x36xbf16, #tpu.memory_space<vmem>>, vector<512x4xbf16>
    tpu.vector_store %arg8[%c0_23, %c24], %17 {strides = array<i32>} : memref<512x36xbf16, #tpu.memory_space<vmem>>, vector<512x4xbf16>,
    %c37 = arith.constant 37 : index
    %c0_24 = arith.constant 0 : index
    %19 = vector.load %arg7[%c37, %c0_24] : memref<576x4xbf16, #tpu.memory_space<vmem>>, vector<512x4xbf16>
    %c0_25 = arith.constant 0 : index
    %c28 = arith.constant 28 : index
    %20 = vector.load %arg8[%c0_25, %c28] : memref<512x36xbf16, #tpu.memory_space<vmem>>, vector<512x4xbf16>
    tpu.vector_store %arg8[%c0_25, %c28], %19 {strides = array<i32>} : memref<512x36xbf16, #tpu.memory_space<vmem>>, vector<512x4xbf16>,
    %c38 = arith.constant 38 : index
    %c0_26 = arith.constant 0 : index
    %21 = vector.load %arg7[%c38, %c0_26] : memref<576x4xbf16, #tpu.memory_space<vmem>>, vector<512x4xbf16>
    %c0_27 = arith.constant 0 : index
    %c32 = arith.constant 32 : index
    %22 = vector.load %arg8[%c0_27, %c32] : memref<512x36xbf16, #tpu.memory_space<vmem>>, vector<512x4xbf16>
    tpu.vector_store %arg8[%c0_27, %c32], %21 {strides = array<i32>} : memref<512x36xbf16, #tpu.memory_space<vmem>>, vector<512x4xbf16>,
    %c0_28 = arith.constant 0 : index
    %c0_29 = arith.constant 0 : index
    %23 = vector.load %arg8[%c0_28, %c0_29] : memref<512x36xbf16, #tpu.memory_space<vmem>>, vector<512x36xbf16>
    %c0_30 = arith.constant 0 : index
    %c0_31 = arith.constant 0 : index
    %24 = vector.load %arg4[%c0_30, %c0_31] : memref<36x128xbf16, #tpu.memory_space<vmem>>, vector<36x128xbf16>
    %cst = arith.constant dense<0.000000e+00> : vector<512x128xf32>
    %25 = tpu.matmul %23, %24, %cst {dimension_numbers = #tpu.dot_dimension_numbers<[1], [0], [0], [1], [0, 0, 1, 1], [], []>} : vector<512x36xbf16>, vector<36x128xbf16>, vector<512x128xf32> -> vector<512x128xf32>
    %c0_32 = arith.constant 0 : index
    %c0_33 = arith.constant 0 : index
    %26 = vector.load %arg5[%c0_32, %c0_33] : memref<1x128xf32, #tpu.memory_space<vmem>>, vector<1x128xf32>
    %27 = vector.broadcast %26 : vector<1x128xf32> to vector<512x128xf32>
    %28 = arith.addf %25, %27 : vector<512x128xf32>
    %29 = arith.negf %28 : vector<512x128xf32>
    %30 = math.exp %29 : vector<512x128xf32>
    %cst_34 = arith.constant 1.000000e+00 : f32
    %31 = vector.broadcast %cst_34 : f32 to vector<512x128xf32>
    %32 = arith.addf %31, %30 : vector<512x128xf32>
    %33 = arith.divf %31, %32 : vector<512x128xf32>
    %34 = arith.mulf %28, %33 : vector<512x128xf32>
    %35 = arith.truncf %34 : vector<512x128xf32> to vector<512x128xbf16>
    %c0_35 = arith.constant 0 : index
    %c0_36 = arith.constant 0 : index
    %36 = vector.load %arg6[%c0_35, %c0_36] : memref<512x128xbf16, #tpu.memory_space<vmem>>, vector<512x128xbf16>
    tpu.vector_store %arg6[%c0_35, %c0_36], %35 {strides = array<i32>} : memref<512x128xbf16, #tpu.memory_space<vmem>>, vector<512x128xbf16>,
    return
  }
  func.func @transform_0(%arg0: i32, %arg1: i32) -> (i32, i32) {
    %c0_i32 = arith.constant 0 : i32
    %c0_i32_0 = arith.constant 0 : i32
    return %arg1, %c0_i32 : i32, i32
  }
  func.func @transform_1(%arg0: i32, %arg1: i32) -> (i32, i32, i32) {
    %c0_i32 = arith.constant 0 : i32
    %c0_i32_0 = arith.constant 0 : i32
    %c0_i32_1 = arith.constant 0 : i32
    return %arg1, %c0_i32, %c0_i32_0 : i32, i32, i32
  }
  func.func @transform_2(%arg0: i32, %arg1: i32) -> (i32, i32) {
    %c0_i32 = arith.constant 0 : i32
    %c0_i32_0 = arith.constant 0 : i32
    return %c0_i32, %arg0 : i32, i32
  }
  func.func @transform_3(%arg0: i32, %arg1: i32) -> (i32, i32) {
    %c0_i32 = arith.constant 0 : i32
    %c0_i32_0 = arith.constant 0 : i32
    return %c0_i32, %arg0 : i32, i32
  }
  func.func @transform_4(%arg0: i32, %arg1: i32) -> (i32, i32) {
    %c0_i32 = arith.constant 0 : i32
    return %arg1, %arg0 : i32, i32
  }
}

</mosaic_0001>

<llo_original>
// kernel: conv_bn_act.1
$region0: #{conv_bn_act.1}
  #allocation0 [shape = 'u32[]', space=smem, size = 0x4, offset = 0x4, fixed_abs, tag = 'smem constant byte address 0x4 - core index']
  #allocation1 [shape = 'u32[144,128]{1,0:T(1,128)}', space=vmem, size = 0x12000, scoped, tag = 'internal scratch']
  #allocation2 [shape = 'bf16[576,4]{1,0:T(16,128)(2,1)}', space=vmem, size = 0x24000, scoped, tag = 'scratch operand']
  #allocation3 [shape = 'bf16[512,36]{1,0:T(16,128)(2,1)}', space=vmem, size = 0x20000, scoped, tag = 'scratch operand']
  %s0 = inlined_call_operand.vmem [shape: bf16[1024,4], index: 0, kind: input, shape index: {}]
  %s1 = inlined_call_operand.vmem [shape: bf16[2,64,4], index: 1, kind: input, shape index: {}]
  %s2 = inlined_call_operand.vmem [shape: bf16[36,128], index: 2, kind: input, shape index: {}]
  %s3 = inlined_call_operand.vmem [shape: f32[1,128], index: 3, kind: input, shape index: {}]
  %s4 = inlined_call_operand.vmem [shape: bf16[1024,128], index: 4, kind: output, shape index: {}]
  %s5 = sld [smem:[#allocation0]]
  $region49: #{conv_bn_act.1} parent=0
    _
  %s7 = ssub.s32 1, %s5
  %s8 = scalar_select 0, %s7, %s5
  loop: start=0, step=1, limit=4
  $region2: #{conv_bn_act.1} parent=0 // loop_pre_header
    _
  $region3: #{conv_bn_act.1} parent=0 // loop_header
    %s10 = sphi 0, %s14
    %p11 = scmp.ge.s32.totalorder %s10, 4
    %s17 = sphi 0, %s29
    %s18 = sphi 0, %s25
    %s19 = sphi 0, %s17
    %s20 = sphi 0, %s18
    %s21 = sphi 0, %s19
    %s22 = sphi 0, %s20
    %s32 = sphi 0, %s34
    %s35 = sphi 0, %s32
    %s36 = sphi 0, %s35
    %s52 = sphi 0, %s36
    %s58 = sphi 0, %s60
    %s61 = sphi 0, %s58
    %s62 = sphi 0, %s61
    %s78 = sphi 0, %s62
    %s84 = sphi 0, %s86
    %s87 = sphi 0, %s84
    %s88 = sphi 0, %s87
    %s104 = sphi 0, %s88
    %s110 = sphi 0, %s112
    %s113 = sphi 0, %s110
    %s114 = sphi 0, %s113
    %s130 = sphi 0, %s114
    %s138 = sphi 0, %s140
    %s141 = sphi 0, %s138
    %s142 = sphi 0, %s141
    %s158 = sphi 0, %s142
  $region4: #{conv_bn_act.1} parent=0 // loop_header_branch
    %13 = sbr.rel (%p11) target = $region8
  $region5: #{conv_bn_act.1} parent=0 // loop_body
    %s15 = ssub.s32 %s10, 1
    %s16 = ssub.s32 %s10, 2
    %s23 = sadd.s32 1, %s18
    %p24 = scmp.ge.s32.totalorder %s23, 2
    %s25 = scalar_select %p24, 0, %s23
    %s26 = sadd.s32 1, %s17
    %s27 = scalar_select %p24, %s26, %s17
    %p28 = scmp.ge.s32.totalorder %s27, 1
    %s29 = scalar_select %p28, 0, %s27
    %s30 = ssub.s32 %s18, %s25
    %p31 = scmp.eq.s32.totalorder %s30, 0
    %s33 = sadd.s32 %s32, 1
    %s34 = scalar_select %p31, %s32, %s33
    %p37 = pneg %p31
    %p38 = scmp.eq.s32.totalorder %s10, 1
    %p39 = por %p37, %p38
    %p40 = scmp.ne.s32.totalorder %s32, %s35
    %p41 = scmp.eq.s32.totalorder %s10, 0
    %p42 = por %p40, %p41
    %p43 = scmp.ne.s32.totalorder %s32, %s35
    %p44 = scmp.eq.s32.totalorder %s15, 1
    %p45 = por %p43, %p44
    %p46 = scmp.ne.s32.totalorder %s35, %s36
    %p47 = scmp.eq.s32.totalorder %s15, 0
    %p48 = por %p46, %p47
    %p49 = scmp.ne.s32.totalorder %s35, %s36
    %p50 = scmp.eq.s32.totalorder %s16, 1
    %p51 = por %p49, %p50
    %p53 = scmp.ne.s32.totalorder %s36, %s52
    %p54 = scmp.eq.s32.totalorder %s16, 0
    %p55 = por %p53, %p54
    %s56 = ssub.s32 %s18, %s25
    %p57 = scmp.eq.s32.totalorder %s56, 0
    %s59 = sadd.s32 %s58, 1
    %s60 = scalar_select %p57, %s58, %s59
    %p63 = pneg %p57
    %p64 = scmp.eq.s32.totalorder %s10, 1
    %p65 = por %p63, %p64
    %p66 = scmp.ne.s32.totalorder %s58, %s61
    %p67 = scmp.eq.s32.totalorder %s10, 0
    %p68 = por %p66, %p67
    %p69 = scmp.ne.s32.totalorder %s58, %s61
    %p70 = scmp.eq.s32.totalorder %s15, 1
    %p71 = por %p69, %p70
    %p72 = scmp.ne.s32.totalorder %s61, %s62
    %p73 = scmp.eq.s32.totalorder %s15, 0
    %p74 = por %p72, %p73
    %p75 = scmp.ne.s32.totalorder %s61, %s62
    %p76 = scmp.eq.s32.totalorder %s16, 1
    %p77 = por %p75, %p76
    %p79 = scmp.ne.s32.totalorder %s62, %s78
    %p80 = scmp.eq.s32.totalorder %s16, 0
    %p81 = por %p79, %p80
    %s82 = ssub.s32 %s17, %s29
    %p83 = scmp.eq.s32.totalorder %s82, 0
    %s85 = sadd.s32 %s84, 1
    %s86 = scalar_select %p83, %s84, %s85
    %p89 = pneg %p83
    %p90 = scmp.eq.s32.totalorder %s10, 1
    %p91 = por %p89, %p90
    %p92 = scmp.ne.s32.totalorder %s84, %s87
    %p93 = scmp.eq.s32.totalorder %s10, 0
    %p94 = por %p92, %p93
    %p95 = scmp.ne.s32.totalorder %s84, %s87
    %p96 = scmp.eq.s32.totalorder %s15, 1
    %p97 = por %p95, %p96
    %p98 = scmp.ne.s32.totalorder %s87, %s88
    %p99 = scmp.eq.s32.totalorder %s15, 0
    %p100 = por %p98, %p99
    %p101 = scmp.ne.s32.totalorder %s87, %s88
    %p102 = scmp.eq.s32.totalorder %s16, 1
    %p103 = por %p101, %p102
    %p105 = scmp.ne.s32.totalorder %s88, %s104
    %p106 = scmp.eq.s32.totalorder %s16, 0
    %p107 = por %p105, %p106
    %s108 = ssub.s32 %s17, %s29
    %p109 = scmp.eq.s32.totalorder %s108, 0
    %s111 = sadd.s32 %s110, 1
    %s112 = scalar_select %p109, %s110, %s111
    %p115 = pneg %p109
    %p116 = scmp.eq.s32.totalorder %s10, 1
    %p117 = por %p115, %p116
    %p118 = scmp.ne.s32.totalorder %s110, %s113
    %p119 = scmp.eq.s32.totalorder %s10, 0
    %p120 = por %p118, %p119
    %p121 = scmp.ne.s32.totalorder %s110, %s113
    %p122 = scmp.eq.s32.totalorder %s15, 1
    %p123 = por %p121, %p122
    %p124 = scmp.ne.s32.totalorder %s113, %s114
    %p125 = scmp.eq.s32.totalorder %s15, 0
    %p126 = por %p124, %p125
    %p127 = scmp.ne.s32.totalorder %s113, %s114
    %p128 = scmp.eq.s32.totalorder %s16, 1
    %p129 = por %p127, %p128
    %p131 = scmp.ne.s32.totalorder %s114, %s130
    %p132 = scmp.eq.s32.totalorder %s16, 0
    %p133 = por %p131, %p132
    %s134 = ssub.s32 %s18, %s25
    %s135 = ssub.s32 %s17, %s29
    %s136 = sor.u32 %s134, %s135
    %p137 = scmp.eq.s32.totalorder %s136, 0
    %s139 = sadd.s32 %s138, 1
    %s140 = scalar_select %p137, %s138, %s139
    %p143 = pneg %p137
    %p144 = scmp.eq.s32.totalorder %s10, 1
    %p145 = por %p143, %p144
    %p146 = scmp.ne.s32.totalorder %s138, %s141
    %p147 = scmp.eq.s32.totalorder %s10, 0
    %p148 = por %p146, %p147
    %p149 = scmp.ne.s32.totalorder %s138, %s141
    %p150 = scmp.eq.s32.totalorder %s15, 1
    %p151 = por %p149, %p150
    %p152 = scmp.ne.s32.totalorder %s141, %s142
    %p153 = scmp.eq.s32.totalorder %s15, 0
    %p154 = por %p152, %p153
    %p155 = scmp.ne.s32.totalorder %s141, %s142
    %p156 = scmp.eq.s32.totalorder %s16, 1
    %p157 = por %p155, %p156
    %p159 = scmp.ne.s32.totalorder %s142, %s158
    %p160 = scmp.eq.s32.totalorder %s16, 0
    %p161 = por %p159, %p160
    %p162 = scmp.le.s32.totalorder 1, %s10
    %p163 = scmp.lt.s32.totalorder %s10, 3
    %p164 = pnand %p162, %p163
    %p165 = pneg %p164
    // Predicated region
    $region9: #{conv_bn_act.1} parent=5 // pred_check
      _
    $region10: #{conv_bn_act.1} parent=5 // pred_check_branch
      %167 = sbr.rel (%p164) target = $region12
    $region11: #{conv_bn_act.1} parent=5 // pred_region
      %s168 = ssub.s32 %s10, 1
      // Predicated region
      $region13: #{conv_bn_act.1} parent=11 // pred_check
        %p169 = pneg %p100
      $region14: #{conv_bn_act.1} parent=11 // pred_check_branch
        %171 = sbr.rel (%p169) target = $region16
      $region15: #{conv_bn_act.1} parent=11 // pred_region
        %p172 = scmp.lt.s32.totalorder %s19, 0
        %s173 = scalar_select %p172, %s19, 0
        %s174 = smul.addr %s173, 4
        %s175 = scalar_lea.vmem %s2, %s174
      $region16: #{conv_bn_act.1} parent=11 // pred_fallthru
        _
      // Predicated region
      $region17: #{conv_bn_act.1} parent=11 // pred_check
        %p176 = pneg %p126
      $region18: #{conv_bn_act.1} parent=11 // pred_check_branch
        %178 = sbr.rel (%p176) target = $region20
      $region19: #{conv_bn_act.1} parent=11 // pred_region
        %p179 = scmp.lt.s32.totalorder %s19, 0
        %s180 = scalar_select %p179, %s19, 0
        %s181 = scalar_lea.vmem %s3, %s180
      $region20: #{conv_bn_act.1} parent=11 // pred_fallthru
        _
    $region12: #{conv_bn_act.1} parent=5 // pred_fallthru
      _
    %p182 = scmp.lt.s32.totalorder %s10, 2
    // Predicated region
    $region21: #{conv_bn_act.1} parent=5 // pred_check
      %p183 = pneg %p182
    $region22: #{conv_bn_act.1} parent=5 // pred_check_branch
      %185 = sbr.rel (%p183) target = $region24
    $region23: #{conv_bn_act.1} parent=5 // pred_region
      // Predicated region
      $region25: #{conv_bn_act.1} parent=23 // pred_check
        %p186 = pneg %p42
      $region26: #{conv_bn_act.1} parent=23 // pred_check_branch
        %188 = sbr.rel (%p186) target = $region28
      $region27: #{conv_bn_act.1} parent=23 // pred_region
        %s189 = smul.u32 64, %s18
        %p190 = scmp.lt.s32.totalorder %s189, 127
        %s191 = scalar_select %p190, %s189, 127
        %s192 = smul.addr %s191, 4
        %s193 = scalar_lea.vmem %s0, %s192
        %s194 = smul.u32 64, %s18
      $region28: #{conv_bn_act.1} parent=23 // pred_fallthru
        _
      // Predicated region
      $region29: #{conv_bn_act.1} parent=23 // pred_check
        %p195 = pneg %p68
      $region30: #{conv_bn_act.1} parent=23 // pred_check_branch
        %197 = sbr.rel (%p195) target = $region32
      $region31: #{conv_bn_act.1} parent=23 // pred_region
        %p198 = scmp.lt.s32.totalorder %s18, 1
        %s199 = scalar_select %p198, %s18, 1
        %s200 = smul.addr %s199, 8
        %s201 = smul.addr %s200, 4
        %s202 = scalar_lea.vmem %s1, %s201
      $region32: #{conv_bn_act.1} parent=23 // pred_fallthru
        _
    $region24: #{conv_bn_act.1} parent=5 // pred_fallthru
      _
    %p203 = scmp.le.s32.totalorder 1, %s10
    %p204 = scmp.lt.s32.totalorder %s10, 3
    %p205 = pnand %p203, %p204
    %p206 = pneg %p205
    // Predicated region
    $region33: #{conv_bn_act.1} parent=5 // pred_check
      _
    $region34: #{conv_bn_act.1} parent=5 // pred_check_branch
      %208 = sbr.rel (%p205) target = $region36
    $region35: #{conv_bn_act.1} parent=5 // pred_region
      %s209 = ssub.s32 %s10, 1
      %s210 = smul.u32 64, %s20
      %p211 = scmp.lt.s32.totalorder %s210, 127
      %s212 = scalar_select %p211, %s210, 127
      %s213 = smul.addr %s212, 4
      %s214 = scalar_lea.vmem %s0, %s213
      %p215 = pneg %p48
      %p216 = pneg %p45
      %p217 = scmp.lt.s32.totalorder %s20, 1
      %s218 = scalar_select %p217, %s20, 1
      %s219 = smul.addr %s218, 8
      %s220 = smul.addr %s219, 4
      %s221 = scalar_lea.vmem %s1, %s220
      %p222 = pneg %p74
      %p223 = pneg %p71
      %p224 = scmp.lt.s32.totalorder %s19, 0
      %s225 = scalar_select %p224, %s19, 0
      %s226 = smul.addr %s225, 4
      %s227 = scalar_lea.vmem %s2, %s226
      %p228 = pneg %p100
      %p229 = pneg %p97
      %p230 = scmp.lt.s32.totalorder %s19, 0
      %s231 = scalar_select %p230, %s19, 0
      %s232 = scalar_lea.vmem %s3, %s231
      %p233 = pneg %p126
      %p234 = pneg %p123
      %p235 = pneg %p154
      %p236 = pneg %p151
      %s237 = smul.u32 64, %s20
      %p238 = scmp.lt.s32.totalorder %s237, 127
      %s239 = scalar_select %p238, %s237, 127
      %p240 = scmp.lt.s32.totalorder %s19, 0
      %s241 = scalar_select %p240, %s19, 0
      %s242 = sadd.s32 %s241, %s239
      %s243 = smul.addr %s242, 4
      %s244 = scalar_lea.vmem %s4, %s243
      %s245 = smul.u32 64, %s20
      %p246 = scmp.lt.s32.totalorder %s245, 127
      %s247 = scalar_select %p246, %s245, 127
      %s248 = smul.addr %s247, 4
      %s249 = scalar_lea.vmem %s0, %s248
      %s250 = smul.u32 64, %s20
      %p251 = scmp.lt.s32.totalorder %s20, 1
      %s252 = scalar_select %p251, %s20, 1
      %s253 = smul.addr %s252, 8
      %s254 = smul.addr %s253, 4
      %s255 = scalar_lea.vmem %s1, %s254
      %p256 = scmp.lt.s32.totalorder %s19, 0
      %s257 = scalar_select %p256, %s19, 0
      %s258 = smul.addr %s257, 4
      %s259 = scalar_lea.vmem %s2, %s258
      %p260 = scmp.lt.s32.totalorder %s19, 0
      %s261 = scalar_select %p260, %s19, 0
      %s262 = scalar_lea.vmem %s3, %s261
      %s263 = smul.u32 64, %s20
      %p264 = scmp.lt.s32.totalorder %s263, 127
      %s265 = scalar_select %p264, %s263, 127
      %p266 = scmp.lt.s32.totalorder %s19, 0
      %s267 = scalar_select %p266, %s19, 0
      %s268 = sadd.s32 %s267, %s265
      %s269 = smul.addr %s268, 4
      %s270 = scalar_lea.vmem %s4, %s269
      %s271 = smul.u32 64, %s20
      %v273 = vld [vmem:[%s249] sm:$0xf]
      %v274 = vld [vmem:[%s249 + $0x4] sm:$0xf]
      %v275 = vld [vmem:[%s249 + $0x8] sm:$0xf]
      %v276 = vld [vmem:[%s249 + $0xc] sm:$0xf]
      %v277 = vld [vmem:[%s249 + $0x10] sm:$0xf]
      %v278 = vld [vmem:[%s249 + $0x14] sm:$0xf]
      %v279 = vld [vmem:[%s249 + $0x18] sm:$0xf]
      %v280 = vld [vmem:[%s249 + $0x1c] sm:$0xf]
      %v281 = vld [vmem:[%s249 + $0x20] sm:$0xf]
      %v282 = vld [vmem:[%s249 + $0x24] sm:$0xf]
      %v283 = vld [vmem:[%s249 + $0x28] sm:$0xf]
      %v284 = vld [vmem:[%s249 + $0x2c] sm:$0xf]
      %v285 = vld [vmem:[%s249 + $0x30] sm:$0xf]
      %v286 = vld [vmem:[%s249 + $0x34] sm:$0xf]
      %v287 = vld [vmem:[%s249 + $0x38] sm:$0xf]
      %v288 = vld [vmem:[%s249 + $0x3c] sm:$0xf]
      %v289 = vld [vmem:[%s249 + $0x40] sm:$0xf]
      %v290 = vld [vmem:[%s249 + $0x44] sm:$0xf]
      %v291 = vld [vmem:[%s249 + $0x48] sm:$0xf]
      %v292 = vld [vmem:[%s249 + $0x4c] sm:$0xf]
      %v293 = vld [vmem:[%s249 + $0x50] sm:$0xf]
      %v294 = vld [vmem:[%s249 + $0x54] sm:$0xf]
      %v295 = vld [vmem:[%s249 + $0x58] sm:$0xf]
      %v296 = vld [vmem:[%s249 + $0x5c] sm:$0xf]
      %v297 = vld [vmem:[%s249 + $0x60] sm:$0xf]
      %v298 = vld [vmem:[%s249 + $0x64] sm:$0xf]
      %v299 = vld [vmem:[%s249 + $0x68] sm:$0xf]
      %v300 = vld [vmem:[%s249 + $0x6c] sm:$0xf]
      %v301 = vld [vmem:[%s249 + $0x70] sm:$0xf]
      %v302 = vld [vmem:[%s249 + $0x74] sm:$0xf]
      %v303 = vld [vmem:[%s249 + $0x78] sm:$0xf]
      %v304 = vld [vmem:[%s249 + $0x7c] sm:$0xf]
      %v305 = vld [vmem:[%s249 + $0x80] sm:$0xf]
      %v306 = vld [vmem:[%s249 + $0x84] sm:$0xf]
      %v307 = vld [vmem:[%s249 + $0x88] sm:$0xf]
      %v308 = vld [vmem:[%s249 + $0x8c] sm:$0xf]
      %v309 = vld [vmem:[%s249 + $0x90] sm:$0xf]
      %v310 = vld [vmem:[%s249 + $0x94] sm:$0xf]
      %v311 = vld [vmem:[%s249 + $0x98] sm:$0xf]
      %v312 = vld [vmem:[%s249 + $0x9c] sm:$0xf]
      %v313 = vld [vmem:[%s249 + $0xa0] sm:$0xf]
      %v314 = vld [vmem:[%s249 + $0xa4] sm:$0xf]
      %v315 = vld [vmem:[%s249 + $0xa8] sm:$0xf]
      %v316 = vld [vmem:[%s249 + $0xac] sm:$0xf]
      %v317 = vld [vmem:[%s249 + $0xb0] sm:$0xf]
      %v318 = vld [vmem:[%s249 + $0xb4] sm:$0xf]
      %v319 = vld [vmem:[%s249 + $0xb8] sm:$0xf]
      %v320 = vld [vmem:[%s249 + $0xbc] sm:$0xf]
      %v321 = vld [vmem:[%s249 + $0xc0] sm:$0xf]
      %v322 = vld [vmem:[%s249 + $0xc4] sm:$0xf]
      %v323 = vld [vmem:[%s249 + $0xc8] sm:$0xf]
      %v324 = vld [vmem:[%s249 + $0xcc] sm:$0xf]
      %v325 = vld [vmem:[%s249 + $0xd0] sm:$0xf]
      %v326 = vld [vmem:[%s249 + $0xd4] sm:$0xf]
      %v327 = vld [vmem:[%s249 + $0xd8] sm:$0xf]
      %v328 = vld [vmem:[%s249 + $0xdc] sm:$0xf]
      %v329 = vld [vmem:[%s249 + $0xe0] sm:$0xf]
      %v330 = vld [vmem:[%s249 + $0xe4] sm:$0xf]
      %v331 = vld [vmem:[%s249 + $0xe8] sm:$0xf]
      %v332 = vld [vmem:[%s249 + $0xec] sm:$0xf]
      %v333 = vld [vmem:[%s249 + $0xf0] sm:$0xf]
      %v334 = vld [vmem:[%s249 + $0xf4] sm:$0xf]
      %v335 = vld [vmem:[%s249 + $0xf8] sm:$0xf]
      %v336 = vld [vmem:[%s249 + $0xfc] sm:$0xf]
      %v401 = vunpack.c.l.b16 %v273
      %v402 = vunpack.c.l.b16 %v274
      %v403 = vunpack.c.l.b16 %v275
      %v404 = vunpack.c.l.b16 %v276
      %v405 = vunpack.c.l.b16 %v277
      %v406 = vunpack.c.l.b16 %v278
      %v407 = vunpack.c.l.b16 %v279
      %v408 = vunpack.c.l.b16 %v280
      %v409 = vunpack.c.l.b16 %v281
      %v410 = vunpack.c.l.b16 %v282
      %v411 = vunpack.c.l.b16 %v283
      %v412 = vunpack.c.l.b16 %v284
      %v413 = vunpack.c.l.b16 %v285
      %v414 = vunpack.c.l.b16 %v286
      %v415 = vunpack.c.l.b16 %v287
      %v416 = vunpack.c.l.b16 %v288
      %v417 = vunpack.c.l.b16 %v289
      %v418 = vunpack.c.l.b16 %v290
      %v419 = vunpack.c.l.b16 %v291
      %v420 = vunpack.c.l.b16 %v292
      %v421 = vunpack.c.l.b16 %v293
      %v422 = vunpack.c.l.b16 %v294
      %v423 = vunpack.c.l.b16 %v295
      %v424 = vunpack.c.l.b16 %v296
      %v425 = vunpack.c.l.b16 %v297
      %v426 = vunpack.c.l.b16 %v298
      %v427 = vunpack.c.l.b16 %v299
      %v428 = vunpack.c.l.b16 %v300
      %v429 = vunpack.c.l.b16 %v301
      %v430 = vunpack.c.l.b16 %v302
      %v431 = vunpack.c.l.b16 %v303
      %v432 = vunpack.c.l.b16 %v304
      %v433 = vunpack.c.l.b16 %v305
      %v434 = vunpack.c.l.b16 %v306
      %v435 = vunpack.c.l.b16 %v307
      %v436 = vunpack.c.l.b16 %v308
      %v437 = vunpack.c.l.b16 %v309
      %v438 = vunpack.c.l.b16 %v310
      %v439 = vunpack.c.l.b16 %v311
      %v440 = vunpack.c.l.b16 %v312
      %v441 = vunpack.c.l.b16 %v313
      %v442 = vunpack.c.l.b16 %v314
      %v443 = vunpack.c.l.b16 %v315
      %v444 = vunpack.c.l.b16 %v316
      %v445 = vunpack.c.l.b16 %v317
      %v446 = vunpack.c.l.b16 %v318
      %v447 = vunpack.c.l.b16 %v319
      %v448 = vunpack.c.l.b16 %v320
      %v449 = vunpack.c.l.b16 %v321
      %v450 = vunpack.c.l.b16 %v322
      %v451 = vunpack.c.l.b16 %v323
      %v452 = vunpack.c.l.b16 %v324
      %v453 = vunpack.c.l.b16 %v325
      %v454 = vunpack.c.l.b16 %v326
      %v455 = vunpack.c.l.b16 %v327
      %v456 = vunpack.c.l.b16 %v328
      %v457 = vunpack.c.l.b16 %v329
      %v458 = vunpack.c.l.b16 %v330
      %v459 = vunpack.c.l.b16 %v331
      %v460 = vunpack.c.l.b16 %v332
      %v461 = vunpack.c.l.b16 %v333
      %v462 = vunpack.c.l.b16 %v334
      %v463 = vunpack.c.l.b16 %v335
      %v464 = vunpack.c.l.b16 %v336
      %v465 = vpack.c.b16 %v402, %v401
      %v466 = vpack.c.b16 %v404, %v403
      %v467 = vpack.c.b16 %v406, %v405
      %v468 = vpack.c.b16 %v408, %v407
      %v469 = vpack.c.b16 %v410, %v409
      %v470 = vpack.c.b16 %v412, %v411
      %v471 = vpack.c.b16 %v414, %v413
      %v472 = vpack.c.b16 %v416, %v415
      %v473 = vpack.c.b16 %v418, %v417
      %v474 = vpack.c.b16 %v420, %v419
      %v475 = vpack.c.b16 %v422, %v421
      %v476 = vpack.c.b16 %v424, %v423
      %v477 = vpack.c.b16 %v426, %v425
      %v478 = vpack.c.b16 %v428, %v427
      %v479 = vpack.c.b16 %v430, %v429
      %v480 = vpack.c.b16 %v432, %v431
      %v481 = vpack.c.b16 %v434, %v433
      %v482 = vpack.c.b16 %v436, %v435
      %v483 = vpack.c.b16 %v438, %v437
      %v484 = vpack.c.b16 %v440, %v439
      %v485 = vpack.c.b16 %v442, %v441
      %v486 = vpack.c.b16 %v444, %v443
      %v487 = vpack.c.b16 %v446, %v445
      %v488 = vpack.c.b16 %v448, %v447
      %v489 = vpack.c.b16 %v450, %v449
      %v490 = vpack.c.b16 %v452, %v451
      %v491 = vpack.c.b16 %v454, %v453
      %v492 = vpack.c.b16 %v456, %v455
      %v493 = vpack.c.b16 %v458, %v457
      %v494 = vpack.c.b16 %v460, %v459
      %v495 = vpack.c.b16 %v462, %v461
      %v496 = vpack.c.b16 %v464, %v463
      %vm529 = vcmask 31744
      %530 = vst.msk [vmem:[#allocation2] sm:$0xff] %vm529, %v465
      %531 = vst.msk [vmem:[#allocation2 + $0x8] sm:$0xff] %vm529, %v466
      %532 = vst.msk [vmem:[#allocation2 + $0x10] sm:$0xff] %vm529, %v467
      %533 = vst.msk [vmem:[#allocation2 + $0x18] sm:$0xff] %vm529, %v468
      %534 = vst.msk [vmem:[#allocation2 + $0x20] sm:$0xff] %vm529, %v469
      %535 = vst.msk [vmem:[#allocation2 + $0x28] sm:$0xff] %vm529, %v470
      %536 = vst.msk [vmem:[#allocation2 + $0x30] sm:$0xff] %vm529, %v471
      %537 = vst.msk [vmem:[#allocation2 + $0x38] sm:$0xff] %vm529, %v472
      %538 = vst.msk [vmem:[#allocation2 + $0x40] sm:$0xff] %vm529, %v473
      %539 = vst.msk [vmem:[#allocation2 + $0x48] sm:$0xff] %vm529, %v474
      %540 = vst.msk [vmem:[#allocation2 + $0x50] sm:$0xff] %vm529, %v475
      %541 = vst.msk [vmem:[#allocation2 + $0x58] sm:$0xff] %vm529, %v476
      %542 = vst.msk [vmem:[#allocation2 + $0x60] sm:$0xff] %vm529, %v477
      %543 = vst.msk [vmem:[#allocation2 + $0x68] sm:$0xff] %vm529, %v478
      %544 = vst.msk [vmem:[#allocation2 + $0x70] sm:$0xff] %vm529, %v479
      %545 = vst.msk [vmem:[#allocation2 + $0x78] sm:$0xff] %vm529, %v480
      %546 = vst.msk [vmem:[#allocation2 + $0x80] sm:$0xff] %vm529, %v481
      %547 = vst.msk [vmem:[#allocation2 + $0x88] sm:$0xff] %vm529, %v482
      %548 = vst.msk [vmem:[#allocation2 + $0x90] sm:$0xff] %vm529, %v483
      %549 = vst.msk [vmem:[#allocation2 + $0x98] sm:$0xff] %vm529, %v484
      %550 = vst.msk [vmem:[#allocation2 + $0xa0] sm:$0xff] %vm529, %v485
      %551 = vst.msk [vmem:[#allocation2 + $0xa8] sm:$0xff] %vm529, %v486
      %552 = vst.msk [vmem:[#allocation2 + $0xb0] sm:$0xff] %vm529, %v487
      %553 = vst.msk [vmem:[#allocation2 + $0xb8] sm:$0xff] %vm529, %v488
      %554 = vst.msk [vmem:[#allocation2 + $0xc0] sm:$0xff] %vm529, %v489
      %555 = vst.msk [vmem:[#allocation2 + $0xc8] sm:$0xff] %vm529, %v490
      %556 = vst.msk [vmem:[#allocation2 + $0xd0] sm:$0xff] %vm529, %v491
      %557 = vst.msk [vmem:[#allocation2 + $0xd8] sm:$0xff] %vm529, %v492
      %558 = vst.msk [vmem:[#allocation2 + $0xe0] sm:$0xff] %vm529, %v493
      %559 = vst.msk [vmem:[#allocation2 + $0xe8] sm:$0xff] %vm529, %v494
      %560 = vst.msk [vmem:[#allocation2 + $0xf0] sm:$0xff] %vm529, %v495
      %561 = vst.msk [vmem:[#allocation2 + $0xf8] sm:$0xff] %vm529, %v496
      %v562 = vld [vmem:[%s255] sm:$0xf]
      %v563 = vld [vmem:[%s255 + $0x4] sm:$0xf]
      %v564 = vld [vmem:[%s255 + $0x8] sm:$0xf]
      %v565 = vld [vmem:[%s255 + $0xc] sm:$0xf]
      %v566 = vld [vmem:[%s255 + $0x10] sm:$0xf]
      %v567 = vld [vmem:[%s255 + $0x14] sm:$0xf]
      %v568 = vld [vmem:[%s255 + $0x18] sm:$0xf]
      %v569 = vld [vmem:[%s255 + $0x1c] sm:$0xf]
      %v578 = vunpack.c.l.b16 %v562
      %v579 = vunpack.c.l.b16 %v563
      %v580 = vunpack.c.l.b16 %v564
      %v581 = vunpack.c.l.b16 %v565
      %v582 = vunpack.c.l.b16 %v566
      %v583 = vunpack.c.l.b16 %v567
      %v584 = vunpack.c.l.b16 %v568
      %v585 = vunpack.c.l.b16 %v569
      %v586 = vpack.c.b16 %v579, %v578
      %v587 = vpack.c.b16 %v581, %v580
      %v588 = vpack.c.b16 %v583, %v582
      %v589 = vpack.c.b16 %v585, %v584
      %594 = vst.msk [vmem:[#allocation2 + $0x100] sm:$0xff] %vm529, %v586
      %595 = vst.msk [vmem:[#allocation2 + $0x108] sm:$0xff] %vm529, %v587
      %596 = vst.msk [vmem:[#allocation2 + $0x110] sm:$0xff] %vm529, %v588
      %597 = vst.msk [vmem:[#allocation2 + $0x118] sm:$0xff] %vm529, %v589
      %v598 = vld [vmem:[#allocation2] sm:$0xff]
      %v599 = vld [vmem:[#allocation2 + $0x8] sm:$0xff]
      %v600 = vld [vmem:[#allocation2 + $0x10] sm:$0xff]
      %v601 = vld [vmem:[#allocation2 + $0x18] sm:$0xff]
      %v602 = vld [vmem:[#allocation2 + $0x20] sm:$0xff]
      %v603 = vld [vmem:[#allocation2 + $0x28] sm:$0xff]
      %v604 = vld [vmem:[#allocation2 + $0x30] sm:$0xff]
      %v605 = vld [vmem:[#allocation2 + $0x38] sm:$0xff]
      %v606 = vld [vmem:[#allocation2 + $0x40] sm:$0xff]
      %v607 = vld [vmem:[#allocation2 + $0x48] sm:$0xff]
      %v608 = vld [vmem:[#allocation2 + $0x50] sm:$0xff]
      %v609 = vld [vmem:[#allocation2 + $0x58] sm:$0xff]
      %v610 = vld [vmem:[#allocation2 + $0x60] sm:$0xff]
      %v611 = vld [vmem:[#allocation2 + $0x68] sm:$0xff]
      %v612 = vld [vmem:[#allocation2 + $0x70] sm:$0xff]
      %v613 = vld [vmem:[#allocation2 + $0x78] sm:$0xff]
      %v614 = vld [vmem:[#allocation2 + $0x80] sm:$0xff]
      %v615 = vld [vmem:[#allocation2 + $0x88] sm:$0xff]
      %v616 = vld [vmem:[#allocation2 + $0x90] sm:$0xff]
      %v617 = vld [vmem:[#allocation2 + $0x98] sm:$0xff]
      %v618 = vld [vmem:[#allocation2 + $0xa0] sm:$0xff]
      %v619 = vld [vmem:[#allocation2 + $0xa8] sm:$0xff]
      %v620 = vld [vmem:[#allocation2 + $0xb0] sm:$0xff]
      %v621 = vld [vmem:[#allocation2 + $0xb8] sm:$0xff]
      %v622 = vld [vmem:[#allocation2 + $0xc0] sm:$0xff]
      %v623 = vld [vmem:[#allocation2 + $0xc8] sm:$0xff]
      %v624 = vld [vmem:[#allocation2 + $0xd0] sm:$0xff]
      %v625 = vld [vmem:[#allocation2 + $0xd8] sm:$0xff]
      %v626 = vld [vmem:[#allocation2 + $0xe0] sm:$0xff]
      %v627 = vld [vmem:[#allocation2 + $0xe8] sm:$0xff]
      %v628 = vld [vmem:[#allocation2 + $0xf0] sm:$0xff]
      %v629 = vld [vmem:[#allocation2 + $0xf8] sm:$0xff]
      %630 = vst.msk [vmem:[#allocation3] sm:$0xff] %vm529, %v598
      %631 = vst.msk [vmem:[#allocation3 + $0x8] sm:$0xff] %vm529, %v599
      %632 = vst.msk [vmem:[#allocation3 + $0x10] sm:$0xff] %vm529, %v600
      %633 = vst.msk [vmem:[#allocation3 + $0x18] sm:$0xff] %vm529, %v601
      %634 = vst.msk [vmem:[#allocation3 + $0x20] sm:$0xff] %vm529, %v602
      %635 = vst.msk [vmem:[#allocation3 + $0x28] sm:$0xff] %vm529, %v603
      %636 = vst.msk [vmem:[#allocation3 + $0x30] sm:$0xff] %vm529, %v604
      %637 = vst.msk [vmem:[#allocation3 + $0x38] sm:$0xff] %vm529, %v605
      %638 = vst.msk [vmem:[#allocation3 + $0x40] sm:$0xff] %vm529, %v606
      %639 = vst.msk [vmem:[#allocation3 + $0x48] sm:$0xff] %vm529, %v607
      %640 = vst.msk [vmem:[#allocation3 + $0x50] sm:$0xff] %vm529, %v608
      %641 = vst.msk [vmem:[#allocation3 + $0x58] sm:$0xff] %vm529, %v609
      %642 = vst.msk [vmem:[#allocation3 + $0x60] sm:$0xff] %vm529, %v610
      %643 = vst.msk [vmem:[#allocation3 + $0x68] sm:$0xff] %vm529, %v611
      %644 = vst.msk [vmem:[#allocation3 + $0x70] sm:$0xff] %vm529, %v612
      %645 = vst.msk [vmem:[#allocation3 + $0x78] sm:$0xff] %vm529, %v613
      %646 = vst.msk [vmem:[#allocation3 + $0x80] sm:$0xff] %vm529, %v614
      %647 = vst.msk [vmem:[#allocation3 + $0x88] sm:$0xff] %vm529, %v615
      %648 = vst.msk [vmem:[#allocation3 + $0x90] sm:$0xff] %vm529, %v616
      %649 = vst.msk [vmem:[#allocation3 + $0x98] sm:$0xff] %vm529, %v617
      %650 = vst.msk [vmem:[#allocation3 + $0xa0] sm:$0xff] %vm529, %v618
      %651 = vst.msk [vmem:[#allocation3 + $0xa8] sm:$0xff] %vm529, %v619
      %652 = vst.msk [vmem:[#allocation3 + $0xb0] sm:$0xff] %vm529, %v620
      %653 = vst.msk [vmem:[#allocation3 + $0xb8] sm:$0xff] %vm529, %v621
      %654 = vst.msk [vmem:[#allocation3 + $0xc0] sm:$0xff] %vm529, %v622
      %655 = vst.msk [vmem:[#allocation3 + $0xc8] sm:$0xff] %vm529, %v623
      %656 = vst.msk [vmem:[#allocation3 + $0xd0] sm:$0xff] %vm529, %v624
      %657 = vst.msk [vmem:[#allocation3 + $0xd8] sm:$0xff] %vm529, %v625
      %658 = vst.msk [vmem:[#allocation3 + $0xe0] sm:$0xff] %vm529, %v626
      %659 = vst.msk [vmem:[#allocation3 + $0xe8] sm:$0xff] %vm529, %v627
      %660 = vst.msk [vmem:[#allocation3 + $0xf0] sm:$0xff] %vm529, %v628
      %661 = vst.msk [vmem:[#allocation3 + $0xf8] sm:$0xff] %vm529, %v629
      %v662 = vld [vmem:[#allocation2] sm:$0xff]
      %v663 = vld [vmem:[#allocation2 + $0x8] sm:$0xff]
      %v664 = vld [vmem:[#allocation2 + $0x10] sm:$0xff]
      %v665 = vld [vmem:[#allocation2 + $0x18] sm:$0xff]
      %v666 = vld [vmem:[#allocation2 + $0x20] sm:$0xff]
      %v667 = vld [vmem:[#allocation2 + $0x28] sm:$0xff]
      %v668 = vld [vmem:[#allocation2 + $0x30] sm:$0xff]
      %v669 = vld [vmem:[#allocation2 + $0x38] sm:$0xff]
      %v670 = vld [vmem:[#allocation2 + $0x40] sm:$0xff]
      %v671 = vld [vmem:[#allocation2 + $0x48] sm:$0xff]
      %v672 = vld [vmem:[#allocation2 + $0x50] sm:$0xff]
      %v673 = vld [vmem:[#allocation2 + $0x58] sm:$0xff]
      %v674 = vld [vmem:[#allocation2 + $0x60] sm:$0xff]
      %v675 = vld [vmem:[#allocation2 + $0x68] sm:$0xff]
      %v676 = vld [vmem:[#allocation2 + $0x70] sm:$0xff]
      %v677 = vld [vmem:[#allocation2 + $0x78] sm:$0xff]
      %v678 = vld [vmem:[#allocation2 + $0x80] sm:$0xff]
      %v679 = vld [vmem:[#allocation2 + $0x88] sm:$0xff]
      %v680 = vld [vmem:[#allocation2 + $0x90] sm:$0xff]
      %v681 = vld [vmem:[#allocation2 + $0x98] sm:$0xff]
      %v682 = vld [vmem:[#allocation2 + $0xa0] sm:$0xff]
      %v683 = vld [vmem:[#allocation2 + $0xa8] sm:$0xff]
      %v684 = vld [vmem:[#allocation2 + $0xb0] sm:$0xff]
      %v685 = vld [vmem:[#allocation2 + $0xb8] sm:$0xff]
      %v686 = vld [vmem:[#allocation2 + $0xc0] sm:$0xff]
      %v687 = vld [vmem:[#allocation2 + $0xc8] sm:$0xff]
      %v688 = vld [vmem:[#allocation2 + $0xd0] sm:$0xff]
      %v689 = vld [vmem:[#allocation2 + $0xd8] sm:$0xff]
      %v690 = vld [vmem:[#allocation2 + $0xe0] sm:$0xff]
      %v691 = vld [vmem:[#allocation2 + $0xe8] sm:$0xff]
      %v692 = vld [vmem:[#allocation2 + $0xf0] sm:$0xff]
      %v693 = vld [vmem:[#allocation2 + $0xf8] sm:$0xff]
      %v694 = vld [vmem:[#allocation2 + $0x100] sm:$0x1]
      %vm695 = vsmask.f32 7424
      %v697 = vshrl.u32 %v662, 16
      %v699 = vshll.u32 %v662, 16
      %v701 = vrot.slane %v699, 1
      %v702 = vor.u32 %v697, %v701
      %v704 = vshll.u32 %v663, 16
      %v706 = vrot.slane %v704, 1
      %v707 = vsel %vm695, %v702, %v706
      %v708 = vshrl.u32 %v663, 16
      %v710 = vor.u32 %v708, %v706
      %v712 = vshll.u32 %v664, 16
      %v714 = vrot.slane %v712, 1
      %v715 = vsel %vm695, %v710, %v714
      %v716 = vshrl.u32 %v664, 16
      %v718 = vor.u32 %v716, %v714
      %v720 = vshll.u32 %v665, 16
      %v722 = vrot.slane %v720, 1
      %v723 = vsel %vm695, %v718, %v722
      %v724 = vshrl.u32 %v665, 16
      %v726 = vor.u32 %v724, %v722
      %v728 = vshll.u32 %v666, 16
      %v730 = vrot.slane %v728, 1
      %v731 = vsel %vm695, %v726, %v730
      %v732 = vshrl.u32 %v666, 16
      %v734 = vor.u32 %v732, %v730
      %v736 = vshll.u32 %v667, 16
      %v738 = vrot.slane %v736, 1
      %v739 = vsel %vm695, %v734, %v738
      %v740 = vshrl.u32 %v667, 16
      %v742 = vor.u32 %v740, %v738
      %v744 = vshll.u32 %v668, 16
      %v746 = vrot.slane %v744, 1
      %v747 = vsel %vm695, %v742, %v746
      %v748 = vshrl.u32 %v668, 16
      %v750 = vor.u32 %v748, %v746
      %v752 = vshll.u32 %v669, 16
      %v754 = vrot.slane %v752, 1
      %v755 = vsel %vm695, %v750, %v754
      %v756 = vshrl.u32 %v669, 16
      %v758 = vor.u32 %v756, %v754
      %v760 = vshll.u32 %v670, 16
      %v762 = vrot.slane %v760, 1
      %v763 = vsel %vm695, %v758, %v762
      %v764 = vshrl.u32 %v670, 16
      %v766 = vor.u32 %v764, %v762
      %v768 = vshll.u32 %v671, 16
      %v770 = vrot.slane %v768, 1
      %v771 = vsel %vm695, %v766, %v770
      %v772 = vshrl.u32 %v671, 16
      %v774 = vor.u32 %v772, %v770
      %v776 = vshll.u32 %v672, 16
      %v778 = vrot.slane %v776, 1
      %v779 = vsel %vm695, %v774, %v778
      %v780 = vshrl.u32 %v672, 16
      %v782 = vor.u32 %v780, %v778
      %v784 = vshll.u32 %v673, 16
      %v786 = vrot.slane %v784, 1
      %v787 = vsel %vm695, %v782, %v786
      %v788 = vshrl.u32 %v673, 16
      %v790 = vor.u32 %v788, %v786
      %v792 = vshll.u32 %v674, 16
      %v794 = vrot.slane %v792, 1
      %v795 = vsel %vm695, %v790, %v794
      %v796 = vshrl.u32 %v674, 16
      %v798 = vor.u32 %v796, %v794
      %v800 = vshll.u32 %v675, 16
      %v802 = vrot.slane %v800, 1
      %v803 = vsel %vm695, %v798, %v802
      %v804 = vshrl.u32 %v675, 16
      %v806 = vor.u32 %v804, %v802
      %v808 = vshll.u32 %v676, 16
      %v810 = vrot.slane %v808, 1
      %v811 = vsel %vm695, %v806, %v810
      %v812 = vshrl.u32 %v676, 16
      %v814 = vor.u32 %v812, %v810
      %v816 = vshll.u32 %v677, 16
      %v818 = vrot.slane %v816, 1
      %v819 = vsel %vm695, %v814, %v818
      %v820 = vshrl.u32 %v677, 16
      %v822 = vor.u32 %v820, %v818
      %v824 = vshll.u32 %v678, 16
      %v826 = vrot.slane %v824, 1
      %v827 = vsel %vm695, %v822, %v826
      %v828 = vshrl.u32 %v678, 16
      %v830 = vor.u32 %v828, %v826
      %v832 = vshll.u32 %v679, 16
      %v834 = vrot.slane %v832, 1
      %v835 = vsel %vm695, %v830, %v834
      %v836 = vshrl.u32 %v679, 16
      %v838 = vor.u32 %v836, %v834
      %v840 = vshll.u32 %v680, 16
      %v842 = vrot.slane %v840, 1
      %v843 = vsel %vm695, %v838, %v842
      %v844 = vshrl.u32 %v680, 16
      %v846 = vor.u32 %v844, %v842
      %v848 = vshll.u32 %v681, 16
      %v850 = vrot.slane %v848, 1
      %v851 = vsel %vm695, %v846, %v850
      %v852 = vshrl.u32 %v681, 16
      %v854 = vor.u32 %v852, %v850
      %v856 = vshll.u32 %v682, 16
      %v858 = vrot.slane %v856, 1
      %v859 = vsel %vm695, %v854, %v858
      %v860 = vshrl.u32 %v682, 16
      %v862 = vor.u32 %v860, %v858
      %v864 = vshll.u32 %v683, 16
      %v866 = vrot.slane %v864, 1
      %v867 = vsel %vm695, %v862, %v866
      %v868 = vshrl.u32 %v683, 16
      %v870 = vor.u32 %v868, %v866
      %v872 = vshll.u32 %v684, 16
      %v874 = vrot.slane %v872, 1
      %v875 = vsel %vm695, %v870, %v874
      %v876 = vshrl.u32 %v684, 16
      %v878 = vor.u32 %v876, %v874
      %v880 = vshll.u32 %v685, 16
      %v882 = vrot.slane %v880, 1
      %v883 = vsel %vm695, %v878, %v882
      %v884 = vshrl.u32 %v685, 16
      %v886 = vor.u32 %v884, %v882
      %v888 = vshll.u32 %v686, 16
      %v890 = vrot.slane %v888, 1
      %v891 = vsel %vm695, %v886, %v890
      %v892 = vshrl.u32 %v686, 16
      %v894 = vor.u32 %v892, %v890
      %v896 = vshll.u32 %v687, 16
      %v898 = vrot.slane %v896, 1
      %v899 = vsel %vm695, %v894, %v898
      %v900 = vshrl.u32 %v687, 16
      %v902 = vor.u32 %v900, %v898
      %v904 = vshll.u32 %v688, 16
      %v906 = vrot.slane %v904, 1
      %v907 = vsel %vm695, %v902, %v906
      %v908 = vshrl.u32 %v688, 16
      %v910 = vor.u32 %v908, %v906
      %v912 = vshll.u32 %v689, 16
      %v914 = vrot.slane %v912, 1
      %v915 = vsel %vm695, %v910, %v914
      %v916 = vshrl.u32 %v689, 16
      %v918 = vor.u32 %v916, %v914
      %v920 = vshll.u32 %v690, 16
      %v922 = vrot.slane %v920, 1
      %v923 = vsel %vm695, %v918, %v922
      %v924 = vshrl.u32 %v690, 16
      %v926 = vor.u32 %v924, %v922
      %v928 = vshll.u32 %v691, 16
      %v930 = vrot.slane %v928, 1
      %v931 = vsel %vm695, %v926, %v930
      %v932 = vshrl.u32 %v691, 16
      %v934 = vor.u32 %v932, %v930
      %v936 = vshll.u32 %v692, 16
      %v938 = vrot.slane %v936, 1
      %v939 = vsel %vm695, %v934, %v938
      %v940 = vshrl.u32 %v692, 16
      %v942 = vor.u32 %v940, %v938
      %v944 = vshll.u32 %v693, 16
      %v946 = vrot.slane %v944, 1
      %v947 = vsel %vm695, %v942, %v946
      %v948 = vshrl.u32 %v693, 16
      %v950 = vor.u32 %v948, %v946
      %v952 = vshll.u32 %v694, 16
      %v954 = vrot.slane %v952, 1
      %v955 = vsel %vm695, %v950, %v954
      %956 = vrot.lane.b32.xlu0 %v707, 4
      %v957 = vpop.permute.xlu0 %956
      %958 = vrot.lane.b32.xlu0 %v715, 4
      %v959 = vpop.permute.xlu0 %958
      %960 = vrot.lane.b32.xlu0 %v723, 4
      %v961 = vpop.permute.xlu0 %960
      %962 = vrot.lane.b32.xlu0 %v731, 4
      %v963 = vpop.permute.xlu0 %962
      %964 = vrot.lane.b32.xlu0 %v739, 4
      %v965 = vpop.permute.xlu0 %964
      %966 = vrot.lane.b32.xlu0 %v747, 4
      %v967 = vpop.permute.xlu0 %966
      %968 = vrot.lane.b32.xlu0 %v755, 4
      %v969 = vpop.permute.xlu0 %968
      %970 = vrot.lane.b32.xlu0 %v763, 4
      %v971 = vpop.permute.xlu0 %970
      %972 = vrot.lane.b32.xlu0 %v771, 4
      %v973 = vpop.permute.xlu0 %972
      %974 = vrot.lane.b32.xlu0 %v779, 4
      %v975 = vpop.permute.xlu0 %974
      %976 = vrot.lane.b32.xlu0 %v787, 4
      %v977 = vpop.permute.xlu0 %976
      %978 = vrot.lane.b32.xlu0 %v795, 4
      %v979 = vpop.permute.xlu0 %978
      %980 = vrot.lane.b32.xlu0 %v803, 4
      %v981 = vpop.permute.xlu0 %980
      %982 = vrot.lane.b32.xlu0 %v811, 4
      %v983 = vpop.permute.xlu0 %982
      %984 = vrot.lane.b32.xlu0 %v819, 4
      %v985 = vpop.permute.xlu0 %984
      %986 = vrot.lane.b32.xlu0 %v827, 4
      %v987 = vpop.permute.xlu0 %986
      %988 = vrot.lane.b32.xlu0 %v835, 4
      %v989 = vpop.permute.xlu0 %988
      %990 = vrot.lane.b32.xlu0 %v843, 4
      %v991 = vpop.permute.xlu0 %990
      %992 = vrot.lane.b32.xlu0 %v851, 4
      %v993 = vpop.permute.xlu0 %992
      %994 = vrot.lane.b32.xlu0 %v859, 4
      %v995 = vpop.permute.xlu0 %994
      %996 = vrot.lane.b32.xlu0 %v867, 4
      %v997 = vpop.permute.xlu0 %996
      %998 = vrot.lane.b32.xlu0 %v875, 4
      %v999 = vpop.permute.xlu0 %998
      %1000 = vrot.lane.b32.xlu0 %v883, 4
      %v1001 = vpop.permute.xlu0 %1000
      %1002 = vrot.lane.b32.xlu0 %v891, 4
      %v1003 = vpop.permute.xlu0 %1002
      %1004 = vrot.lane.b32.xlu0 %v899, 4
      %v1005 = vpop.permute.xlu0 %1004
      %1006 = vrot.lane.b32.xlu0 %v907, 4
      %v1007 = vpop.permute.xlu0 %1006
      %1008 = vrot.lane.b32.xlu0 %v915, 4
      %v1009 = vpop.permute.xlu0 %1008
      %1010 = vrot.lane.b32.xlu0 %v923, 4
      %v1011 = vpop.permute.xlu0 %1010
      %1012 = vrot.lane.b32.xlu0 %v931, 4
      %v1013 = vpop.permute.xlu0 %1012
      %1014 = vrot.lane.b32.xlu0 %v939, 4
      %v1015 = vpop.permute.xlu0 %1014
      %1016 = vrot.lane.b32.xlu0 %v947, 4
      %v1017 = vpop.permute.xlu0 %1016
      %1018 = vrot.lane.b32.xlu0 %v955, 4
      %v1019 = vpop.permute.xlu0 %1018
      %vm1052 = vcmask 64544
      %1053 = vst.msk [vmem:[#allocation3] sm:$0xff] %vm1052, %v957
      %1054 = vst.msk [vmem:[#allocation3 + $0x8] sm:$0xff] %vm1052, %v959
      %1055 = vst.msk [vmem:[#allocation3 + $0x10] sm:$0xff] %vm1052, %v961
      %1056 = vst.msk [vmem:[#allocation3 + $0x18] sm:$0xff] %vm1052, %v963
      %1057 = vst.msk [vmem:[#allocation3 + $0x20] sm:$0xff] %vm1052, %v965
      %1058 = vst.msk [vmem:[#allocation3 + $0x28] sm:$0xff] %vm1052, %v967
      %1059 = vst.msk [vmem:[#allocation3 + $0x30] sm:$0xff] %vm1052, %v969
      %1060 = vst.msk [vmem:[#allocation3 + $0x38] sm:$0xff] %vm1052, %v971
      %1061 = vst.msk [vmem:[#allocation3 + $0x40] sm:$0xff] %vm1052, %v973
      %1062 = vst.msk [vmem:[#allocation3 + $0x48] sm:$0xff] %vm1052, %v975
      %1063 = vst.msk [vmem:[#allocation3 + $0x50] sm:$0xff] %vm1052, %v977
      %1064 = vst.msk [vmem:[#allocation3 + $0x58] sm:$0xff] %vm1052, %v979
      %1065 = vst.msk [vmem:[#allocation3 + $0x60] sm:$0xff] %vm1052, %v981
      %1066 = vst.msk [vmem:[#allocation3 + $0x68] sm:$0xff] %vm1052, %v983
      %1067 = vst.msk [vmem:[#allocation3 + $0x70] sm:$0xff] %vm1052, %v985
      %1068 = vst.msk [vmem:[#allocation3 + $0x78] sm:$0xff] %vm1052, %v987
      %1069 = vst.msk [vmem:[#allocation3 + $0x80] sm:$0xff] %vm1052, %v989
      %1070 = vst.msk [vmem:[#allocation3 + $0x88] sm:$0xff] %vm1052, %v991
      %1071 = vst.msk [vmem:[#allocation3 + $0x90] sm:$0xff] %vm1052, %v993
      %1072 = vst.msk [vmem:[#allocation3 + $0x98] sm:$0xff] %vm1052, %v995
      %1073 = vst.msk [vmem:[#allocation3 + $0xa0] sm:$0xff] %vm1052, %v997
      %1074 = vst.msk [vmem:[#allocation3 + $0xa8] sm:$0xff] %vm1052, %v999
      %1075 = vst.msk [vmem:[#allocation3 + $0xb0] sm:$0xff] %vm1052, %v1001
      %1076 = vst.msk [vmem:[#allocation3 + $0xb8] sm:$0xff] %vm1052, %v1003
      %1077 = vst.msk [vmem:[#allocation3 + $0xc0] sm:$0xff] %vm1052, %v1005
      %1078 = vst.msk [vmem:[#allocation3 + $0xc8] sm:$0xff] %vm1052, %v1007
      %1079 = vst.msk [vmem:[#allocation3 + $0xd0] sm:$0xff] %vm1052, %v1009
      %1080 = vst.msk [vmem:[#allocation3 + $0xd8] sm:$0xff] %vm1052, %v1011
      %1081 = vst.msk [vmem:[#allocation3 + $0xe0] sm:$0xff] %vm1052, %v1013
      %1082 = vst.msk [vmem:[#allocation3 + $0xe8] sm:$0xff] %vm1052, %v1015
      %1083 = vst.msk [vmem:[#allocation3 + $0xf0] sm:$0xff] %vm1052, %v1017
      %1084 = vst.msk [vmem:[#allocation3 + $0xf8] sm:$0xff] %vm1052, %v1019
      %v1085 = vld [vmem:[#allocation2] sm:$0xfe]
      %v1086 = vld [vmem:[#allocation2 + $0x8] sm:$0xff]
      %v1087 = vld [vmem:[#allocation2 + $0x10] sm:$0xff]
      %v1088 = vld [vmem:[#allocation2 + $0x18] sm:$0xff]
      %v1089 = vld [vmem:[#allocation2 + $0x20] sm:$0xff]
      %v1090 = vld [vmem:[#allocation2 + $0x28] sm:$0xff]
      %v1091 = vld [vmem:[#allocation2 + $0x30] sm:$0xff]
      %v1092 = vld [vmem:[#allocation2 + $0x38] sm:$0xff]
      %v1093 = vld [vmem:[#allocation2 + $0x40] sm:$0xff]
      %v1094 = vld [vmem:[#allocation2 + $0x48] sm:$0xff]
      %v1095 = vld [vmem:[#allocation2 + $0x50] sm:$0xff]
      %v1096 = vld [vmem:[#allocation2 + $0x58] sm:$0xff]
      %v1097 = vld [vmem:[#allocation2 + $0x60] sm:$0xff]
      %v1098 = vld [vmem:[#allocation2 + $0x68] sm:$0xff]
      %v1099 = vld [vmem:[#allocation2 + $0x70] sm:$0xff]
      %v1100 = vld [vmem:[#allocation2 + $0x78] sm:$0xff]
      %v1101 = vld [vmem:[#allocation2 + $0x80] sm:$0xff]
      %v1102 = vld [vmem:[#allocation2 + $0x88] sm:$0xff]
      %v1103 = vld [vmem:[#allocation2 + $0x90] sm:$0xff]
      %v1104 = vld [vmem:[#allocation2 + $0x98] sm:$0xff]
      %v1105 = vld [vmem:[#allocation2 + $0xa0] sm:$0xff]
      %v1106 = vld [vmem:[#allocation2 + $0xa8] sm:$0xff]
      %v1107 = vld [vmem:[#allocation2 + $0xb0] sm:$0xff]
      %v1108 = vld [vmem:[#allocation2 + $0xb8] sm:$0xff]
      %v1109 = vld [vmem:[#allocation2 + $0xc0] sm:$0xff]
      %v1110 = vld [vmem:[#allocation2 + $0xc8] sm:$0xff]
      %v1111 = vld [vmem:[#allocation2 + $0xd0] sm:$0xff]
      %v1112 = vld [vmem:[#allocation2 + $0xd8] sm:$0xff]
      %v1113 = vld [vmem:[#allocation2 + $0xe0] sm:$0xff]
      %v1114 = vld [vmem:[#allocation2 + $0xe8] sm:$0xff]
      %v1115 = vld [vmem:[#allocation2 + $0xf0] sm:$0xff]
      %v1116 = vld [vmem:[#allocation2 + $0xf8] sm:$0xff]
      %v1117 = vld [vmem:[#allocation2 + $0x100] sm:$0x1]
      %vm1151 = vcmask 1046528
      %v1152 = vrot.slane %v1085, 1
      %v1153 = vrot.slane %v1086, 1
      %v1154 = vsel %vm1151, %v1152, %v1153
      %v1155 = vrot.slane %v1087, 1
      %v1156 = vsel %vm1151, %v1153, %v1155
      %v1157 = vrot.slane %v1088, 1
      %v1158 = vsel %vm1151, %v1155, %v1157
      %v1159 = vrot.slane %v1089, 1
      %v1160 = vsel %vm1151, %v1157, %v1159
      %v1161 = vrot.slane %v1090, 1
      %v1162 = vsel %vm1151, %v1159, %v1161
      %v1163 = vrot.slane %v1091, 1
      %v1164 = vsel %vm1151, %v1161, %v1163
      %v1165 = vrot.slane %v1092, 1
      %v1166 = vsel %vm1151, %v1163, %v1165
      %v1167 = vrot.slane %v1093, 1
      %v1168 = vsel %vm1151, %v1165, %v1167
      %v1169 = vrot.slane %v1094, 1
      %v1170 = vsel %vm1151, %v1167, %v1169
      %v1171 = vrot.slane %v1095, 1
      %v1172 = vsel %vm1151, %v1169, %v1171
      %v1173 = vrot.slane %v1096, 1
      %v1174 = vsel %vm1151, %v1171, %v1173
      %v1175 = vrot.slane %v1097, 1
      %v1176 = vsel %vm1151, %v1173, %v1175
      %v1177 = vrot.slane %v1098, 1
      %v1178 = vsel %vm1151, %v1175, %v1177
      %v1179 = vrot.slane %v1099, 1
      %v1180 = vsel %vm1151, %v1177, %v1179
      %v1181 = vrot.slane %v1100, 1
      %v1182 = vsel %vm1151, %v1179, %v1181
      %v1183 = vrot.slane %v1101, 1
      %v1184 = vsel %vm1151, %v1181, %v1183
      %v1185 = vrot.slane %v1102, 1
      %v1186 = vsel %vm1151, %v1183, %v1185
      %v1187 = vrot.slane %v1103, 1
      %v1188 = vsel %vm1151, %v1185, %v1187
      %v1189 = vrot.slane %v1104, 1
      %v1190 = vsel %vm1151, %v1187, %v1189
      %v1191 = vrot.slane %v1105, 1
      %v1192 = vsel %vm1151, %v1189, %v1191
      %v1193 = vrot.slane %v1106, 1
      %v1194 = vsel %vm1151, %v1191, %v1193
      %v1195 = vrot.slane %v1107, 1
      %v1196 = vsel %vm1151, %v1193, %v1195
      %v1197 = vrot.slane %v1108, 1
      %v1198 = vsel %vm1151, %v1195, %v1197
      %v1199 = vrot.slane %v1109, 1
      %v1200 = vsel %vm1151, %v1197, %v1199
      %v1201 = vrot.slane %v1110, 1
      %v1202 = vsel %vm1151, %v1199, %v1201
      %v1203 = vrot.slane %v1111, 1
      %v1204 = vsel %vm1151, %v1201, %v1203
      %v1205 = vrot.slane %v1112, 1
      %v1206 = vsel %vm1151, %v1203, %v1205
      %v1207 = vrot.slane %v1113, 1
      %v1208 = vsel %vm1151, %v1205, %v1207
      %v1209 = vrot.slane %v1114, 1
      %v1210 = vsel %vm1151, %v1207, %v1209
      %v1211 = vrot.slane %v1115, 1
      %v1212 = vsel %vm1151, %v1209, %v1211
      %v1213 = vrot.slane %v1116, 1
      %v1214 = vsel %vm1151, %v1211, %v1213
      %v1215 = vrot.slane %v1117, 1
      %v1216 = vsel %vm1151, %v1213, %v1215
      %1217 = vrot.lane.b32.xlu0 %v1154, 8
      %v1218 = vpop.permute.xlu0 %1217
      %1219 = vrot.lane.b32.xlu0 %v1156, 8
      %v1220 = vpop.permute.xlu0 %1219
      %1221 = vrot.lane.b32.xlu0 %v1158, 8
      %v1222 = vpop.permute.xlu0 %1221
      %1223 = vrot.lane.b32.xlu0 %v1160, 8
      %v1224 = vpop.permute.xlu0 %1223
      %1225 = vrot.lane.b32.xlu0 %v1162, 8
      %v1226 = vpop.permute.xlu0 %1225
      %1227 = vrot.lane.b32.xlu0 %v1164, 8
      %v1228 = vpop.permute.xlu0 %1227
      %1229 = vrot.lane.b32.xlu0 %v1166, 8
      %v1230 = vpop.permute.xlu0 %1229
      %1231 = vrot.lane.b32.xlu0 %v1168, 8
      %v1232 = vpop.permute.xlu0 %1231
      %1233 = vrot.lane.b32.xlu0 %v1170, 8
      %v1234 = vpop.permute.xlu0 %1233
      %1235 = vrot.lane.b32.xlu0 %v1172, 8
      %v1236 = vpop.permute.xlu0 %1235
      %1237 = vrot.lane.b32.xlu0 %v1174, 8
      %v1238 = vpop.permute.xlu0 %1237
      %1239 = vrot.lane.b32.xlu0 %v1176, 8
      %v1240 = vpop.permute.xlu0 %1239
      %1241 = vrot.lane.b32.xlu0 %v1178, 8
      %v1242 = vpop.permute.xlu0 %1241
      %1243 = vrot.lane.b32.xlu0 %v1180, 8
      %v1244 = vpop.permute.xlu0 %1243
      %1245 = vrot.lane.b32.xlu0 %v1182, 8
      %v1246 = vpop.permute.xlu0 %1245
      %1247 = vrot.lane.b32.xlu0 %v1184, 8
      %v1248 = vpop.permute.xlu0 %1247
      %1249 = vrot.lane.b32.xlu0 %v1186, 8
      %v1250 = vpop.permute.xlu0 %1249
      %1251 = vrot.lane.b32.xlu0 %v1188, 8
      %v1252 = vpop.permute.xlu0 %1251
      %1253 = vrot.lane.b32.xlu0 %v1190, 8
      %v1254 = vpop.permute.xlu0 %1253
      %1255 = vrot.lane.b32.xlu0 %v1192, 8
      %v1256 = vpop.permute.xlu0 %1255
      %1257 = vrot.lane.b32.xlu0 %v1194, 8
      %v1258 = vpop.permute.xlu0 %1257
      %1259 = vrot.lane.b32.xlu0 %v1196, 8
      %v1260 = vpop.permute.xlu0 %1259
      %1261 = vrot.lane.b32.xlu0 %v1198, 8
      %v1262 = vpop.permute.xlu0 %1261
      %1263 = vrot.lane.b32.xlu0 %v1200, 8
      %v1264 = vpop.permute.xlu0 %1263
      %1265 = vrot.lane.b32.xlu0 %v1202, 8
      %v1266 = vpop.permute.xlu0 %1265
      %1267 = vrot.lane.b32.xlu0 %v1204, 8
      %v1268 = vpop.permute.xlu0 %1267
      %1269 = vrot.lane.b32.xlu0 %v1206, 8
      %v1270 = vpop.permute.xlu0 %1269
      %1271 = vrot.lane.b32.xlu0 %v1208, 8
      %v1272 = vpop.permute.xlu0 %1271
      %1273 = vrot.lane.b32.xlu0 %v1210, 8
      %v1274 = vpop.permute.xlu0 %1273
      %1275 = vrot.lane.b32.xlu0 %v1212, 8
      %v1276 = vpop.permute.xlu0 %1275
      %1277 = vrot.lane.b32.xlu0 %v1214, 8
      %v1278 = vpop.permute.xlu0 %1277
      %1279 = vrot.lane.b32.xlu0 %v1216, 8
      %v1280 = vpop.permute.xlu0 %1279
      %vm1313 = vcmask 97344
      %1314 = vst.msk [vmem:[#allocation3] sm:$0xff] %vm1313, %v1218
      %1315 = vst.msk [vmem:[#allocation3 + $0x8] sm:$0xff] %vm1313, %v1220
      %1316 = vst.msk [vmem:[#allocation3 + $0x10] sm:$0xff] %vm1313, %v1222
      %1317 = vst.msk [vmem:[#allocation3 + $0x18] sm:$0xff] %vm1313, %v1224
      %1318 = vst.msk [vmem:[#allocation3 + $0x20] sm:$0xff] %vm1313, %v1226
      %1319 = vst.msk [vmem:[#allocation3 + $0x28] sm:$0xff] %vm1313, %v1228
      %1320 = vst.msk [vmem:[#allocation3 + $0x30] sm:$0xff] %vm1313, %v1230
      %1321 = vst.msk [vmem:[#allocation3 + $0x38] sm:$0xff] %vm1313, %v1232
      %1322 = vst.msk [vmem:[#allocation3 + $0x40] sm:$0xff] %vm1313, %v1234
      %1323 = vst.msk [vmem:[#allocation3 + $0x48] sm:$0xff] %vm1313, %v1236
      %1324 = vst.msk [vmem:[#allocation3 + $0x50] sm:$0xff] %vm1313, %v1238
      %1325 = vst.msk [vmem:[#allocation3 + $0x58] sm:$0xff] %vm1313, %v1240
      %1326 = vst.msk [vmem:[#allocation3 + $0x60] sm:$0xff] %vm1313, %v1242
      %1327 = vst.msk [vmem:[#allocation3 + $0x68] sm:$0xff] %vm1313, %v1244
      %1328 = vst.msk [vmem:[#allocation3 + $0x70] sm:$0xff] %vm1313, %v1246
      %1329 = vst.msk [vmem:[#allocation3 + $0x78] sm:$0xff] %vm1313, %v1248
      %1330 = vst.msk [vmem:[#allocation3 + $0x80] sm:$0xff] %vm1313, %v1250
      %1331 = vst.msk [vmem:[#allocation3 + $0x88] sm:$0xff] %vm1313, %v1252
      %1332 = vst.msk [vmem:[#allocation3 + $0x90] sm:$0xff] %vm1313, %v1254
      %1333 = vst.msk [vmem:[#allocation3 + $0x98] sm:$0xff] %vm1313, %v1256
      %1334 = vst.msk [vmem:[#allocation3 + $0xa0] sm:$0xff] %vm1313, %v1258
      %1335 = vst.msk [vmem:[#allocation3 + $0xa8] sm:$0xff] %vm1313, %v1260
      %1336 = vst.msk [vmem:[#allocation3 + $0xb0] sm:$0xff] %vm1313, %v1262
      %1337 = vst.msk [vmem:[#allocation3 + $0xb8] sm:$0xff] %vm1313, %v1264
      %1338 = vst.msk [vmem:[#allocation3 + $0xc0] sm:$0xff] %vm1313, %v1266
      %1339 = vst.msk [vmem:[#allocation3 + $0xc8] sm:$0xff] %vm1313, %v1268
      %1340 = vst.msk [vmem:[#allocation3 + $0xd0] sm:$0xff] %vm1313, %v1270
      %1341 = vst.msk [vmem:[#allocation3 + $0xd8] sm:$0xff] %vm1313, %v1272
      %1342 = vst.msk [vmem:[#allocation3 + $0xe0] sm:$0xff] %vm1313, %v1274
      %1343 = vst.msk [vmem:[#allocation3 + $0xe8] sm:$0xff] %vm1313, %v1276
      %1344 = vst.msk [vmem:[#allocation3 + $0xf0] sm:$0xff] %vm1313, %v1278
      %1345 = vst.msk [vmem:[#allocation3 + $0xf8] sm:$0xff] %vm1313, %v1280
      %v1346 = vld [vmem:[#allocation2 + $0x8] sm:$0xfe]
      %v1347 = vld [vmem:[#allocation2 + $0x10] sm:$0xff]
      %v1348 = vld [vmem:[#allocation2 + $0x18] sm:$0xff]
      %v1349 = vld [vmem:[#allocation2 + $0x20] sm:$0xff]
      %v1350 = vld [vmem:[#allocation2 + $0x28] sm:$0xff]
      %v1351 = vld [vmem:[#allocation2 + $0x30] sm:$0xff]
      %v1352 = vld [vmem:[#allocation2 + $0x38] sm:$0xff]
      %v1353 = vld [vmem:[#allocation2 + $0x40] sm:$0xff]
      %v1354 = vld [vmem:[#allocation2 + $0x48] sm:$0xff]
      %v1355 = vld [vmem:[#allocation2 + $0x50] sm:$0xff]
      %v1356 = vld [vmem:[#allocation2 + $0x58] sm:$0xff]
      %v1357 = vld [vmem:[#allocation2 + $0x60] sm:$0xff]
      %v1358 = vld [vmem:[#allocation2 + $0x68] sm:$0xff]
      %v1359 = vld [vmem:[#allocation2 + $0x70] sm:$0xff]
      %v1360 = vld [vmem:[#allocation2 + $0x78] sm:$0xff]
      %v1361 = vld [vmem:[#allocation2 + $0x80] sm:$0xff]
      %v1362 = vld [vmem:[#allocation2 + $0x88] sm:$0xff]
      %v1363 = vld [vmem:[#allocation2 + $0x90] sm:$0xff]
      %v1364 = vld [vmem:[#allocation2 + $0x98] sm:$0xff]
      %v1365 = vld [vmem:[#allocation2 + $0xa0] sm:$0xff]
      %v1366 = vld [vmem:[#allocation2 + $0xa8] sm:$0xff]
      %v1367 = vld [vmem:[#allocation2 + $0xb0] sm:$0xff]
      %v1368 = vld [vmem:[#allocation2 + $0xb8] sm:$0xff]
      %v1369 = vld [vmem:[#allocation2 + $0xc0] sm:$0xff]
      %v1370 = vld [vmem:[#allocation2 + $0xc8] sm:$0xff]
      %v1371 = vld [vmem:[#allocation2 + $0xd0] sm:$0xff]
      %v1372 = vld [vmem:[#allocation2 + $0xd8] sm:$0xff]
      %v1373 = vld [vmem:[#allocation2 + $0xe0] sm:$0xff]
      %v1374 = vld [vmem:[#allocation2 + $0xe8] sm:$0xff]
      %v1375 = vld [vmem:[#allocation2 + $0xf0] sm:$0xff]
      %v1376 = vld [vmem:[#allocation2 + $0xf8] sm:$0xff]
      %v1377 = vld [vmem:[#allocation2 + $0x100] sm:$0xff]
      %v1378 = vld [vmem:[#allocation2 + $0x108] sm:$0x1]
      %v1412 = vrot.slane %v1346, 1
      %v1413 = vrot.slane %v1347, 1
      %v1414 = vsel %vm1151, %v1412, %v1413
      %v1415 = vrot.slane %v1348, 1
      %v1416 = vsel %vm1151, %v1413, %v1415
      %v1417 = vrot.slane %v1349, 1
      %v1418 = vsel %vm1151, %v1415, %v1417
      %v1419 = vrot.slane %v1350, 1
      %v1420 = vsel %vm1151, %v1417, %v1419
      %v1421 = vrot.slane %v1351, 1
      %v1422 = vsel %vm1151, %v1419, %v1421
      %v1423 = vrot.slane %v1352, 1
      %v1424 = vsel %vm1151, %v1421, %v1423
      %v1425 = vrot.slane %v1353, 1
      %v1426 = vsel %vm1151, %v1423, %v1425
      %v1427 = vrot.slane %v1354, 1
      %v1428 = vsel %vm1151, %v1425, %v1427
      %v1429 = vrot.slane %v1355, 1
      %v1430 = vsel %vm1151, %v1427, %v1429
      %v1431 = vrot.slane %v1356, 1
      %v1432 = vsel %vm1151, %v1429, %v1431
      %v1433 = vrot.slane %v1357, 1
      %v1434 = vsel %vm1151, %v1431, %v1433
      %v1435 = vrot.slane %v1358, 1
      %v1436 = vsel %vm1151, %v1433, %v1435
      %v1437 = vrot.slane %v1359, 1
      %v1438 = vsel %vm1151, %v1435, %v1437
      %v1439 = vrot.slane %v1360, 1
      %v1440 = vsel %vm1151, %v1437, %v1439
      %v1441 = vrot.slane %v1361, 1
      %v1442 = vsel %vm1151, %v1439, %v1441
      %v1443 = vrot.slane %v1362, 1
      %v1444 = vsel %vm1151, %v1441, %v1443
      %v1445 = vrot.slane %v1363, 1
      %v1446 = vsel %vm1151, %v1443, %v1445
      %v1447 = vrot.slane %v1364, 1
      %v1448 = vsel %vm1151, %v1445, %v1447
      %v1449 = vrot.slane %v1365, 1
      %v1450 = vsel %vm1151, %v1447, %v1449
      %v1451 = vrot.slane %v1366, 1
      %v1452 = vsel %vm1151, %v1449, %v1451
      %v1453 = vrot.slane %v1367, 1
      %v1454 = vsel %vm1151, %v1451, %v1453
      %v1455 = vrot.slane %v1368, 1
      %v1456 = vsel %vm1151, %v1453, %v1455
      %v1457 = vrot.slane %v1369, 1
      %v1458 = vsel %vm1151, %v1455, %v1457
      %v1459 = vrot.slane %v1370, 1
      %v1460 = vsel %vm1151, %v1457, %v1459
      %v1461 = vrot.slane %v1371, 1
      %v1462 = vsel %vm1151, %v1459, %v1461
      %v1463 = vrot.slane %v1372, 1
      %v1464 = vsel %vm1151, %v1461, %v1463
      %v1465 = vrot.slane %v1373, 1
      %v1466 = vsel %vm1151, %v1463, %v1465
      %v1467 = vrot.slane %v1374, 1
      %v1468 = vsel %vm1151, %v1465, %v1467
      %v1469 = vrot.slane %v1375, 1
      %v1470 = vsel %vm1151, %v1467, %v1469
      %v1471 = vrot.slane %v1376, 1
      %v1472 = vsel %vm1151, %v1469, %v1471
      %v1473 = vrot.slane %v1377, 1
      %v1474 = vsel %vm1151, %v1471, %v1473
      %v1475 = vrot.slane %v1378, 1
      %v1476 = vsel %vm1151, %v1473, %v1475
      %1477 = vrot.lane.b32.xlu0 %v1414, 12
      %v1478 = vpop.permute.xlu0 %1477
      %1479 = vrot.lane.b32.xlu0 %v1416, 12
      %v1480 = vpop.permute.xlu0 %1479
      %1481 = vrot.lane.b32.xlu0 %v1418, 12
      %v1482 = vpop.permute.xlu0 %1481
      %1483 = vrot.lane.b32.xlu0 %v1420, 12
      %v1484 = vpop.permute.xlu0 %1483
      %1485 = vrot.lane.b32.xlu0 %v1422, 12
      %v1486 = vpop.permute.xlu0 %1485
      %1487 = vrot.lane.b32.xlu0 %v1424, 12
      %v1488 = vpop.permute.xlu0 %1487
      %1489 = vrot.lane.b32.xlu0 %v1426, 12
      %v1490 = vpop.permute.xlu0 %1489
      %1491 = vrot.lane.b32.xlu0 %v1428, 12
      %v1492 = vpop.permute.xlu0 %1491
      %1493 = vrot.lane.b32.xlu0 %v1430, 12
      %v1494 = vpop.permute.xlu0 %1493
      %1495 = vrot.lane.b32.xlu0 %v1432, 12
      %v1496 = vpop.permute.xlu0 %1495
      %1497 = vrot.lane.b32.xlu0 %v1434, 12
      %v1498 = vpop.permute.xlu0 %1497
      %1499 = vrot.lane.b32.xlu0 %v1436, 12
      %v1500 = vpop.permute.xlu0 %1499
      %1501 = vrot.lane.b32.xlu0 %v1438, 12
      %v1502 = vpop.permute.xlu0 %1501
      %1503 = vrot.lane.b32.xlu0 %v1440, 12
      %v1504 = vpop.permute.xlu0 %1503
      %1505 = vrot.lane.b32.xlu0 %v1442, 12
      %v1506 = vpop.permute.xlu0 %1505
      %1507 = vrot.lane.b32.xlu0 %v1444, 12
      %v1508 = vpop.permute.xlu0 %1507
      %1509 = vrot.lane.b32.xlu0 %v1446, 12
      %v1510 = vpop.permute.xlu0 %1509
      %1511 = vrot.lane.b32.xlu0 %v1448, 12
      %v1512 = vpop.permute.xlu0 %1511
      %1513 = vrot.lane.b32.xlu0 %v1450, 12
      %v1514 = vpop.permute.xlu0 %1513
      %1515 = vrot.lane.b32.xlu0 %v1452, 12
      %v1516 = vpop.permute.xlu0 %1515
      %1517 = vrot.lane.b32.xlu0 %v1454, 12
      %v1518 = vpop.permute.xlu0 %1517
      %1519 = vrot.lane.b32.xlu0 %v1456, 12
      %v1520 = vpop.permute.xlu0 %1519
      %1521 = vrot.lane.b32.xlu0 %v1458, 12
      %v1522 = vpop.permute.xlu0 %1521
      %1523 = vrot.lane.b32.xlu0 %v1460, 12
      %v1524 = vpop.permute.xlu0 %1523
      %1525 = vrot.lane.b32.xlu0 %v1462, 12
      %v1526 = vpop.permute.xlu0 %1525
      %1527 = vrot.lane.b32.xlu0 %v1464, 12
      %v1528 = vpop.permute.xlu0 %1527
      %1529 = vrot.lane.b32.xlu0 %v1466, 12
      %v1530 = vpop.permute.xlu0 %1529
      %1531 = vrot.lane.b32.xlu0 %v1468, 12
      %v1532 = vpop.permute.xlu0 %1531
      %1533 = vrot.lane.b32.xlu0 %v1470, 12
      %v1534 = vpop.permute.xlu0 %1533
      %1535 = vrot.lane.b32.xlu0 %v1472, 12
      %v1536 = vpop.permute.xlu0 %1535
      %1537 = vrot.lane.b32.xlu0 %v1474, 12
      %v1538 = vpop.permute.xlu0 %1537
      %1539 = vrot.lane.b32.xlu0 %v1476, 12
      %v1540 = vpop.permute.xlu0 %1539
      %vm1573 = vcmask 130144
      %1574 = vst.msk [vmem:[#allocation3] sm:$0xff] %vm1573, %v1478
      %1575 = vst.msk [vmem:[#allocation3 + $0x8] sm:$0xff] %vm1573, %v1480
      %1576 = vst.msk [vmem:[#allocation3 + $0x10] sm:$0xff] %vm1573, %v1482
      %1577 = vst.msk [vmem:[#allocation3 + $0x18] sm:$0xff] %vm1573, %v1484
      %1578 = vst.msk [vmem:[#allocation3 + $0x20] sm:$0xff] %vm1573, %v1486
      %1579 = vst.msk [vmem:[#allocation3 + $0x28] sm:$0xff] %vm1573, %v1488
      %1580 = vst.msk [vmem:[#allocation3 + $0x30] sm:$0xff] %vm1573, %v1490
      %1581 = vst.msk [vmem:[#allocation3 + $0x38] sm:$0xff] %vm1573, %v1492
      %1582 = vst.msk [vmem:[#allocation3 + $0x40] sm:$0xff] %vm1573, %v1494
      %1583 = vst.msk [vmem:[#allocation3 + $0x48] sm:$0xff] %vm1573, %v1496
      %1584 = vst.msk [vmem:[#allocation3 + $0x50] sm:$0xff] %vm1573, %v1498
      %1585 = vst.msk [vmem:[#allocation3 + $0x58] sm:$0xff] %vm1573, %v1500
      %1586 = vst.msk [vmem:[#allocation3 + $0x60] sm:$0xff] %vm1573, %v1502
      %1587 = vst.msk [vmem:[#allocation3 + $0x68] sm:$0xff] %vm1573, %v1504
      %1588 = vst.msk [vmem:[#allocation3 + $0x70] sm:$0xff] %vm1573, %v1506
      %1589 = vst.msk [vmem:[#allocation3 + $0x78] sm:$0xff] %vm1573, %v1508
      %1590 = vst.msk [vmem:[#allocation3 + $0x80] sm:$0xff] %vm1573, %v1510
      %1591 = vst.msk [vmem:[#allocation3 + $0x88] sm:$0xff] %vm1573, %v1512
      %1592 = vst.msk [vmem:[#allocation3 + $0x90] sm:$0xff] %vm1573, %v1514
      %1593 = vst.msk [vmem:[#allocation3 + $0x98] sm:$0xff] %vm1573, %v1516
      %1594 = vst.msk [vmem:[#allocation3 + $0xa0] sm:$0xff] %vm1573, %v1518
      %1595 = vst.msk [vmem:[#allocation3 + $0xa8] sm:$0xff] %vm1573, %v1520
      %1596 = vst.msk [vmem:[#allocation3 + $0xb0] sm:$0xff] %vm1573, %v1522
      %1597 = vst.msk [vmem:[#allocation3 + $0xb8] sm:$0xff] %vm1573, %v1524
      %1598 = vst.msk [vmem:[#allocation3 + $0xc0] sm:$0xff] %vm1573, %v1526
      %1599 = vst.msk [vmem:[#allocation3 + $0xc8] sm:$0xff] %vm1573, %v1528
      %1600 = vst.msk [vmem:[#allocation3 + $0xd0] sm:$0xff] %vm1573, %v1530
      %1601 = vst.msk [vmem:[#allocation3 + $0xd8] sm:$0xff] %vm1573, %v1532
      %1602 = vst.msk [vmem:[#allocation3 + $0xe0] sm:$0xff] %vm1573, %v1534
      %1603 = vst.msk [vmem:[#allocation3 + $0xe8] sm:$0xff] %vm1573, %v1536
      %1604 = vst.msk [vmem:[#allocation3 + $0xf0] sm:$0xff] %vm1573, %v1538
      %1605 = vst.msk [vmem:[#allocation3 + $0xf8] sm:$0xff] %vm1573, %v1540
      %v1606 = vld [vmem:[#allocation2 + $0x8] sm:$0xfe]
      %v1607 = vld [vmem:[#allocation2 + $0x10] sm:$0xff]
      %v1608 = vld [vmem:[#allocation2 + $0x18] sm:$0xff]
      %v1609 = vld [vmem:[#allocation2 + $0x20] sm:$0xff]
      %v1610 = vld [vmem:[#allocation2 + $0x28] sm:$0xff]
      %v1611 = vld [vmem:[#allocation2 + $0x30] sm:$0xff]
      %v1612 = vld [vmem:[#allocation2 + $0x38] sm:$0xff]
      %v1613 = vld [vmem:[#allocation2 + $0x40] sm:$0xff]
      %v1614 = vld [vmem:[#allocation2 + $0x48] sm:$0xff]
      %v1615 = vld [vmem:[#allocation2 + $0x50] sm:$0xff]
      %v1616 = vld [vmem:[#allocation2 + $0x58] sm:$0xff]
      %v1617 = vld [vmem:[#allocation2 + $0x60] sm:$0xff]
      %v1618 = vld [vmem:[#allocation2 + $0x68] sm:$0xff]
      %v1619 = vld [vmem:[#allocation2 + $0x70] sm:$0xff]
      %v1620 = vld [vmem:[#allocation2 + $0x78] sm:$0xff]
      %v1621 = vld [vmem:[#allocation2 + $0x80] sm:$0xff]
      %v1622 = vld [vmem:[#allocation2 + $0x88] sm:$0xff]
      %v1623 = vld [vmem:[#allocation2 + $0x90] sm:$0xff]
      %v1624 = vld [vmem:[#allocation2 + $0x98] sm:$0xff]
      %v1625 = vld [vmem:[#allocation2 + $0xa0] sm:$0xff]
      %v1626 = vld [vmem:[#allocation2 + $0xa8] sm:$0xff]
      %v1627 = vld [vmem:[#allocation2 + $0xb0] sm:$0xff]
      %v1628 = vld [vmem:[#allocation2 + $0xb8] sm:$0xff]
      %v1629 = vld [vmem:[#allocation2 + $0xc0] sm:$0xff]
      %v1630 = vld [vmem:[#allocation2 + $0xc8] sm:$0xff]
      %v1631 = vld [vmem:[#allocation2 + $0xd0] sm:$0xff]
      %v1632 = vld [vmem:[#allocation2 + $0xd8] sm:$0xff]
      %v1633 = vld [vmem:[#allocation2 + $0xe0] sm:$0xff]
      %v1634 = vld [vmem:[#allocation2 + $0xe8] sm:$0xff]
      %v1635 = vld [vmem:[#allocation2 + $0xf0] sm:$0xff]
      %v1636 = vld [vmem:[#allocation2 + $0xf8] sm:$0xff]
      %v1637 = vld [vmem:[#allocation2 + $0x100] sm:$0xff]
      %v1638 = vld [vmem:[#allocation2 + $0x108] sm:$0x3]
      %vm1639 = vsmask.f32 6400
      %v1641 = vshrl.u32 %v1606, 16
      %v1643 = vrot.slane %v1641, 1
      %v1644 = vshll.u32 %v1606, 16
      %v1646 = vrot.slane %v1644, 2
      %v1647 = vor.u32 %v1643, %v1646
      %v1649 = vshrl.u32 %v1607, 16
      %v1651 = vrot.slane %v1649, 1
      %v1652 = vshll.u32 %v1607, 16
      %v1654 = vrot.slane %v1652, 2
      %v1655 = vor.u32 %v1651, %v1654
      %v1656 = vsel %vm1639, %v1647, %v1655
      %v1658 = vshrl.u32 %v1608, 16
      %v1660 = vrot.slane %v1658, 1
      %v1661 = vshll.u32 %v1608, 16
      %v1663 = vrot.slane %v1661, 2
      %v1664 = vor.u32 %v1660, %v1663
      %v1665 = vsel %vm1639, %v1655, %v1664
      %v1667 = vshrl.u32 %v1609, 16
      %v1669 = vrot.slane %v1667, 1
      %v1670 = vshll.u32 %v1609, 16
      %v1672 = vrot.slane %v1670, 2
      %v1673 = vor.u32 %v1669, %v1672
      %v1674 = vsel %vm1639, %v1664, %v1673
      %v1676 = vshrl.u32 %v1610, 16
      %v1678 = vrot.slane %v1676, 1
      %v1679 = vshll.u32 %v1610, 16
      %v1681 = vrot.slane %v1679, 2
      %v1682 = vor.u32 %v1678, %v1681
      %v1683 = vsel %vm1639, %v1673, %v1682
      %v1685 = vshrl.u32 %v1611, 16
      %v1687 = vrot.slane %v1685, 1
      %v1688 = vshll.u32 %v1611, 16
      %v1690 = vrot.slane %v1688, 2
      %v1691 = vor.u32 %v1687, %v1690
      %v1692 = vsel %vm1639, %v1682, %v1691
      %v1694 = vshrl.u32 %v1612, 16
      %v1696 = vrot.slane %v1694, 1
      %v1697 = vshll.u32 %v1612, 16
      %v1699 = vrot.slane %v1697, 2
      %v1700 = vor.u32 %v1696, %v1699
      %v1701 = vsel %vm1639, %v1691, %v1700
      %v1703 = vshrl.u32 %v1613, 16
      %v1705 = vrot.slane %v1703, 1
      %v1706 = vshll.u32 %v1613, 16
      %v1708 = vrot.slane %v1706, 2
      %v1709 = vor.u32 %v1705, %v1708
      %v1710 = vsel %vm1639, %v1700, %v1709
      %v1712 = vshrl.u32 %v1614, 16
      %v1714 = vrot.slane %v1712, 1
      %v1715 = vshll.u32 %v1614, 16
      %v1717 = vrot.slane %v1715, 2
      %v1718 = vor.u32 %v1714, %v1717
      %v1719 = vsel %vm1639, %v1709, %v1718
      %v1721 = vshrl.u32 %v1615, 16
      %v1723 = vrot.slane %v1721, 1
      %v1724 = vshll.u32 %v1615, 16
      %v1726 = vrot.slane %v1724, 2
      %v1727 = vor.u32 %v1723, %v1726
      %v1728 = vsel %vm1639, %v1718, %v1727
      %v1730 = vshrl.u32 %v1616, 16
      %v1732 = vrot.slane %v1730, 1
      %v1733 = vshll.u32 %v1616, 16
      %v1735 = vrot.slane %v1733, 2
      %v1736 = vor.u32 %v1732, %v1735
      %v1737 = vsel %vm1639, %v1727, %v1736
      %v1739 = vshrl.u32 %v1617, 16
      %v1741 = vrot.slane %v1739, 1
      %v1742 = vshll.u32 %v1617, 16
      %v1744 = vrot.slane %v1742, 2
      %v1745 = vor.u32 %v1741, %v1744
      %v1746 = vsel %vm1639, %v1736, %v1745
      %v1748 = vshrl.u32 %v1618, 16
      %v1750 = vrot.slane %v1748, 1
      %v1751 = vshll.u32 %v1618, 16
      %v1753 = vrot.slane %v1751, 2
      %v1754 = vor.u32 %v1750, %v1753
      %v1755 = vsel %vm1639, %v1745, %v1754
      %v1757 = vshrl.u32 %v1619, 16
      %v1759 = vrot.slane %v1757, 1
      %v1760 = vshll.u32 %v1619, 16
      %v1762 = vrot.slane %v1760, 2
      %v1763 = vor.u32 %v1759, %v1762
      %v1764 = vsel %vm1639, %v1754, %v1763
      %v1766 = vshrl.u32 %v1620, 16
      %v1768 = vrot.slane %v1766, 1
      %v1769 = vshll.u32 %v1620, 16
      %v1771 = vrot.slane %v1769, 2
      %v1772 = vor.u32 %v1768, %v1771
      %v1773 = vsel %vm1639, %v1763, %v1772
      %v1775 = vshrl.u32 %v1621, 16
      %v1777 = vrot.slane %v1775, 1
      %v1778 = vshll.u32 %v1621, 16
      %v1780 = vrot.slane %v1778, 2
      %v1781 = vor.u32 %v1777, %v1780
      %v1782 = vsel %vm1639, %v1772, %v1781
      %v1784 = vshrl.u32 %v1622, 16
      %v1786 = vrot.slane %v1784, 1
      %v1787 = vshll.u32 %v1622, 16
      %v1789 = vrot.slane %v1787, 2
      %v1790 = vor.u32 %v1786, %v1789
      %v1791 = vsel %vm1639, %v1781, %v1790
      %v1793 = vshrl.u32 %v1623, 16
      %v1795 = vrot.slane %v1793, 1
      %v1796 = vshll.u32 %v1623, 16
      %v1798 = vrot.slane %v1796, 2
      %v1799 = vor.u32 %v1795, %v1798
      %v1800 = vsel %vm1639, %v1790, %v1799
      %v1802 = vshrl.u32 %v1624, 16
      %v1804 = vrot.slane %v1802, 1
      %v1805 = vshll.u32 %v1624, 16
      %v1807 = vrot.slane %v1805, 2
      %v1808 = vor.u32 %v1804, %v1807
      %v1809 = vsel %vm1639, %v1799, %v1808
      %v1811 = vshrl.u32 %v1625, 16
      %v1813 = vrot.slane %v1811, 1
      %v1814 = vshll.u32 %v1625, 16
      %v1816 = vrot.slane %v1814, 2
      %v1817 = vor.u32 %v1813, %v1816
      %v1818 = vsel %vm1639, %v1808, %v1817
      %v1820 = vshrl.u32 %v1626, 16
      %v1822 = vrot.slane %v1820, 1
      %v1823 = vshll.u32 %v1626, 16
      %v1825 = vrot.slane %v1823, 2
      %v1826 = vor.u32 %v1822, %v1825
      %v1827 = vsel %vm1639, %v1817, %v1826
      %v1829 = vshrl.u32 %v1627, 16
      %v1831 = vrot.slane %v1829, 1
      %v1832 = vshll.u32 %v1627, 16
      %v1834 = vrot.slane %v1832, 2
      %v1835 = vor.u32 %v1831, %v1834
      %v1836 = vsel %vm1639, %v1826, %v1835
      %v1838 = vshrl.u32 %v1628, 16
      %v1840 = vrot.slane %v1838, 1
      %v1841 = vshll.u32 %v1628, 16
      %v1843 = vrot.slane %v1841, 2
      %v1844 = vor.u32 %v1840, %v1843
      %v1845 = vsel %vm1639, %v1835, %v1844
      %v1847 = vshrl.u32 %v1629, 16
      %v1849 = vrot.slane %v1847, 1
      %v1850 = vshll.u32 %v1629, 16
      %v1852 = vrot.slane %v1850, 2
      %v1853 = vor.u32 %v1849, %v1852
      %v1854 = vsel %vm1639, %v1844, %v1853
      %v1856 = vshrl.u32 %v1630, 16
      %v1858 = vrot.slane %v1856, 1
      %v1859 = vshll.u32 %v1630, 16
      %v1861 = vrot.slane %v1859, 2
      %v1862 = vor.u32 %v1858, %v1861
      %v1863 = vsel %vm1639, %v1853, %v1862
      %v1865 = vshrl.u32 %v1631, 16
      %v1867 = vrot.slane %v1865, 1
      %v1868 = vshll.u32 %v1631, 16
      %v1870 = vrot.slane %v1868, 2
      %v1871 = vor.u32 %v1867, %v1870
      %v1872 = vsel %vm1639, %v1862, %v1871
      %v1874 = vshrl.u32 %v1632, 16
      %v1876 = vrot.slane %v1874, 1
      %v1877 = vshll.u32 %v1632, 16
      %v1879 = vrot.slane %v1877, 2
      %v1880 = vor.u32 %v1876, %v1879
      %v1881 = vsel %vm1639, %v1871, %v1880
      %v1883 = vshrl.u32 %v1633, 16
      %v1885 = vrot.slane %v1883, 1
      %v1886 = vshll.u32 %v1633, 16
      %v1888 = vrot.slane %v1886, 2
      %v1889 = vor.u32 %v1885, %v1888
      %v1890 = vsel %vm1639, %v1880, %v1889
      %v1892 = vshrl.u32 %v1634, 16
      %v1894 = vrot.slane %v1892, 1
      %v1895 = vshll.u32 %v1634, 16
      %v1897 = vrot.slane %v1895, 2
      %v1898 = vor.u32 %v1894, %v1897
      %v1899 = vsel %vm1639, %v1889, %v1898
      %v1901 = vshrl.u32 %v1635, 16
      %v1903 = vrot.slane %v1901, 1
      %v1904 = vshll.u32 %v1635, 16
      %v1906 = vrot.slane %v1904, 2
      %v1907 = vor.u32 %v1903, %v1906
      %v1908 = vsel %vm1639, %v1898, %v1907
      %v1910 = vshrl.u32 %v1636, 16
      %v1912 = vrot.slane %v1910, 1
      %v1913 = vshll.u32 %v1636, 16
      %v1915 = vrot.slane %v1913, 2
      %v1916 = vor.u32 %v1912, %v1915
      %v1917 = vsel %vm1639, %v1907, %v1916
      %v1919 = vshrl.u32 %v1637, 16
      %v1921 = vrot.slane %v1919, 1
      %v1922 = vshll.u32 %v1637, 16
      %v1924 = vrot.slane %v1922, 2
      %v1925 = vor.u32 %v1921, %v1924
      %v1926 = vsel %vm1639, %v1916, %v1925
      %v1928 = vshrl.u32 %v1638, 16
      %v1930 = vrot.slane %v1928, 1
      %v1931 = vshll.u32 %v1638, 16
      %v1933 = vrot.slane %v1931, 2
      %v1934 = vor.u32 %v1930, %v1933
      %v1935 = vsel %vm1639, %v1925, %v1934
      %1936 = vrot.lane.b32.xlu0 %v1656, 16
      %v1937 = vpop.permute.xlu0 %1936
      %1938 = vrot.lane.b32.xlu0 %v1665, 16
      %v1939 = vpop.permute.xlu0 %1938
      %1940 = vrot.lane.b32.xlu0 %v1674, 16
      %v1941 = vpop.permute.xlu0 %1940
      %1942 = vrot.lane.b32.xlu0 %v1683, 16
      %v1943 = vpop.permute.xlu0 %1942
      %1944 = vrot.lane.b32.xlu0 %v1692, 16
      %v1945 = vpop.permute.xlu0 %1944
      %1946 = vrot.lane.b32.xlu0 %v1701, 16
      %v1947 = vpop.permute.xlu0 %1946
      %1948 = vrot.lane.b32.xlu0 %v1710, 16
      %v1949 = vpop.permute.xlu0 %1948
      %1950 = vrot.lane.b32.xlu0 %v1719, 16
      %v1951 = vpop.permute.xlu0 %1950
      %1952 = vrot.lane.b32.xlu0 %v1728, 16
      %v1953 = vpop.permute.xlu0 %1952
      %1954 = vrot.lane.b32.xlu0 %v1737, 16
      %v1955 = vpop.permute.xlu0 %1954
      %1956 = vrot.lane.b32.xlu0 %v1746, 16
      %v1957 = vpop.permute.xlu0 %1956
      %1958 = vrot.lane.b32.xlu0 %v1755, 16
      %v1959 = vpop.permute.xlu0 %1958
      %1960 = vrot.lane.b32.xlu0 %v1764, 16
      %v1961 = vpop.permute.xlu0 %1960
      %1962 = vrot.lane.b32.xlu0 %v1773, 16
      %v1963 = vpop.permute.xlu0 %1962
      %1964 = vrot.lane.b32.xlu0 %v1782, 16
      %v1965 = vpop.permute.xlu0 %1964
      %1966 = vrot.lane.b32.xlu0 %v1791, 16
      %v1967 = vpop.permute.xlu0 %1966
      %1968 = vrot.lane.b32.xlu0 %v1800, 16
      %v1969 = vpop.permute.xlu0 %1968
      %1970 = vrot.lane.b32.xlu0 %v1809, 16
      %v1971 = vpop.permute.xlu0 %1970
      %1972 = vrot.lane.b32.xlu0 %v1818, 16
      %v1973 = vpop.permute.xlu0 %1972
      %1974 = vrot.lane.b32.xlu0 %v1827, 16
      %v1975 = vpop.permute.xlu0 %1974
      %1976 = vrot.lane.b32.xlu0 %v1836, 16
      %v1977 = vpop.permute.xlu0 %1976
      %1978 = vrot.lane.b32.xlu0 %v1845, 16
      %v1979 = vpop.permute.xlu0 %1978
      %1980 = vrot.lane.b32.xlu0 %v1854, 16
      %v1981 = vpop.permute.xlu0 %1980
      %1982 = vrot.lane.b32.xlu0 %v1863, 16
      %v1983 = vpop.permute.xlu0 %1982
      %1984 = vrot.lane.b32.xlu0 %v1872, 16
      %v1985 = vpop.permute.xlu0 %1984
      %1986 = vrot.lane.b32.xlu0 %v1881, 16
      %v1987 = vpop.permute.xlu0 %1986
      %1988 = vrot.lane.b32.xlu0 %v1890, 16
      %v1989 = vpop.permute.xlu0 %1988
      %1990 = vrot.lane.b32.xlu0 %v1899, 16
      %v1991 = vpop.permute.xlu0 %1990
      %1992 = vrot.lane.b32.xlu0 %v1908, 16
      %v1993 = vpop.permute.xlu0 %1992
      %1994 = vrot.lane.b32.xlu0 %v1917, 16
      %v1995 = vpop.permute.xlu0 %1994
      %1996 = vrot.lane.b32.xlu0 %v1926, 16
      %v1997 = vpop.permute.xlu0 %1996
      %1998 = vrot.lane.b32.xlu0 %v1935, 16
      %v1999 = vpop.permute.xlu0 %1998
      %vm2032 = vcmask 162944
      %2033 = vst.msk [vmem:[#allocation3] sm:$0xff] %vm2032, %v1937
      %2034 = vst.msk [vmem:[#allocation3 + $0x8] sm:$0xff] %vm2032, %v1939
      %2035 = vst.msk [vmem:[#allocation3 + $0x10] sm:$0xff] %vm2032, %v1941
      %2036 = vst.msk [vmem:[#allocation3 + $0x18] sm:$0xff] %vm2032, %v1943
      %2037 = vst.msk [vmem:[#allocation3 + $0x20] sm:$0xff] %vm2032, %v1945
      %2038 = vst.msk [vmem:[#allocation3 + $0x28] sm:$0xff] %vm2032, %v1947
      %2039 = vst.msk [vmem:[#allocation3 + $0x30] sm:$0xff] %vm2032, %v1949
      %2040 = vst.msk [vmem:[#allocation3 + $0x38] sm:$0xff] %vm2032, %v1951
      %2041 = vst.msk [vmem:[#allocation3 + $0x40] sm:$0xff] %vm2032, %v1953
      %2042 = vst.msk [vmem:[#allocation3 + $0x48] sm:$0xff] %vm2032, %v1955
      %2043 = vst.msk [vmem:[#allocation3 + $0x50] sm:$0xff] %vm2032, %v1957
      %2044 = vst.msk [vmem:[#allocation3 + $0x58] sm:$0xff] %vm2032, %v1959
      %2045 = vst.msk [vmem:[#allocation3 + $0x60] sm:$0xff] %vm2032, %v1961
      %2046 = vst.msk [vmem:[#allocation3 + $0x68] sm:$0xff] %vm2032, %v1963
      %2047 = vst.msk [vmem:[#allocation3 + $0x70] sm:$0xff] %vm2032, %v1965
      %2048 = vst.msk [vmem:[#allocation3 + $0x78] sm:$0xff] %vm2032, %v1967
      %2049 = vst.msk [vmem:[#allocation3 + $0x80] sm:$0xff] %vm2032, %v1969
      %2050 = vst.msk [vmem:[#allocation3 + $0x88] sm:$0xff] %vm2032, %v1971
      %2051 = vst.msk [vmem:[#allocation3 + $0x90] sm:$0xff] %vm2032, %v1973
      %2052 = vst.msk [vmem:[#allocation3 + $0x98] sm:$0xff] %vm2032, %v1975
      %2053 = vst.msk [vmem:[#allocation3 + $0xa0] sm:$0xff] %vm2032, %v1977
      %2054 = vst.msk [vmem:[#allocation3 + $0xa8] sm:$0xff] %vm2032, %v1979
      %2055 = vst.msk [vmem:[#allocation3 + $0xb0] sm:$0xff] %vm2032, %v1981
      %2056 = vst.msk [vmem:[#allocation3 + $0xb8] sm:$0xff] %vm2032, %v1983
      %2057 = vst.msk [vmem:[#allocation3 + $0xc0] sm:$0xff] %vm2032, %v1985
      %2058 = vst.msk [vmem:[#allocation3 + $0xc8] sm:$0xff] %vm2032, %v1987
      %2059 = vst.msk [vmem:[#allocation3 + $0xd0] sm:$0xff] %vm2032, %v1989
      %2060 = vst.msk [vmem:[#allocation3 + $0xd8] sm:$0xff] %vm2032, %v1991
      %2061 = vst.msk [vmem:[#allocation3 + $0xe0] sm:$0xff] %vm2032, %v1993
      %2062 = vst.msk [vmem:[#allocation3 + $0xe8] sm:$0xff] %vm2032, %v1995
      %2063 = vst.msk [vmem:[#allocation3 + $0xf0] sm:$0xff] %vm2032, %v1997
      %2064 = vst.msk [vmem:[#allocation3 + $0xf8] sm:$0xff] %vm2032, %v1999
      %v2065 = vld [vmem:[#allocation2 + $0x8] sm:$0xfc]
      %v2066 = vld [vmem:[#allocation2 + $0x10] sm:$0xff]
      %v2067 = vld [vmem:[#allocation2 + $0x18] sm:$0xff]
      %v2068 = vld [vmem:[#allocation2 + $0x20] sm:$0xff]
      %v2069 = vld [vmem:[#allocation2 + $0x28] sm:$0xff]
      %v2070 = vld [vmem:[#allocation2 + $0x30] sm:$0xff]
      %v2071 = vld [vmem:[#allocation2 + $0x38] sm:$0xff]
      %v2072 = vld [vmem:[#allocation2 + $0x40] sm:$0xff]
      %v2073 = vld [vmem:[#allocation2 + $0x48] sm:$0xff]
      %v2074 = vld [vmem:[#allocation2 + $0x50] sm:$0xff]
      %v2075 = vld [vmem:[#allocation2 + $0x58] sm:$0xff]
      %v2076 = vld [vmem:[#allocation2 + $0x60] sm:$0xff]
      %v2077 = vld [vmem:[#allocation2 + $0x68] sm:$0xff]
      %v2078 = vld [vmem:[#allocation2 + $0x70] sm:$0xff]
      %v2079 = vld [vmem:[#allocation2 + $0x78] sm:$0xff]
      %v2080 = vld [vmem:[#allocation2 + $0x80] sm:$0xff]
      %v2081 = vld [vmem:[#allocation2 + $0x88] sm:$0xff]
      %v2082 = vld [vmem:[#allocation2 + $0x90] sm:$0xff]
      %v2083 = vld [vmem:[#allocation2 + $0x98] sm:$0xff]
      %v2084 = vld [vmem:[#allocation2 + $0xa0] sm:$0xff]
      %v2085 = vld [vmem:[#allocation2 + $0xa8] sm:$0xff]
      %v2086 = vld [vmem:[#allocation2 + $0xb0] sm:$0xff]
      %v2087 = vld [vmem:[#allocation2 + $0xb8] sm:$0xff]
      %v2088 = vld [vmem:[#allocation2 + $0xc0] sm:$0xff]
      %v2089 = vld [vmem:[#allocation2 + $0xc8] sm:$0xff]
      %v2090 = vld [vmem:[#allocation2 + $0xd0] sm:$0xff]
      %v2091 = vld [vmem:[#allocation2 + $0xd8] sm:$0xff]
      %v2092 = vld [vmem:[#allocation2 + $0xe0] sm:$0xff]
      %v2093 = vld [vmem:[#allocation2 + $0xe8] sm:$0xff]
      %v2094 = vld [vmem:[#allocation2 + $0xf0] sm:$0xff]
      %v2095 = vld [vmem:[#allocation2 + $0xf8] sm:$0xff]
      %v2096 = vld [vmem:[#allocation2 + $0x100] sm:$0xff]
      %v2097 = vld [vmem:[#allocation2 + $0x108] sm:$0x3]
      %vm2131 = vcmask 1045504
      %v2132 = vrot.slane %v2065, 2
      %v2133 = vrot.slane %v2066, 2
      %v2134 = vsel %vm2131, %v2132, %v2133
      %v2135 = vrot.slane %v2067, 2
      %v2136 = vsel %vm2131, %v2133, %v2135
      %v2137 = vrot.slane %v2068, 2
      %v2138 = vsel %vm2131, %v2135, %v2137
      %v2139 = vrot.slane %v2069, 2
      %v2140 = vsel %vm2131, %v2137, %v2139
      %v2141 = vrot.slane %v2070, 2
      %v2142 = vsel %vm2131, %v2139, %v2141
      %v2143 = vrot.slane %v2071, 2
      %v2144 = vsel %vm2131, %v2141, %v2143
      %v2145 = vrot.slane %v2072, 2
      %v2146 = vsel %vm2131, %v2143, %v2145
      %v2147 = vrot.slane %v2073, 2
      %v2148 = vsel %vm2131, %v2145, %v2147
      %v2149 = vrot.slane %v2074, 2
      %v2150 = vsel %vm2131, %v2147, %v2149
      %v2151 = vrot.slane %v2075, 2
      %v2152 = vsel %vm2131, %v2149, %v2151
      %v2153 = vrot.slane %v2076, 2
      %v2154 = vsel %vm2131, %v2151, %v2153
      %v2155 = vrot.slane %v2077, 2
      %v2156 = vsel %vm2131, %v2153, %v2155
      %v2157 = vrot.slane %v2078, 2
      %v2158 = vsel %vm2131, %v2155, %v2157
      %v2159 = vrot.slane %v2079, 2
      %v2160 = vsel %vm2131, %v2157, %v2159
      %v2161 = vrot.slane %v2080, 2
      %v2162 = vsel %vm2131, %v2159, %v2161
      %v2163 = vrot.slane %v2081, 2
      %v2164 = vsel %vm2131, %v2161, %v2163
      %v2165 = vrot.slane %v2082, 2
      %v2166 = vsel %vm2131, %v2163, %v2165
      %v2167 = vrot.slane %v2083, 2
      %v2168 = vsel %vm2131, %v2165, %v2167
      %v2169 = vrot.slane %v2084, 2
      %v2170 = vsel %vm2131, %v2167, %v2169
      %v2171 = vrot.slane %v2085, 2
      %v2172 = vsel %vm2131, %v2169, %v2171
      %v2173 = vrot.slane %v2086, 2
      %v2174 = vsel %vm2131, %v2171, %v2173
      %v2175 = vrot.slane %v2087, 2
      %v2176 = vsel %vm2131, %v2173, %v2175
      %v2177 = vrot.slane %v2088, 2
      %v2178 = vsel %vm2131, %v2175, %v2177
      %v2179 = vrot.slane %v2089, 2
      %v2180 = vsel %vm2131, %v2177, %v2179
      %v2181 = vrot.slane %v2090, 2
      %v2182 = vsel %vm2131, %v2179, %v2181
      %v2183 = vrot.slane %v2091, 2
      %v2184 = vsel %vm2131, %v2181, %v2183
      %v2185 = vrot.slane %v2092, 2
      %v2186 = vsel %vm2131, %v2183, %v2185
      %v2187 = vrot.slane %v2093, 2
      %v2188 = vsel %vm2131, %v2185, %v2187
      %v2189 = vrot.slane %v2094, 2
      %v2190 = vsel %vm2131, %v2187, %v2189
      %v2191 = vrot.slane %v2095, 2
      %v2192 = vsel %vm2131, %v2189, %v2191
      %v2193 = vrot.slane %v2096, 2
      %v2194 = vsel %vm2131, %v2191, %v2193
      %v2195 = vrot.slane %v2097, 2
      %v2196 = vsel %vm2131, %v2193, %v2195
      %2197 = vrot.lane.b32.xlu0 %v2134, 20
      %v2198 = vpop.permute.xlu0 %2197
      %2199 = vrot.lane.b32.xlu0 %v2136, 20
      %v2200 = vpop.permute.xlu0 %2199
      %2201 = vrot.lane.b32.xlu0 %v2138, 20
      %v2202 = vpop.permute.xlu0 %2201
      %2203 = vrot.lane.b32.xlu0 %v2140, 20
      %v2204 = vpop.permute.xlu0 %2203
      %2205 = vrot.lane.b32.xlu0 %v2142, 20
      %v2206 = vpop.permute.xlu0 %2205
      %2207 = vrot.lane.b32.xlu0 %v2144, 20
      %v2208 = vpop.permute.xlu0 %2207
      %2209 = vrot.lane.b32.xlu0 %v2146, 20
      %v2210 = vpop.permute.xlu0 %2209
      %2211 = vrot.lane.b32.xlu0 %v2148, 20
      %v2212 = vpop.permute.xlu0 %2211
      %2213 = vrot.lane.b32.xlu0 %v2150, 20
      %v2214 = vpop.permute.xlu0 %2213
      %2215 = vrot.lane.b32.xlu0 %v2152, 20
      %v2216 = vpop.permute.xlu0 %2215
      %2217 = vrot.lane.b32.xlu0 %v2154, 20
      %v2218 = vpop.permute.xlu0 %2217
      %2219 = vrot.lane.b32.xlu0 %v2156, 20
      %v2220 = vpop.permute.xlu0 %2219
      %2221 = vrot.lane.b32.xlu0 %v2158, 20
      %v2222 = vpop.permute.xlu0 %2221
      %2223 = vrot.lane.b32.xlu0 %v2160, 20
      %v2224 = vpop.permute.xlu0 %2223
      %2225 = vrot.lane.b32.xlu0 %v2162, 20
      %v2226 = vpop.permute.xlu0 %2225
      %2227 = vrot.lane.b32.xlu0 %v2164, 20
      %v2228 = vpop.permute.xlu0 %2227
      %2229 = vrot.lane.b32.xlu0 %v2166, 20
      %v2230 = vpop.permute.xlu0 %2229
      %2231 = vrot.lane.b32.xlu0 %v2168, 20
      %v2232 = vpop.permute.xlu0 %2231
      %2233 = vrot.lane.b32.xlu0 %v2170, 20
      %v2234 = vpop.permute.xlu0 %2233
      %2235 = vrot.lane.b32.xlu0 %v2172, 20
      %v2236 = vpop.permute.xlu0 %2235
      %2237 = vrot.lane.b32.xlu0 %v2174, 20
      %v2238 = vpop.permute.xlu0 %2237
      %2239 = vrot.lane.b32.xlu0 %v2176, 20
      %v2240 = vpop.permute.xlu0 %2239
      %2241 = vrot.lane.b32.xlu0 %v2178, 20
      %v2242 = vpop.permute.xlu0 %2241
      %2243 = vrot.lane.b32.xlu0 %v2180, 20
      %v2244 = vpop.permute.xlu0 %2243
      %2245 = vrot.lane.b32.xlu0 %v2182, 20
      %v2246 = vpop.permute.xlu0 %2245
      %2247 = vrot.lane.b32.xlu0 %v2184, 20
      %v2248 = vpop.permute.xlu0 %2247
      %2249 = vrot.lane.b32.xlu0 %v2186, 20
      %v2250 = vpop.permute.xlu0 %2249
      %2251 = vrot.lane.b32.xlu0 %v2188, 20
      %v2252 = vpop.permute.xlu0 %2251
      %2253 = vrot.lane.b32.xlu0 %v2190, 20
      %v2254 = vpop.permute.xlu0 %2253
      %2255 = vrot.lane.b32.xlu0 %v2192, 20
      %v2256 = vpop.permute.xlu0 %2255
      %2257 = vrot.lane.b32.xlu0 %v2194, 20
      %v2258 = vpop.permute.xlu0 %2257
      %2259 = vrot.lane.b32.xlu0 %v2196, 20
      %v2260 = vpop.permute.xlu0 %2259
      %vm2293 = vcmask 195744
      %2294 = vst.msk [vmem:[#allocation3] sm:$0xff] %vm2293, %v2198
      %2295 = vst.msk [vmem:[#allocation3 + $0x8] sm:$0xff] %vm2293, %v2200
      %2296 = vst.msk [vmem:[#allocation3 + $0x10] sm:$0xff] %vm2293, %v2202
      %2297 = vst.msk [vmem:[#allocation3 + $0x18] sm:$0xff] %vm2293, %v2204
      %2298 = vst.msk [vmem:[#allocation3 + $0x20] sm:$0xff] %vm2293, %v2206
      %2299 = vst.msk [vmem:[#allocation3 + $0x28] sm:$0xff] %vm2293, %v2208
      %2300 = vst.msk [vmem:[#allocation3 + $0x30] sm:$0xff] %vm2293, %v2210
      %2301 = vst.msk [vmem:[#allocation3 + $0x38] sm:$0xff] %vm2293, %v2212
      %2302 = vst.msk [vmem:[#allocation3 + $0x40] sm:$0xff] %vm2293, %v2214
      %2303 = vst.msk [vmem:[#allocation3 + $0x48] sm:$0xff] %vm2293, %v2216
      %2304 = vst.msk [vmem:[#allocation3 + $0x50] sm:$0xff] %vm2293, %v2218
      %2305 = vst.msk [vmem:[#allocation3 + $0x58] sm:$0xff] %vm2293, %v2220
      %2306 = vst.msk [vmem:[#allocation3 + $0x60] sm:$0xff] %vm2293, %v2222
      %2307 = vst.msk [vmem:[#allocation3 + $0x68] sm:$0xff] %vm2293, %v2224
      %2308 = vst.msk [vmem:[#allocation3 + $0x70] sm:$0xff] %vm2293, %v2226
      %2309 = vst.msk [vmem:[#allocation3 + $0x78] sm:$0xff] %vm2293, %v2228
      %2310 = vst.msk [vmem:[#allocation3 + $0x80] sm:$0xff] %vm2293, %v2230
      %2311 = vst.msk [vmem:[#allocation3 + $0x88] sm:$0xff] %vm2293, %v2232
      %2312 = vst.msk [vmem:[#allocation3 + $0x90] sm:$0xff] %vm2293, %v2234
      %2313 = vst.msk [vmem:[#allocation3 + $0x98] sm:$0xff] %vm2293, %v2236
      %2314 = vst.msk [vmem:[#allocation3 + $0xa0] sm:$0xff] %vm2293, %v2238
      %2315 = vst.msk [vmem:[#allocation3 + $0xa8] sm:$0xff] %vm2293, %v2240
      %2316 = vst.msk [vmem:[#allocation3 + $0xb0] sm:$0xff] %vm2293, %v2242
      %2317 = vst.msk [vmem:[#allocation3 + $0xb8] sm:$0xff] %vm2293, %v2244
      %2318 = vst.msk [vmem:[#allocation3 + $0xc0] sm:$0xff] %vm2293, %v2246
      %2319 = vst.msk [vmem:[#allocation3 + $0xc8] sm:$0xff] %vm2293, %v2248
      %2320 = vst.msk [vmem:[#allocation3 + $0xd0] sm:$0xff] %vm2293, %v2250
      %2321 = vst.msk [vmem:[#allocation3 + $0xd8] sm:$0xff] %vm2293, %v2252
      %2322 = vst.msk [vmem:[#allocation3 + $0xe0] sm:$0xff] %vm2293, %v2254
      %2323 = vst.msk [vmem:[#allocation3 + $0xe8] sm:$0xff] %vm2293, %v2256
      %2324 = vst.msk [vmem:[#allocation3 + $0xf0] sm:$0xff] %vm2293, %v2258
      %2325 = vst.msk [vmem:[#allocation3 + $0xf8] sm:$0xff] %vm2293, %v2260
      %v2326 = vld [vmem:[#allocation2 + $0x10] sm:$0xfc]
      %v2327 = vld [vmem:[#allocation2 + $0x18] sm:$0xff]
      %v2328 = vld [vmem:[#allocation2 + $0x20] sm:$0xff]
      %v2329 = vld [vmem:[#allocation2 + $0x28] sm:$0xff]
      %v2330 = vld [vmem:[#allocation2 + $0x30] sm:$0xff]
      %v2331 = vld [vmem:[#allocation2 + $0x38] sm:$0xff]
      %v2332 = vld [vmem:[#allocation2 + $0x40] sm:$0xff]
      %v2333 = vld [vmem:[#allocation2 + $0x48] sm:$0xff]
      %v2334 = vld [vmem:[#allocation2 + $0x50] sm:$0xff]
      %v2335 = vld [vmem:[#allocation2 + $0x58] sm:$0xff]
      %v2336 = vld [vmem:[#allocation2 + $0x60] sm:$0xff]
      %v2337 = vld [vmem:[#allocation2 + $0x68] sm:$0xff]
      %v2338 = vld [vmem:[#allocation2 + $0x70] sm:$0xff]
      %v2339 = vld [vmem:[#allocation2 + $0x78] sm:$0xff]
      %v2340 = vld [vmem:[#allocation2 + $0x80] sm:$0xff]
      %v2341 = vld [vmem:[#allocation2 + $0x88] sm:$0xff]
      %v2342 = vld [vmem:[#allocation2 + $0x90] sm:$0xff]
      %v2343 = vld [vmem:[#allocation2 + $0x98] sm:$0xff]
      %v2344 = vld [vmem:[#allocation2 + $0xa0] sm:$0xff]
      %v2345 = vld [vmem:[#allocation2 + $0xa8] sm:$0xff]
      %v2346 = vld [vmem:[#allocation2 + $0xb0] sm:$0xff]
      %v2347 = vld [vmem:[#allocation2 + $0xb8] sm:$0xff]
      %v2348 = vld [vmem:[#allocation2 + $0xc0] sm:$0xff]
      %v2349 = vld [vmem:[#allocation2 + $0xc8] sm:$0xff]
      %v2350 = vld [vmem:[#allocation2 + $0xd0] sm:$0xff]
      %v2351 = vld [vmem:[#allocation2 + $0xd8] sm:$0xff]
      %v2352 = vld [vmem:[#allocation2 + $0xe0] sm:$0xff]
      %v2353 = vld [vmem:[#allocation2 + $0xe8] sm:$0xff]
      %v2354 = vld [vmem:[#allocation2 + $0xf0] sm:$0xff]
      %v2355 = vld [vmem:[#allocation2 + $0xf8] sm:$0xff]
      %v2356 = vld [vmem:[#allocation2 + $0x100] sm:$0xff]
      %v2357 = vld [vmem:[#allocation2 + $0x108] sm:$0xff]
      %v2358 = vld [vmem:[#allocation2 + $0x110] sm:$0x3]
      %v2392 = vrot.slane %v2326, 2
      %v2393 = vrot.slane %v2327, 2
      %v2394 = vsel %vm2131, %v2392, %v2393
      %v2395 = vrot.slane %v2328, 2
      %v2396 = vsel %vm2131, %v2393, %v2395
      %v2397 = vrot.slane %v2329, 2
      %v2398 = vsel %vm2131, %v2395, %v2397
      %v2399 = vrot.slane %v2330, 2
      %v2400 = vsel %vm2131, %v2397, %v2399
      %v2401 = vrot.slane %v2331, 2
      %v2402 = vsel %vm2131, %v2399, %v2401
      %v2403 = vrot.slane %v2332, 2
      %v2404 = vsel %vm2131, %v2401, %v2403
      %v2405 = vrot.slane %v2333, 2
      %v2406 = vsel %vm2131, %v2403, %v2405
      %v2407 = vrot.slane %v2334, 2
      %v2408 = vsel %vm2131, %v2405, %v2407
      %v2409 = vrot.slane %v2335, 2
      %v2410 = vsel %vm2131, %v2407, %v2409
      %v2411 = vrot.slane %v2336, 2
      %v2412 = vsel %vm2131, %v2409, %v2411
      %v2413 = vrot.slane %v2337, 2
      %v2414 = vsel %vm2131, %v2411, %v2413
      %v2415 = vrot.slane %v2338, 2
      %v2416 = vsel %vm2131, %v2413, %v2415
      %v2417 = vrot.slane %v2339, 2
      %v2418 = vsel %vm2131, %v2415, %v2417
      %v2419 = vrot.slane %v2340, 2
      %v2420 = vsel %vm2131, %v2417, %v2419
      %v2421 = vrot.slane %v2341, 2
      %v2422 = vsel %vm2131, %v2419, %v2421
      %v2423 = vrot.slane %v2342, 2
      %v2424 = vsel %vm2131, %v2421, %v2423
      %v2425 = vrot.slane %v2343, 2
      %v2426 = vsel %vm2131, %v2423, %v2425
      %v2427 = vrot.slane %v2344, 2
      %v2428 = vsel %vm2131, %v2425, %v2427
      %v2429 = vrot.slane %v2345, 2
      %v2430 = vsel %vm2131, %v2427, %v2429
      %v2431 = vrot.slane %v2346, 2
      %v2432 = vsel %vm2131, %v2429, %v2431
      %v2433 = vrot.slane %v2347, 2
      %v2434 = vsel %vm2131, %v2431, %v2433
      %v2435 = vrot.slane %v2348, 2
      %v2436 = vsel %vm2131, %v2433, %v2435
      %v2437 = vrot.slane %v2349, 2
      %v2438 = vsel %vm2131, %v2435, %v2437
      %v2439 = vrot.slane %v2350, 2
      %v2440 = vsel %vm2131, %v2437, %v2439
      %v2441 = vrot.slane %v2351, 2
      %v2442 = vsel %vm2131, %v2439, %v2441
      %v2443 = vrot.slane %v2352, 2
      %v2444 = vsel %vm2131, %v2441, %v2443
      %v2445 = vrot.slane %v2353, 2
      %v2446 = vsel %vm2131, %v2443, %v2445
      %v2447 = vrot.slane %v2354, 2
      %v2448 = vsel %vm2131, %v2445, %v2447
      %v2449 = vrot.slane %v2355, 2
      %v2450 = vsel %vm2131, %v2447, %v2449
      %v2451 = vrot.slane %v2356, 2
      %v2452 = vsel %vm2131, %v2449, %v2451
      %v2453 = vrot.slane %v2357, 2
      %v2454 = vsel %vm2131, %v2451, %v2453
      %v2455 = vrot.slane %v2358, 2
      %v2456 = vsel %vm2131, %v2453, %v2455
      %2457 = vrot.lane.b32.xlu0 %v2394, 24
      %v2458 = vpop.permute.xlu0 %2457
      %2459 = vrot.lane.b32.xlu0 %v2396, 24
      %v2460 = vpop.permute.xlu0 %2459
      %2461 = vrot.lane.b32.xlu0 %v2398, 24
      %v2462 = vpop.permute.xlu0 %2461
      %2463 = vrot.lane.b32.xlu0 %v2400, 24
      %v2464 = vpop.permute.xlu0 %2463
      %2465 = vrot.lane.b32.xlu0 %v2402, 24
      %v2466 = vpop.permute.xlu0 %2465
      %2467 = vrot.lane.b32.xlu0 %v2404, 24
      %v2468 = vpop.permute.xlu0 %2467
      %2469 = vrot.lane.b32.xlu0 %v2406, 24
      %v2470 = vpop.permute.xlu0 %2469
      %2471 = vrot.lane.b32.xlu0 %v2408, 24
      %v2472 = vpop.permute.xlu0 %2471
      %2473 = vrot.lane.b32.xlu0 %v2410, 24
      %v2474 = vpop.permute.xlu0 %2473
      %2475 = vrot.lane.b32.xlu0 %v2412, 24
      %v2476 = vpop.permute.xlu0 %2475
      %2477 = vrot.lane.b32.xlu0 %v2414, 24
      %v2478 = vpop.permute.xlu0 %2477
      %2479 = vrot.lane.b32.xlu0 %v2416, 24
      %v2480 = vpop.permute.xlu0 %2479
      %2481 = vrot.lane.b32.xlu0 %v2418, 24
      %v2482 = vpop.permute.xlu0 %2481
      %2483 = vrot.lane.b32.xlu0 %v2420, 24
      %v2484 = vpop.permute.xlu0 %2483
      %2485 = vrot.lane.b32.xlu0 %v2422, 24
      %v2486 = vpop.permute.xlu0 %2485
      %2487 = vrot.lane.b32.xlu0 %v2424, 24
      %v2488 = vpop.permute.xlu0 %2487
      %2489 = vrot.lane.b32.xlu0 %v2426, 24
      %v2490 = vpop.permute.xlu0 %2489
      %2491 = vrot.lane.b32.xlu0 %v2428, 24
      %v2492 = vpop.permute.xlu0 %2491
      %2493 = vrot.lane.b32.xlu0 %v2430, 24
      %v2494 = vpop.permute.xlu0 %2493
      %2495 = vrot.lane.b32.xlu0 %v2432, 24
      %v2496 = vpop.permute.xlu0 %2495
      %2497 = vrot.lane.b32.xlu0 %v2434, 24
      %v2498 = vpop.permute.xlu0 %2497
      %2499 = vrot.lane.b32.xlu0 %v2436, 24
      %v2500 = vpop.permute.xlu0 %2499
      %2501 = vrot.lane.b32.xlu0 %v2438, 24
      %v2502 = vpop.permute.xlu0 %2501
      %2503 = vrot.lane.b32.xlu0 %v2440, 24
      %v2504 = vpop.permute.xlu0 %2503
      %2505 = vrot.lane.b32.xlu0 %v2442, 24
      %v2506 = vpop.permute.xlu0 %2505
      %2507 = vrot.lane.b32.xlu0 %v2444, 24
      %v2508 = vpop.permute.xlu0 %2507
      %2509 = vrot.lane.b32.xlu0 %v2446, 24
      %v2510 = vpop.permute.xlu0 %2509
      %2511 = vrot.lane.b32.xlu0 %v2448, 24
      %v2512 = vpop.permute.xlu0 %2511
      %2513 = vrot.lane.b32.xlu0 %v2450, 24
      %v2514 = vpop.permute.xlu0 %2513
      %2515 = vrot.lane.b32.xlu0 %v2452, 24
      %v2516 = vpop.permute.xlu0 %2515
      %2517 = vrot.lane.b32.xlu0 %v2454, 24
      %v2518 = vpop.permute.xlu0 %2517
      %2519 = vrot.lane.b32.xlu0 %v2456, 24
      %v2520 = vpop.permute.xlu0 %2519
      %vm2553 = vcmask 228544
      %2554 = vst.msk [vmem:[#allocation3] sm:$0xff] %vm2553, %v2458
      %2555 = vst.msk [vmem:[#allocation3 + $0x8] sm:$0xff] %vm2553, %v2460
      %2556 = vst.msk [vmem:[#allocation3 + $0x10] sm:$0xff] %vm2553, %v2462
      %2557 = vst.msk [vmem:[#allocation3 + $0x18] sm:$0xff] %vm2553, %v2464
      %2558 = vst.msk [vmem:[#allocation3 + $0x20] sm:$0xff] %vm2553, %v2466
      %2559 = vst.msk [vmem:[#allocation3 + $0x28] sm:$0xff] %vm2553, %v2468
      %2560 = vst.msk [vmem:[#allocation3 + $0x30] sm:$0xff] %vm2553, %v2470
      %2561 = vst.msk [vmem:[#allocation3 + $0x38] sm:$0xff] %vm2553, %v2472
      %2562 = vst.msk [vmem:[#allocation3 + $0x40] sm:$0xff] %vm2553, %v2474
      %2563 = vst.msk [vmem:[#allocation3 + $0x48] sm:$0xff] %vm2553, %v2476
      %2564 = vst.msk [vmem:[#allocation3 + $0x50] sm:$0xff] %vm2553, %v2478
      %2565 = vst.msk [vmem:[#allocation3 + $0x58] sm:$0xff] %vm2553, %v2480
      %2566 = vst.msk [vmem:[#allocation3 + $0x60] sm:$0xff] %vm2553, %v2482
      %2567 = vst.msk [vmem:[#allocation3 + $0x68] sm:$0xff] %vm2553, %v2484
      %2568 = vst.msk [vmem:[#allocation3 + $0x70] sm:$0xff] %vm2553, %v2486
      %2569 = vst.msk [vmem:[#allocation3 + $0x78] sm:$0xff] %vm2553, %v2488
      %2570 = vst.msk [vmem:[#allocation3 + $0x80] sm:$0xff] %vm2553, %v2490
      %2571 = vst.msk [vmem:[#allocation3 + $0x88] sm:$0xff] %vm2553, %v2492
      %2572 = vst.msk [vmem:[#allocation3 + $0x90] sm:$0xff] %vm2553, %v2494
      %2573 = vst.msk [vmem:[#allocation3 + $0x98] sm:$0xff] %vm2553, %v2496
      %2574 = vst.msk [vmem:[#allocation3 + $0xa0] sm:$0xff] %vm2553, %v2498
      %2575 = vst.msk [vmem:[#allocation3 + $0xa8] sm:$0xff] %vm2553, %v2500
      %2576 = vst.msk [vmem:[#allocation3 + $0xb0] sm:$0xff] %vm2553, %v2502
      %2577 = vst.msk [vmem:[#allocation3 + $0xb8] sm:$0xff] %vm2553, %v2504
      %2578 = vst.msk [vmem:[#allocation3 + $0xc0] sm:$0xff] %vm2553, %v2506
      %2579 = vst.msk [vmem:[#allocation3 + $0xc8] sm:$0xff] %vm2553, %v2508
      %2580 = vst.msk [vmem:[#allocation3 + $0xd0] sm:$0xff] %vm2553, %v2510
      %2581 = vst.msk [vmem:[#allocation3 + $0xd8] sm:$0xff] %vm2553, %v2512
      %2582 = vst.msk [vmem:[#allocation3 + $0xe0] sm:$0xff] %vm2553, %v2514
      %2583 = vst.msk [vmem:[#allocation3 + $0xe8] sm:$0xff] %vm2553, %v2516
      %2584 = vst.msk [vmem:[#allocation3 + $0xf0] sm:$0xff] %vm2553, %v2518
      %2585 = vst.msk [vmem:[#allocation3 + $0xf8] sm:$0xff] %vm2553, %v2520
      %v2586 = vld [vmem:[#allocation2 + $0x10] sm:$0xfc]
      %v2587 = vld [vmem:[#allocation2 + $0x18] sm:$0xff]
      %v2588 = vld [vmem:[#allocation2 + $0x20] sm:$0xff]
      %v2589 = vld [vmem:[#allocation2 + $0x28] sm:$0xff]
      %v2590 = vld [vmem:[#allocation2 + $0x30] sm:$0xff]
      %v2591 = vld [vmem:[#allocation2 + $0x38] sm:$0xff]
      %v2592 = vld [vmem:[#allocation2 + $0x40] sm:$0xff]
      %v2593 = vld [vmem:[#allocation2 + $0x48] sm:$0xff]
      %v2594 = vld [vmem:[#allocation2 + $0x50] sm:$0xff]
      %v2595 = vld [vmem:[#allocation2 + $0x58] sm:$0xff]
      %v2596 = vld [vmem:[#allocation2 + $0x60] sm:$0xff]
      %v2597 = vld [vmem:[#allocation2 + $0x68] sm:$0xff]
      %v2598 = vld [vmem:[#allocation2 + $0x70] sm:$0xff]
      %v2599 = vld [vmem:[#allocation2 + $0x78] sm:$0xff]
      %v2600 = vld [vmem:[#allocation2 + $0x80] sm:$0xff]
      %v2601 = vld [vmem:[#allocation2 + $0x88] sm:$0xff]
      %v2602 = vld [vmem:[#allocation2 + $0x90] sm:$0xff]
      %v2603 = vld [vmem:[#allocation2 + $0x98] sm:$0xff]
      %v2604 = vld [vmem:[#allocation2 + $0xa0] sm:$0xff]
      %v2605 = vld [vmem:[#allocation2 + $0xa8] sm:$0xff]
      %v2606 = vld [vmem:[#allocation2 + $0xb0] sm:$0xff]
      %v2607 = vld [vmem:[#allocation2 + $0xb8] sm:$0xff]
      %v2608 = vld [vmem:[#allocation2 + $0xc0] sm:$0xff]
      %v2609 = vld [vmem:[#allocation2 + $0xc8] sm:$0xff]
      %v2610 = vld [vmem:[#allocation2 + $0xd0] sm:$0xff]
      %v2611 = vld [vmem:[#allocation2 + $0xd8] sm:$0xff]
      %v2612 = vld [vmem:[#allocation2 + $0xe0] sm:$0xff]
      %v2613 = vld [vmem:[#allocation2 + $0xe8] sm:$0xff]
      %v2614 = vld [vmem:[#allocation2 + $0xf0] sm:$0xff]
      %v2615 = vld [vmem:[#allocation2 + $0xf8] sm:$0xff]
      %v2616 = vld [vmem:[#allocation2 + $0x100] sm:$0xff]
      %v2617 = vld [vmem:[#allocation2 + $0x108] sm:$0xff]
      %v2618 = vld [vmem:[#allocation2 + $0x110] sm:$0x7]
      %vm2619 = vsmask.f32 5376
      %v2621 = vshrl.u32 %v2586, 16
      %v2623 = vrot.slane %v2621, 2
      %v2624 = vshll.u32 %v2586, 16
      %v2626 = vrot.slane %v2624, 3
      %v2627 = vor.u32 %v2623, %v2626
      %v2629 = vshrl.u32 %v2587, 16
      %v2631 = vrot.slane %v2629, 2
      %v2632 = vshll.u32 %v2587, 16
      %v2634 = vrot.slane %v2632, 3
      %v2635 = vor.u32 %v2631, %v2634
      %v2636 = vsel %vm2619, %v2627, %v2635
      %v2638 = vshrl.u32 %v2588, 16
      %v2640 = vrot.slane %v2638, 2
      %v2641 = vshll.u32 %v2588, 16
      %v2643 = vrot.slane %v2641, 3
      %v2644 = vor.u32 %v2640, %v2643
      %v2645 = vsel %vm2619, %v2635, %v2644
      %v2647 = vshrl.u32 %v2589, 16
      %v2649 = vrot.slane %v2647, 2
      %v2650 = vshll.u32 %v2589, 16
      %v2652 = vrot.slane %v2650, 3
      %v2653 = vor.u32 %v2649, %v2652
      %v2654 = vsel %vm2619, %v2644, %v2653
      %v2656 = vshrl.u32 %v2590, 16
      %v2658 = vrot.slane %v2656, 2
      %v2659 = vshll.u32 %v2590, 16
      %v2661 = vrot.slane %v2659, 3
      %v2662 = vor.u32 %v2658, %v2661
      %v2663 = vsel %vm2619, %v2653, %v2662
      %v2665 = vshrl.u32 %v2591, 16
      %v2667 = vrot.slane %v2665, 2
      %v2668 = vshll.u32 %v2591, 16
      %v2670 = vrot.slane %v2668, 3
      %v2671 = vor.u32 %v2667, %v2670
      %v2672 = vsel %vm2619, %v2662, %v2671
      %v2674 = vshrl.u32 %v2592, 16
      %v2676 = vrot.slane %v2674, 2
      %v2677 = vshll.u32 %v2592, 16
      %v2679 = vrot.slane %v2677, 3
      %v2680 = vor.u32 %v2676, %v2679
      %v2681 = vsel %vm2619, %v2671, %v2680
      %v2683 = vshrl.u32 %v2593, 16
      %v2685 = vrot.slane %v2683, 2
      %v2686 = vshll.u32 %v2593, 16
      %v2688 = vrot.slane %v2686, 3
      %v2689 = vor.u32 %v2685, %v2688
      %v2690 = vsel %vm2619, %v2680, %v2689
      %v2692 = vshrl.u32 %v2594, 16
      %v2694 = vrot.slane %v2692, 2
      %v2695 = vshll.u32 %v2594, 16
      %v2697 = vrot.slane %v2695, 3
      %v2698 = vor.u32 %v2694, %v2697
      %v2699 = vsel %vm2619, %v2689, %v2698
      %v2701 = vshrl.u32 %v2595, 16
      %v2703 = vrot.slane %v2701, 2
      %v2704 = vshll.u32 %v2595, 16
      %v2706 = vrot.slane %v2704, 3
      %v2707 = vor.u32 %v2703, %v2706
      %v2708 = vsel %vm2619, %v2698, %v2707
      %v2710 = vshrl.u32 %v2596, 16
      %v2712 = vrot.slane %v2710, 2
      %v2713 = vshll.u32 %v2596, 16
      %v2715 = vrot.slane %v2713, 3
      %v2716 = vor.u32 %v2712, %v2715
      %v2717 = vsel %vm2619, %v2707, %v2716
      %v2719 = vshrl.u32 %v2597, 16
      %v2721 = vrot.slane %v2719, 2
      %v2722 = vshll.u32 %v2597, 16
      %v2724 = vrot.slane %v2722, 3
      %v2725 = vor.u32 %v2721, %v2724
      %v2726 = vsel %vm2619, %v2716, %v2725
      %v2728 = vshrl.u32 %v2598, 16
      %v2730 = vrot.slane %v2728, 2
      %v2731 = vshll.u32 %v2598, 16
      %v2733 = vrot.slane %v2731, 3
      %v2734 = vor.u32 %v2730, %v2733
      %v2735 = vsel %vm2619, %v2725, %v2734
      %v2737 = vshrl.u32 %v2599, 16
      %v2739 = vrot.slane %v2737, 2
      %v2740 = vshll.u32 %v2599, 16
      %v2742 = vrot.slane %v2740, 3
      %v2743 = vor.u32 %v2739, %v2742
      %v2744 = vsel %vm2619, %v2734, %v2743
      %v2746 = vshrl.u32 %v2600, 16
      %v2748 = vrot.slane %v2746, 2
      %v2749 = vshll.u32 %v2600, 16
      %v2751 = vrot.slane %v2749, 3
      %v2752 = vor.u32 %v2748, %v2751
      %v2753 = vsel %vm2619, %v2743, %v2752
      %v2755 = vshrl.u32 %v2601, 16
      %v2757 = vrot.slane %v2755, 2
      %v2758 = vshll.u32 %v2601, 16
      %v2760 = vrot.slane %v2758, 3
      %v2761 = vor.u32 %v2757, %v2760
      %v2762 = vsel %vm2619, %v2752, %v2761
      %v2764 = vshrl.u32 %v2602, 16
      %v2766 = vrot.slane %v2764, 2
      %v2767 = vshll.u32 %v2602, 16
      %v2769 = vrot.slane %v2767, 3
      %v2770 = vor.u32 %v2766, %v2769
      %v2771 = vsel %vm2619, %v2761, %v2770
      %v2773 = vshrl.u32 %v2603, 16
      %v2775 = vrot.slane %v2773, 2
      %v2776 = vshll.u32 %v2603, 16
      %v2778 = vrot.slane %v2776, 3
      %v2779 = vor.u32 %v2775, %v2778
      %v2780 = vsel %vm2619, %v2770, %v2779
      %v2782 = vshrl.u32 %v2604, 16
      %v2784 = vrot.slane %v2782, 2
      %v2785 = vshll.u32 %v2604, 16
      %v2787 = vrot.slane %v2785, 3
      %v2788 = vor.u32 %v2784, %v2787
      %v2789 = vsel %vm2619, %v2779, %v2788
      %v2791 = vshrl.u32 %v2605, 16
      %v2793 = vrot.slane %v2791, 2
      %v2794 = vshll.u32 %v2605, 16
      %v2796 = vrot.slane %v2794, 3
      %v2797 = vor.u32 %v2793, %v2796
      %v2798 = vsel %vm2619, %v2788, %v2797
      %v2800 = vshrl.u32 %v2606, 16
      %v2802 = vrot.slane %v2800, 2
      %v2803 = vshll.u32 %v2606, 16
      %v2805 = vrot.slane %v2803, 3
      %v2806 = vor.u32 %v2802, %v2805
      %v2807 = vsel %vm2619, %v2797, %v2806
      %v2809 = vshrl.u32 %v2607, 16
      %v2811 = vrot.slane %v2809, 2
      %v2812 = vshll.u32 %v2607, 16
      %v2814 = vrot.slane %v2812, 3
      %v2815 = vor.u32 %v2811, %v2814
      %v2816 = vsel %vm2619, %v2806, %v2815
      %v2818 = vshrl.u32 %v2608, 16
      %v2820 = vrot.slane %v2818, 2
      %v2821 = vshll.u32 %v2608, 16
      %v2823 = vrot.slane %v2821, 3
      %v2824 = vor.u32 %v2820, %v2823
      %v2825 = vsel %vm2619, %v2815, %v2824
      %v2827 = vshrl.u32 %v2609, 16
      %v2829 = vrot.slane %v2827, 2
      %v2830 = vshll.u32 %v2609, 16
      %v2832 = vrot.slane %v2830, 3
      %v2833 = vor.u32 %v2829, %v2832
      %v2834 = vsel %vm2619, %v2824, %v2833
      %v2836 = vshrl.u32 %v2610, 16
      %v2838 = vrot.slane %v2836, 2
      %v2839 = vshll.u32 %v2610, 16
      %v2841 = vrot.slane %v2839, 3
      %v2842 = vor.u32 %v2838, %v2841
      %v2843 = vsel %vm2619, %v2833, %v2842
      %v2845 = vshrl.u32 %v2611, 16
      %v2847 = vrot.slane %v2845, 2
      %v2848 = vshll.u32 %v2611, 16
      %v2850 = vrot.slane %v2848, 3
      %v2851 = vor.u32 %v2847, %v2850
      %v2852 = vsel %vm2619, %v2842, %v2851
      %v2854 = vshrl.u32 %v2612, 16
      %v2856 = vrot.slane %v2854, 2
      %v2857 = vshll.u32 %v2612, 16
      %v2859 = vrot.slane %v2857, 3
      %v2860 = vor.u32 %v2856, %v2859
      %v2861 = vsel %vm2619, %v2851, %v2860
      %v2863 = vshrl.u32 %v2613, 16
      %v2865 = vrot.slane %v2863, 2
      %v2866 = vshll.u32 %v2613, 16
      %v2868 = vrot.slane %v2866, 3
      %v2869 = vor.u32 %v2865, %v2868
      %v2870 = vsel %vm2619, %v2860, %v2869
      %v2872 = vshrl.u32 %v2614, 16
      %v2874 = vrot.slane %v2872, 2
      %v2875 = vshll.u32 %v2614, 16
      %v2877 = vrot.slane %v2875, 3
      %v2878 = vor.u32 %v2874, %v2877
      %v2879 = vsel %vm2619, %v2869, %v2878
      %v2881 = vshrl.u32 %v2615, 16
      %v2883 = vrot.slane %v2881, 2
      %v2884 = vshll.u32 %v2615, 16
      %v2886 = vrot.slane %v2884, 3
      %v2887 = vor.u32 %v2883, %v2886
      %v2888 = vsel %vm2619, %v2878, %v2887
      %v2890 = vshrl.u32 %v2616, 16
      %v2892 = vrot.slane %v2890, 2
      %v2893 = vshll.u32 %v2616, 16
      %v2895 = vrot.slane %v2893, 3
      %v2896 = vor.u32 %v2892, %v2895
      %v2897 = vsel %vm2619, %v2887, %v2896
      %v2899 = vshrl.u32 %v2617, 16
      %v2901 = vrot.slane %v2899, 2
      %v2902 = vshll.u32 %v2617, 16
      %v2904 = vrot.slane %v2902, 3
      %v2905 = vor.u32 %v2901, %v2904
      %v2906 = vsel %vm2619, %v2896, %v2905
      %v2908 = vshrl.u32 %v2618, 16
      %v2910 = vrot.slane %v2908, 2
      %v2911 = vshll.u32 %v2618, 16
      %v2913 = vrot.slane %v2911, 3
      %v2914 = vor.u32 %v2910, %v2913
      %v2915 = vsel %vm2619, %v2905, %v2914
      %2916 = vrot.lane.b32.xlu0 %v2636, 28
      %v2917 = vpop.permute.xlu0 %2916
      %2918 = vrot.lane.b32.xlu0 %v2645, 28
      %v2919 = vpop.permute.xlu0 %2918
      %2920 = vrot.lane.b32.xlu0 %v2654, 28
      %v2921 = vpop.permute.xlu0 %2920
      %2922 = vrot.lane.b32.xlu0 %v2663, 28
      %v2923 = vpop.permute.xlu0 %2922
      %2924 = vrot.lane.b32.xlu0 %v2672, 28
      %v2925 = vpop.permute.xlu0 %2924
      %2926 = vrot.lane.b32.xlu0 %v2681, 28
      %v2927 = vpop.permute.xlu0 %2926
      %2928 = vrot.lane.b32.xlu0 %v2690, 28
      %v2929 = vpop.permute.xlu0 %2928
      %2930 = vrot.lane.b32.xlu0 %v2699, 28
      %v2931 = vpop.permute.xlu0 %2930
      %2932 = vrot.lane.b32.xlu0 %v2708, 28
      %v2933 = vpop.permute.xlu0 %2932
      %2934 = vrot.lane.b32.xlu0 %v2717, 28
      %v2935 = vpop.permute.xlu0 %2934
      %2936 = vrot.lane.b32.xlu0 %v2726, 28
      %v2937 = vpop.permute.xlu0 %2936
      %2938 = vrot.lane.b32.xlu0 %v2735, 28
      %v2939 = vpop.permute.xlu0 %2938
      %2940 = vrot.lane.b32.xlu0 %v2744, 28
      %v2941 = vpop.permute.xlu0 %2940
      %2942 = vrot.lane.b32.xlu0 %v2753, 28
      %v2943 = vpop.permute.xlu0 %2942
      %2944 = vrot.lane.b32.xlu0 %v2762, 28
      %v2945 = vpop.permute.xlu0 %2944
      %2946 = vrot.lane.b32.xlu0 %v2771, 28
      %v2947 = vpop.permute.xlu0 %2946
      %2948 = vrot.lane.b32.xlu0 %v2780, 28
      %v2949 = vpop.permute.xlu0 %2948
      %2950 = vrot.lane.b32.xlu0 %v2789, 28
      %v2951 = vpop.permute.xlu0 %2950
      %2952 = vrot.lane.b32.xlu0 %v2798, 28
      %v2953 = vpop.permute.xlu0 %2952
      %2954 = vrot.lane.b32.xlu0 %v2807, 28
      %v2955 = vpop.permute.xlu0 %2954
      %2956 = vrot.lane.b32.xlu0 %v2816, 28
      %v2957 = vpop.permute.xlu0 %2956
      %2958 = vrot.lane.b32.xlu0 %v2825, 28
      %v2959 = vpop.permute.xlu0 %2958
      %2960 = vrot.lane.b32.xlu0 %v2834, 28
      %v2961 = vpop.permute.xlu0 %2960
      %2962 = vrot.lane.b32.xlu0 %v2843, 28
      %v2963 = vpop.permute.xlu0 %2962
      %2964 = vrot.lane.b32.xlu0 %v2852, 28
      %v2965 = vpop.permute.xlu0 %2964
      %2966 = vrot.lane.b32.xlu0 %v2861, 28
      %v2967 = vpop.permute.xlu0 %2966
      %2968 = vrot.lane.b32.xlu0 %v2870, 28
      %v2969 = vpop.permute.xlu0 %2968
      %2970 = vrot.lane.b32.xlu0 %v2879, 28
      %v2971 = vpop.permute.xlu0 %2970
      %2972 = vrot.lane.b32.xlu0 %v2888, 28
      %v2973 = vpop.permute.xlu0 %2972
      %2974 = vrot.lane.b32.xlu0 %v2897, 28
      %v2975 = vpop.permute.xlu0 %2974
      %2976 = vrot.lane.b32.xlu0 %v2906, 28
      %v2977 = vpop.permute.xlu0 %2976
      %2978 = vrot.lane.b32.xlu0 %v2915, 28
      %v2979 = vpop.permute.xlu0 %2978
      %vm3012 = vcmask 261344
      %3013 = vst.msk [vmem:[#allocation3] sm:$0xff] %vm3012, %v2917
      %3014 = vst.msk [vmem:[#allocation3 + $0x8] sm:$0xff] %vm3012, %v2919
      %3015 = vst.msk [vmem:[#allocation3 + $0x10] sm:$0xff] %vm3012, %v2921
      %3016 = vst.msk [vmem:[#allocation3 + $0x18] sm:$0xff] %vm3012, %v2923
      %3017 = vst.msk [vmem:[#allocation3 + $0x20] sm:$0xff] %vm3012, %v2925
      %3018 = vst.msk [vmem:[#allocation3 + $0x28] sm:$0xff] %vm3012, %v2927
      %3019 = vst.msk [vmem:[#allocation3 + $0x30] sm:$0xff] %vm3012, %v2929
      %3020 = vst.msk [vmem:[#allocation3 + $0x38] sm:$0xff] %vm3012, %v2931
      %3021 = vst.msk [vmem:[#allocation3 + $0x40] sm:$0xff] %vm3012, %v2933
      %3022 = vst.msk [vmem:[#allocation3 + $0x48] sm:$0xff] %vm3012, %v2935
      %3023 = vst.msk [vmem:[#allocation3 + $0x50] sm:$0xff] %vm3012, %v2937
      %3024 = vst.msk [vmem:[#allocation3 + $0x58] sm:$0xff] %vm3012, %v2939
      %3025 = vst.msk [vmem:[#allocation3 + $0x60] sm:$0xff] %vm3012, %v2941
      %3026 = vst.msk [vmem:[#allocation3 + $0x68] sm:$0xff] %vm3012, %v2943
      %3027 = vst.msk [vmem:[#allocation3 + $0x70] sm:$0xff] %vm3012, %v2945
      %3028 = vst.msk [vmem:[#allocation3 + $0x78] sm:$0xff] %vm3012, %v2947
      %3029 = vst.msk [vmem:[#allocation3 + $0x80] sm:$0xff] %vm3012, %v2949
      %3030 = vst.msk [vmem:[#allocation3 + $0x88] sm:$0xff] %vm3012, %v2951
      %3031 = vst.msk [vmem:[#allocation3 + $0x90] sm:$0xff] %vm3012, %v2953
      %3032 = vst.msk [vmem:[#allocation3 + $0x98] sm:$0xff] %vm3012, %v2955
      %3033 = vst.msk [vmem:[#allocation3 + $0xa0] sm:$0xff] %vm3012, %v2957
      %3034 = vst.msk [vmem:[#allocation3 + $0xa8] sm:$0xff] %vm3012, %v2959
      %3035 = vst.msk [vmem:[#allocation3 + $0xb0] sm:$0xff] %vm3012, %v2961
      %3036 = vst.msk [vmem:[#allocation3 + $0xb8] sm:$0xff] %vm3012, %v2963
      %3037 = vst.msk [vmem:[#allocation3 + $0xc0] sm:$0xff] %vm3012, %v2965
      %3038 = vst.msk [vmem:[#allocation3 + $0xc8] sm:$0xff] %vm3012, %v2967
      %3039 = vst.msk [vmem:[#allocation3 + $0xd0] sm:$0xff] %vm3012, %v2969
      %3040 = vst.msk [vmem:[#allocation3 + $0xd8] sm:$0xff] %vm3012, %v2971
      %3041 = vst.msk [vmem:[#allocation3 + $0xe0] sm:$0xff] %vm3012, %v2973
      %3042 = vst.msk [vmem:[#allocation3 + $0xe8] sm:$0xff] %vm3012, %v2975
      %3043 = vst.msk [vmem:[#allocation3 + $0xf0] sm:$0xff] %vm3012, %v2977
      %3044 = vst.msk [vmem:[#allocation3 + $0xf8] sm:$0xff] %vm3012, %v2979
      %v3045 = vld [vmem:[#allocation2 + $0x10] sm:$0xf8]
      %v3046 = vld [vmem:[#allocation2 + $0x18] sm:$0xff]
      %v3047 = vld [vmem:[#allocation2 + $0x20] sm:$0xff]
      %v3048 = vld [vmem:[#allocation2 + $0x28] sm:$0xff]
      %v3049 = vld [vmem:[#allocation2 + $0x30] sm:$0xff]
      %v3050 = vld [vmem:[#allocation2 + $0x38] sm:$0xff]
      %v3051 = vld [vmem:[#allocation2 + $0x40] sm:$0xff]
      %v3052 = vld [vmem:[#allocation2 + $0x48] sm:$0xff]
      %v3053 = vld [vmem:[#allocation2 + $0x50] sm:$0xff]
      %v3054 = vld [vmem:[#allocation2 + $0x58] sm:$0xff]
      %v3055 = vld [vmem:[#allocation2 + $0x60] sm:$0xff]
      %v3056 = vld [vmem:[#allocation2 + $0x68] sm:$0xff]
      %v3057 = vld [vmem:[#allocation2 + $0x70] sm:$0xff]
      %v3058 = vld [vmem:[#allocation2 + $0x78] sm:$0xff]
      %v3059 = vld [vmem:[#allocation2 + $0x80] sm:$0xff]
      %v3060 = vld [vmem:[#allocation2 + $0x88] sm:$0xff]
      %v3061 = vld [vmem:[#allocation2 + $0x90] sm:$0xff]
      %v3062 = vld [vmem:[#allocation2 + $0x98] sm:$0xff]
      %v3063 = vld [vmem:[#allocation2 + $0xa0] sm:$0xff]
      %v3064 = vld [vmem:[#allocation2 + $0xa8] sm:$0xff]
      %v3065 = vld [vmem:[#allocation2 + $0xb0] sm:$0xff]
      %v3066 = vld [vmem:[#allocation2 + $0xb8] sm:$0xff]
      %v3067 = vld [vmem:[#allocation2 + $0xc0] sm:$0xff]
      %v3068 = vld [vmem:[#allocation2 + $0xc8] sm:$0xff]
      %v3069 = vld [vmem:[#allocation2 + $0xd0] sm:$0xff]
      %v3070 = vld [vmem:[#allocation2 + $0xd8] sm:$0xff]
      %v3071 = vld [vmem:[#allocation2 + $0xe0] sm:$0xff]
      %v3072 = vld [vmem:[#allocation2 + $0xe8] sm:$0xff]
      %v3073 = vld [vmem:[#allocation2 + $0xf0] sm:$0xff]
      %v3074 = vld [vmem:[#allocation2 + $0xf8] sm:$0xff]
      %v3075 = vld [vmem:[#allocation2 + $0x100] sm:$0xff]
      %v3076 = vld [vmem:[#allocation2 + $0x108] sm:$0xff]
      %v3077 = vld [vmem:[#allocation2 + $0x110] sm:$0x7]
      %vm3111 = vcmask 1044480
      %v3112 = vrot.slane %v3045, 3
      %v3113 = vrot.slane %v3046, 3
      %v3114 = vsel %vm3111, %v3112, %v3113
      %v3115 = vrot.slane %v3047, 3
      %v3116 = vsel %vm3111, %v3113, %v3115
      %v3117 = vrot.slane %v3048, 3
      %v3118 = vsel %vm3111, %v3115, %v3117
      %v3119 = vrot.slane %v3049, 3
      %v3120 = vsel %vm3111, %v3117, %v3119
      %v3121 = vrot.slane %v3050, 3
      %v3122 = vsel %vm3111, %v3119, %v3121
      %v3123 = vrot.slane %v3051, 3
      %v3124 = vsel %vm3111, %v3121, %v3123
      %v3125 = vrot.slane %v3052, 3
      %v3126 = vsel %vm3111, %v3123, %v3125
      %v3127 = vrot.slane %v3053, 3
      %v3128 = vsel %vm3111, %v3125, %v3127
      %v3129 = vrot.slane %v3054, 3
      %v3130 = vsel %vm3111, %v3127, %v3129
      %v3131 = vrot.slane %v3055, 3
      %v3132 = vsel %vm3111, %v3129, %v3131
      %v3133 = vrot.slane %v3056, 3
      %v3134 = vsel %vm3111, %v3131, %v3133
      %v3135 = vrot.slane %v3057, 3
      %v3136 = vsel %vm3111, %v3133, %v3135
      %v3137 = vrot.slane %v3058, 3
      %v3138 = vsel %vm3111, %v3135, %v3137
      %v3139 = vrot.slane %v3059, 3
      %v3140 = vsel %vm3111, %v3137, %v3139
      %v3141 = vrot.slane %v3060, 3
      %v3142 = vsel %vm3111, %v3139, %v3141
      %v3143 = vrot.slane %v3061, 3
      %v3144 = vsel %vm3111, %v3141, %v3143
      %v3145 = vrot.slane %v3062, 3
      %v3146 = vsel %vm3111, %v3143, %v3145
      %v3147 = vrot.slane %v3063, 3
      %v3148 = vsel %vm3111, %v3145, %v3147
      %v3149 = vrot.slane %v3064, 3
      %v3150 = vsel %vm3111, %v3147, %v3149
      %v3151 = vrot.slane %v3065, 3
      %v3152 = vsel %vm3111, %v3149, %v3151
      %v3153 = vrot.slane %v3066, 3
      %v3154 = vsel %vm3111, %v3151, %v3153
      %v3155 = vrot.slane %v3067, 3
      %v3156 = vsel %vm3111, %v3153, %v3155
      %v3157 = vrot.slane %v3068, 3
      %v3158 = vsel %vm3111, %v3155, %v3157
      %v3159 = vrot.slane %v3069, 3
      %v3160 = vsel %vm3111, %v3157, %v3159
      %v3161 = vrot.slane %v3070, 3
      %v3162 = vsel %vm3111, %v3159, %v3161
      %v3163 = vrot.slane %v3071, 3
      %v3164 = vsel %vm3111, %v3161, %v3163
      %v3165 = vrot.slane %v3072, 3
      %v3166 = vsel %vm3111, %v3163, %v3165
      %v3167 = vrot.slane %v3073, 3
      %v3168 = vsel %vm3111, %v3165, %v3167
      %v3169 = vrot.slane %v3074, 3
      %v3170 = vsel %vm3111, %v3167, %v3169
      %v3171 = vrot.slane %v3075, 3
      %v3172 = vsel %vm3111, %v3169, %v3171
      %v3173 = vrot.slane %v3076, 3
      %v3174 = vsel %vm3111, %v3171, %v3173
      %v3175 = vrot.slane %v3077, 3
      %v3176 = vsel %vm3111, %v3173, %v3175
      %3177 = vrot.lane.b32.xlu0 %v3114, 32
      %v3178 = vpop.permute.xlu0 %3177
      %3179 = vrot.lane.b32.xlu0 %v3116, 32
      %v3180 = vpop.permute.xlu0 %3179
      %3181 = vrot.lane.b32.xlu0 %v3118, 32
      %v3182 = vpop.permute.xlu0 %3181
      %3183 = vrot.lane.b32.xlu0 %v3120, 32
      %v3184 = vpop.permute.xlu0 %3183
      %3185 = vrot.lane.b32.xlu0 %v3122, 32
      %v3186 = vpop.permute.xlu0 %3185
      %3187 = vrot.lane.b32.xlu0 %v3124, 32
      %v3188 = vpop.permute.xlu0 %3187
      %3189 = vrot.lane.b32.xlu0 %v3126, 32
      %v3190 = vpop.permute.xlu0 %3189
      %3191 = vrot.lane.b32.xlu0 %v3128, 32
      %v3192 = vpop.permute.xlu0 %3191
      %3193 = vrot.lane.b32.xlu0 %v3130, 32
      %v3194 = vpop.permute.xlu0 %3193
      %3195 = vrot.lane.b32.xlu0 %v3132, 32
      %v3196 = vpop.permute.xlu0 %3195
      %3197 = vrot.lane.b32.xlu0 %v3134, 32
      %v3198 = vpop.permute.xlu0 %3197
      %3199 = vrot.lane.b32.xlu0 %v3136, 32
      %v3200 = vpop.permute.xlu0 %3199
      %3201 = vrot.lane.b32.xlu0 %v3138, 32
      %v3202 = vpop.permute.xlu0 %3201
      %3203 = vrot.lane.b32.xlu0 %v3140, 32
      %v3204 = vpop.permute.xlu0 %3203
      %3205 = vrot.lane.b32.xlu0 %v3142, 32
      %v3206 = vpop.permute.xlu0 %3205
      %3207 = vrot.lane.b32.xlu0 %v3144, 32
      %v3208 = vpop.permute.xlu0 %3207
      %3209 = vrot.lane.b32.xlu0 %v3146, 32
      %v3210 = vpop.permute.xlu0 %3209
      %3211 = vrot.lane.b32.xlu0 %v3148, 32
      %v3212 = vpop.permute.xlu0 %3211
      %3213 = vrot.lane.b32.xlu0 %v3150, 32
      %v3214 = vpop.permute.xlu0 %3213
      %3215 = vrot.lane.b32.xlu0 %v3152, 32
      %v3216 = vpop.permute.xlu0 %3215
      %3217 = vrot.lane.b32.xlu0 %v3154, 32
      %v3218 = vpop.permute.xlu0 %3217
      %3219 = vrot.lane.b32.xlu0 %v3156, 32
      %v3220 = vpop.permute.xlu0 %3219
      %3221 = vrot.lane.b32.xlu0 %v3158, 32
      %v3222 = vpop.permute.xlu0 %3221
      %3223 = vrot.lane.b32.xlu0 %v3160, 32
      %v3224 = vpop.permute.xlu0 %3223
      %3225 = vrot.lane.b32.xlu0 %v3162, 32
      %v3226 = vpop.permute.xlu0 %3225
      %3227 = vrot.lane.b32.xlu0 %v3164, 32
      %v3228 = vpop.permute.xlu0 %3227
      %3229 = vrot.lane.b32.xlu0 %v3166, 32
      %v3230 = vpop.permute.xlu0 %3229
      %3231 = vrot.lane.b32.xlu0 %v3168, 32
      %v3232 = vpop.permute.xlu0 %3231
      %3233 = vrot.lane.b32.xlu0 %v3170, 32
      %v3234 = vpop.permute.xlu0 %3233
      %3235 = vrot.lane.b32.xlu0 %v3172, 32
      %v3236 = vpop.permute.xlu0 %3235
      %3237 = vrot.lane.b32.xlu0 %v3174, 32
      %v3238 = vpop.permute.xlu0 %3237
      %3239 = vrot.lane.b32.xlu0 %v3176, 32
      %v3240 = vpop.permute.xlu0 %3239
      %vm3273 = vcmask 294144
      %3274 = vst.msk [vmem:[#allocation3] sm:$0xff] %vm3273, %v3178
      %3275 = vst.msk [vmem:[#allocation3 + $0x8] sm:$0xff] %vm3273, %v3180
      %3276 = vst.msk [vmem:[#allocation3 + $0x10] sm:$0xff] %vm3273, %v3182
      %3277 = vst.msk [vmem:[#allocation3 + $0x18] sm:$0xff] %vm3273, %v3184
      %3278 = vst.msk [vmem:[#allocation3 + $0x20] sm:$0xff] %vm3273, %v3186
      %3279 = vst.msk [vmem:[#allocation3 + $0x28] sm:$0xff] %vm3273, %v3188
      %3280 = vst.msk [vmem:[#allocation3 + $0x30] sm:$0xff] %vm3273, %v3190
      %3281 = vst.msk [vmem:[#allocation3 + $0x38] sm:$0xff] %vm3273, %v3192
      %3282 = vst.msk [vmem:[#allocation3 + $0x40] sm:$0xff] %vm3273, %v3194
      %3283 = vst.msk [vmem:[#allocation3 + $0x48] sm:$0xff] %vm3273, %v3196
      %3284 = vst.msk [vmem:[#allocation3 + $0x50] sm:$0xff] %vm3273, %v3198
      %3285 = vst.msk [vmem:[#allocation3 + $0x58] sm:$0xff] %vm3273, %v3200
      %3286 = vst.msk [vmem:[#allocation3 + $0x60] sm:$0xff] %vm3273, %v3202
      %3287 = vst.msk [vmem:[#allocation3 + $0x68] sm:$0xff] %vm3273, %v3204
      %3288 = vst.msk [vmem:[#allocation3 + $0x70] sm:$0xff] %vm3273, %v3206
      %3289 = vst.msk [vmem:[#allocation3 + $0x78] sm:$0xff] %vm3273, %v3208
      %3290 = vst.msk [vmem:[#allocation3 + $0x80] sm:$0xff] %vm3273, %v3210
      %3291 = vst.msk [vmem:[#allocation3 + $0x88] sm:$0xff] %vm3273, %v3212
      %3292 = vst.msk [vmem:[#allocation3 + $0x90] sm:$0xff] %vm3273, %v3214
      %3293 = vst.msk [vmem:[#allocation3 + $0x98] sm:$0xff] %vm3273, %v3216
      %3294 = vst.msk [vmem:[#allocation3 + $0xa0] sm:$0xff] %vm3273, %v3218
      %3295 = vst.msk [vmem:[#allocation3 + $0xa8] sm:$0xff] %vm3273, %v3220
      %3296 = vst.msk [vmem:[#allocation3 + $0xb0] sm:$0xff] %vm3273, %v3222
      %3297 = vst.msk [vmem:[#allocation3 + $0xb8] sm:$0xff] %vm3273, %v3224
      %3298 = vst.msk [vmem:[#allocation3 + $0xc0] sm:$0xff] %vm3273, %v3226
      %3299 = vst.msk [vmem:[#allocation3 + $0xc8] sm:$0xff] %vm3273, %v3228
      %3300 = vst.msk [vmem:[#allocation3 + $0xd0] sm:$0xff] %vm3273, %v3230
      %3301 = vst.msk [vmem:[#allocation3 + $0xd8] sm:$0xff] %vm3273, %v3232
      %3302 = vst.msk [vmem:[#allocation3 + $0xe0] sm:$0xff] %vm3273, %v3234
      %3303 = vst.msk [vmem:[#allocation3 + $0xe8] sm:$0xff] %vm3273, %v3236
      %3304 = vst.msk [vmem:[#allocation3 + $0xf0] sm:$0xff] %vm3273, %v3238
      %3305 = vst.msk [vmem:[#allocation3 + $0xf8] sm:$0xff] %vm3273, %v3240
      %v3306 = vld [vmem:[#allocation3] sm:$0xff]
      %v3307 = vld [vmem:[#allocation3 + $0x8] sm:$0xff]
      %v3308 = vld [vmem:[#allocation3 + $0x10] sm:$0xff]
      %v3309 = vld [vmem:[#allocation3 + $0x18] sm:$0xff]
      %v3310 = vld [vmem:[#allocation3 + $0x20] sm:$0xff]
      %v3311 = vld [vmem:[#allocation3 + $0x28] sm:$0xff]
      %v3312 = vld [vmem:[#allocation3 + $0x30] sm:$0xff]
      %v3313 = vld [vmem:[#allocation3 + $0x38] sm:$0xff]
      %v3314 = vld [vmem:[#allocation3 + $0x40] sm:$0xff]
      %v3315 = vld [vmem:[#allocation3 + $0x48] sm:$0xff]
      %v3316 = vld [vmem:[#allocation3 + $0x50] sm:$0xff]
      %v3317 = vld [vmem:[#allocation3 + $0x58] sm:$0xff]
      %v3318 = vld [vmem:[#allocation3 + $0x60] sm:$0xff]
      %v3319 = vld [vmem:[#allocation3 + $0x68] sm:$0xff]
      %v3320 = vld [vmem:[#allocation3 + $0x70] sm:$0xff]
      %v3321 = vld [vmem:[#allocation3 + $0x78] sm:$0xff]
      %v3322 = vld [vmem:[#allocation3 + $0x80] sm:$0xff]
      %v3323 = vld [vmem:[#allocation3 + $0x88] sm:$0xff]
      %v3324 = vld [vmem:[#allocation3 + $0x90] sm:$0xff]
      %v3325 = vld [vmem:[#allocation3 + $0x98] sm:$0xff]
      %v3326 = vld [vmem:[#allocation3 + $0xa0] sm:$0xff]
      %v3327 = vld [vmem:[#allocation3 + $0xa8] sm:$0xff]
      %v3328 = vld [vmem:[#allocation3 + $0xb0] sm:$0xff]
      %v3329 = vld [vmem:[#allocation3 + $0xb8] sm:$0xff]
      %v3330 = vld [vmem:[#allocation3 + $0xc0] sm:$0xff]
      %v3331 = vld [vmem:[#allocation3 + $0xc8] sm:$0xff]
      %v3332 = vld [vmem:[#allocation3 + $0xd0] sm:$0xff]
      %v3333 = vld [vmem:[#allocation3 + $0xd8] sm:$0xff]
      %v3334 = vld [vmem:[#allocation3 + $0xe0] sm:$0xff]
      %v3335 = vld [vmem:[#allocation3 + $0xe8] sm:$0xff]
      %v3336 = vld [vmem:[#allocation3 + $0xf0] sm:$0xff]
      %v3337 = vld [vmem:[#allocation3 + $0xf8] sm:$0xff]
      %v3338 = vld [vmem:[%s259] sm:$0xf]
      %v3339 = vld [vmem:[%s259 + $0x4] sm:$0xf]
      %v3340 = vld [vmem:[%s259 + $0x8] sm:$0xf]
      %v3341 = vld [vmem:[%s259 + $0xc] sm:$0xf]
      %v3342 = vld [vmem:[%s259 + $0x10] sm:$0x3]
      %v3343 = vld [vmem:[%s262] sm:$0x1]
      %v3345 = vlaneseq
      %v3346 = vshrl.u32 %v3345, 7
      %v3347 = vsub.s32 0, %v3346
      %v3348 = vrot.slane %v3343, %v3347
      %v3355 = vunpack.c.l.b16 %v3338
      %v3356 = vunpack.c.l.b16 %v3339
      %v3357 = vunpack.c.l.b16 %v3340
      %v3358 = vunpack.c.l.b16 %v3341
      %v3359 = vunpack.c.l.b16 %v3342
      %v3360 = vpack.c.b16 %v3356, %v3355
      %v3361 = vpack.c.b16 %v3358, %v3357
      %v3362 = vpack.c.b16 %v3359, %v3359
      %vm3365 = vcmask 293888
      %v3367 = vsel %vm3365, %v3306, 0
      %v3370 = vsel %vm3365, %v3307, 0
      %v3373 = vsel %vm3365, %v3308, 0
      %v3376 = vsel %vm3365, %v3309, 0
      %v3379 = vsel %vm3365, %v3310, 0
      %v3382 = vsel %vm3365, %v3311, 0
      %v3385 = vsel %vm3365, %v3312, 0
      %v3388 = vsel %vm3365, %v3313, 0
      %v3391 = vsel %vm3365, %v3314, 0
      %v3394 = vsel %vm3365, %v3315, 0
      %v3397 = vsel %vm3365, %v3316, 0
      %v3400 = vsel %vm3365, %v3317, 0
      %v3403 = vsel %vm3365, %v3318, 0
      %v3406 = vsel %vm3365, %v3319, 0
      %v3409 = vsel %vm3365, %v3320, 0
      %v3412 = vsel %vm3365, %v3321, 0
      %v3415 = vsel %vm3365, %v3322, 0
      %v3418 = vsel %vm3365, %v3323, 0
      %v3421 = vsel %vm3365, %v3324, 0
      %v3424 = vsel %vm3365, %v3325, 0
      %v3427 = vsel %vm3365, %v3326, 0
      %v3430 = vsel %vm3365, %v3327, 0
      %v3433 = vsel %vm3365, %v3328, 0
      %v3436 = vsel %vm3365, %v3329, 0
      %v3439 = vsel %vm3365, %v3330, 0
      %v3442 = vsel %vm3365, %v3331, 0
      %v3445 = vsel %vm3365, %v3332, 0
      %v3448 = vsel %vm3365, %v3333, 0
      %v3451 = vsel %vm3365, %v3334, 0
      %v3454 = vsel %vm3365, %v3335, 0
      %v3457 = vsel %vm3365, %v3336, 0
      %v3460 = vsel %vm3365, %v3337, 0
      %vm3462 = vcmask 1041408
      %v3464 = vsel %vm3462, %v3362, 0
      %3466 = vmatprep.subr.bf16.mxu0 0
      %3467 = vmatpush1.bf16.msra.mxu0 %v3360
      %3468 = vmatprep.subr.bf16.mxu0 0
      %3469 = vmatpush1.bf16.msra.mxu0 %v3361
      %3470 = vmatprep.subr.bf16.mxu0 0
      %3471 = vmatpush1.bf16.msra.mxu0 %v3464
      %3472 = vmatprep.subr.bf16.mxu0 0
      %3473 = vmatpush1.bf16.msra.mxu0 0
      %3474 = vmatprep.subr.bf16.mxu0 0
      %3475 = vmatpush1.bf16.msra.mxu0 0
      %3476 = vmatprep.subr.bf16.mxu0 0
      %3477 = vmatpush1.bf16.msra.mxu0 0
      %3478 = vmatprep.subr.bf16.mxu0 0
      %3479 = vmatpush1.bf16.msra.mxu0 0
      %3480 = vmatprep.subr.bf16.mxu0 0
      %3481 = vmatpush1.bf16.msra.mxu0 0
      %3482 = vmatprep.subr.bf16.mxu0 0
      %3483 = vmatpush1.bf16.msra.mxu0 0
      %3484 = vmatprep.subr.bf16.mxu0 0
      %3485 = vmatpush1.bf16.msra.mxu0 0
      %3486 = vmatprep.subr.bf16.mxu0 0
      %3487 = vmatpush1.bf16.msra.mxu0 0
      %3488 = vmatprep.subr.bf16.mxu0 0
      %3489 = vmatpush1.bf16.msra.mxu0 0
      %3490 = vmatprep.subr.bf16.mxu0 0
      %3491 = vmatpush1.bf16.msra.mxu0 0
      %3492 = vmatprep.subr.bf16.mxu0 0
      %3493 = vmatpush1.bf16.msra.mxu0 0
      %3494 = vmatprep.subr.bf16.mxu0 0
      %3495 = vmatpush1.bf16.msra.mxu0 0
      %3496 = vmatprep.subr.bf16.mxu0 0
      %3497 = vmatpush1.bf16.msra.mxu0 0
      %3498 = vmatprep.mubr.bf16.mxu0 0
      %3499 = vmatmul.mubr.bf16.gmra.mrb[0].mxu0 %v3367
      %v3500 = vpop.f32.mrb[0].mxu0
      %v3501 = vadd.f32 %v3348, %v3500
      %v3502 = vpop.f32.mrb[0].mxu0
      %v3503 = vpop.f32.mrb[0].mxu0
      %v3504 = vadd.f32 %v3348, %v3503
      %v3505 = vpop.f32.mrb[0].mxu0
      %3506 = vmatprep.mubr.bf16.mxu0 0
      %3507 = vmatmul.mubr.bf16.gmra.mrb[0].mxu0 %v3370
      %v3508 = vpop.f32.mrb[0].mxu0
      %v3509 = vadd.f32 %v3348, %v3508
      %v3510 = vpop.f32.mrb[0].mxu0
      %v3511 = vpop.f32.mrb[0].mxu0
      %v3512 = vadd.f32 %v3348, %v3511
      %v3513 = vpop.f32.mrb[0].mxu0
      %3514 = vmatprep.mubr.bf16.mxu0 0
      %3515 = vmatmul.mubr.bf16.gmra.mrb[0].mxu0 %v3373
      %v3516 = vpop.f32.mrb[0].mxu0
      %v3517 = vadd.f32 %v3348, %v3516
      %v3518 = vpop.f32.mrb[0].mxu0
      %v3519 = vpop.f32.mrb[0].mxu0
      %v3520 = vadd.f32 %v3348, %v3519
      %v3521 = vpop.f32.mrb[0].mxu0
      %3522 = vmatprep.mubr.bf16.mxu0 0
      %3523 = vmatmul.mubr.bf16.gmra.mrb[0].mxu0 %v3376
      %v3524 = vpop.f32.mrb[0].mxu0
      %v3525 = vadd.f32 %v3348, %v3524
      %v3526 = vpop.f32.mrb[0].mxu0
      %v3527 = vpop.f32.mrb[0].mxu0
      %v3528 = vadd.f32 %v3348, %v3527
      %v3529 = vpop.f32.mrb[0].mxu0
      %3530 = vmatprep.mubr.bf16.mxu0 0
      %3531 = vmatmul.mubr.bf16.gmra.mrb[0].mxu0 %v3379
      %v3532 = vpop.f32.mrb[0].mxu0
      %v3533 = vadd.f32 %v3348, %v3532
      %v3534 = vpop.f32.mrb[0].mxu0
      %v3535 = vpop.f32.mrb[0].mxu0
      %v3536 = vadd.f32 %v3348, %v3535
      %v3537 = vpop.f32.mrb[0].mxu0
      %3538 = vmatprep.mubr.bf16.mxu0 0
      %3539 = vmatmul.mubr.bf16.gmra.mrb[0].mxu0 %v3382
      %v3540 = vpop.f32.mrb[0].mxu0
      %v3541 = vadd.f32 %v3348, %v3540
      %v3542 = vpop.f32.mrb[0].mxu0
      %v3543 = vpop.f32.mrb[0].mxu0
      %v3544 = vadd.f32 %v3348, %v3543
      %v3545 = vpop.f32.mrb[0].mxu0
      %3546 = vmatprep.mubr.bf16.mxu0 0
      %3547 = vmatmul.mubr.bf16.gmra.mrb[0].mxu0 %v3385
      %v3548 = vpop.f32.mrb[0].mxu0
      %v3549 = vadd.f32 %v3348, %v3548
      %v3550 = vpop.f32.mrb[0].mxu0
      %v3551 = vpop.f32.mrb[0].mxu0
      %v3552 = vadd.f32 %v3348, %v3551
      %v3553 = vpop.f32.mrb[0].mxu0
      %3554 = vmatprep.mubr.bf16.mxu0 0
      %3555 = vmatmul.mubr.bf16.gmra.mrb[0].mxu0 %v3388
      %v3556 = vpop.f32.mrb[0].mxu0
      %v3557 = vadd.f32 %v3348, %v3556
      %v3558 = vpop.f32.mrb[0].mxu0
      %v3559 = vpop.f32.mrb[0].mxu0
      %v3560 = vadd.f32 %v3348, %v3559
      %v3561 = vpop.f32.mrb[0].mxu0
      %3562 = vmatprep.mubr.bf16.mxu0 0
      %3563 = vmatmul.mubr.bf16.gmra.mrb[0].mxu0 %v3391
      %v3564 = vpop.f32.mrb[0].mxu0
      %v3565 = vadd.f32 %v3348, %v3564
      %v3566 = vpop.f32.mrb[0].mxu0
      %v3567 = vpop.f32.mrb[0].mxu0
      %v3568 = vadd.f32 %v3348, %v3567
      %v3569 = vpop.f32.mrb[0].mxu0
      %3570 = vmatprep.mubr.bf16.mxu0 0
      %3571 = vmatmul.mubr.bf16.gmra.mrb[0].mxu0 %v3394
      %v3572 = vpop.f32.mrb[0].mxu0
      %v3573 = vadd.f32 %v3348, %v3572
      %v3574 = vpop.f32.mrb[0].mxu0
      %v3575 = vpop.f32.mrb[0].mxu0
      %v3576 = vadd.f32 %v3348, %v3575
      %v3577 = vpop.f32.mrb[0].mxu0
      %3578 = vmatprep.mubr.bf16.mxu0 0
      %3579 = vmatmul.mubr.bf16.gmra.mrb[0].mxu0 %v3397
      %v3580 = vpop.f32.mrb[0].mxu0
      %v3581 = vadd.f32 %v3348, %v3580
      %v3582 = vpop.f32.mrb[0].mxu0
      %v3583 = vpop.f32.mrb[0].mxu0
      %v3584 = vadd.f32 %v3348, %v3583
      %v3585 = vpop.f32.mrb[0].mxu0
      %3586 = vmatprep.mubr.bf16.mxu0 0
      %3587 = vmatmul.mubr.bf16.gmra.mrb[0].mxu0 %v3400
      %v3588 = vpop.f32.mrb[0].mxu0
      %v3589 = vadd.f32 %v3348, %v3588
      %v3590 = vpop.f32.mrb[0].mxu0
      %v3591 = vpop.f32.mrb[0].mxu0
      %v3592 = vadd.f32 %v3348, %v3591
      %v3593 = vpop.f32.mrb[0].mxu0
      %3594 = vmatprep.mubr.bf16.mxu0 0
      %3595 = vmatmul.mubr.bf16.gmra.mrb[0].mxu0 %v3403
      %v3596 = vpop.f32.mrb[0].mxu0
      %v3597 = vadd.f32 %v3348, %v3596
      %v3598 = vpop.f32.mrb[0].mxu0
      %v3599 = vpop.f32.mrb[0].mxu0
      %v3600 = vadd.f32 %v3348, %v3599
      %v3601 = vpop.f32.mrb[0].mxu0
      %3602 = vmatprep.mubr.bf16.mxu0 0
      %3603 = vmatmul.mubr.bf16.gmra.mrb[0].mxu0 %v3406
      %v3604 = vpop.f32.mrb[0].mxu0
      %v3605 = vadd.f32 %v3348, %v3604
      %v3606 = vpop.f32.mrb[0].mxu0
      %v3607 = vpop.f32.mrb[0].mxu0
      %v3608 = vadd.f32 %v3348, %v3607
      %v3609 = vpop.f32.mrb[0].mxu0
      %3610 = vmatprep.mubr.bf16.mxu0 0
      %3611 = vmatmul.mubr.bf16.gmra.mrb[0].mxu0 %v3409
      %v3612 = vpop.f32.mrb[0].mxu0
      %v3613 = vadd.f32 %v3348, %v3612
      %v3614 = vpop.f32.mrb[0].mxu0
      %v3615 = vpop.f32.mrb[0].mxu0
      %v3616 = vadd.f32 %v3348, %v3615
      %v3617 = vpop.f32.mrb[0].mxu0
      %3618 = vmatprep.mubr.bf16.mxu0 0
      %3619 = vmatmul.mubr.bf16.gmra.mrb[0].mxu0 %v3412
      %v3620 = vpop.f32.mrb[0].mxu0
      %v3621 = vadd.f32 %v3348, %v3620
      %v3622 = vpop.f32.mrb[0].mxu0
      %v3623 = vpop.f32.mrb[0].mxu0
      %v3624 = vadd.f32 %v3348, %v3623
      %v3625 = vpop.f32.mrb[0].mxu0
      %3626 = vmatprep.mubr.bf16.mxu0 0
      %3627 = vmatmul.mubr.bf16.gmra.mrb[0].mxu0 %v3415
      %v3628 = vpop.f32.mrb[0].mxu0
      %v3629 = vadd.f32 %v3348, %v3628
      %v3630 = vpop.f32.mrb[0].mxu0
      %v3631 = vpop.f32.mrb[0].mxu0
      %v3632 = vadd.f32 %v3348, %v3631
      %v3633 = vpop.f32.mrb[0].mxu0
      %3634 = vmatprep.mubr.bf16.mxu0 0
      %3635 = vmatmul.mubr.bf16.gmra.mrb[0].mxu0 %v3418
      %v3636 = vpop.f32.mrb[0].mxu0
      %v3637 = vadd.f32 %v3348, %v3636
      %v3638 = vpop.f32.mrb[0].mxu0
      %v3639 = vpop.f32.mrb[0].mxu0
      %v3640 = vadd.f32 %v3348, %v3639
      %v3641 = vpop.f32.mrb[0].mxu0
      %3642 = vmatprep.mubr.bf16.mxu0 0
      %3643 = vmatmul.mubr.bf16.gmra.mrb[0].mxu0 %v3421
      %v3644 = vpop.f32.mrb[0].mxu0
      %v3645 = vadd.f32 %v3348, %v3644
      %v3646 = vpop.f32.mrb[0].mxu0
      %v3647 = vpop.f32.mrb[0].mxu0
      %v3648 = vadd.f32 %v3348, %v3647
      %v3649 = vpop.f32.mrb[0].mxu0
      %3650 = vmatprep.mubr.bf16.mxu0 0
      %3651 = vmatmul.mubr.bf16.gmra.mrb[0].mxu0 %v3424
      %v3652 = vpop.f32.mrb[0].mxu0
      %v3653 = vadd.f32 %v3348, %v3652
      %v3654 = vpop.f32.mrb[0].mxu0
      %v3655 = vpop.f32.mrb[0].mxu0
      %v3656 = vadd.f32 %v3348, %v3655
      %v3657 = vpop.f32.mrb[0].mxu0
      %3658 = vmatprep.mubr.bf16.mxu0 0
      %3659 = vmatmul.mubr.bf16.gmra.mrb[0].mxu0 %v3427
      %v3660 = vpop.f32.mrb[0].mxu0
      %v3661 = vadd.f32 %v3348, %v3660
      %v3662 = vpop.f32.mrb[0].mxu0
      %v3663 = vpop.f32.mrb[0].mxu0
      %v3664 = vadd.f32 %v3348, %v3663
      %v3665 = vpop.f32.mrb[0].mxu0
      %3666 = vmatprep.mubr.bf16.mxu0 0
      %3667 = vmatmul.mubr.bf16.gmra.mrb[0].mxu0 %v3430
      %v3668 = vpop.f32.mrb[0].mxu0
      %v3669 = vadd.f32 %v3348, %v3668
      %v3670 = vpop.f32.mrb[0].mxu0
      %v3671 = vpop.f32.mrb[0].mxu0
      %v3672 = vadd.f32 %v3348, %v3671
      %v3673 = vpop.f32.mrb[0].mxu0
      %3674 = vmatprep.mubr.bf16.mxu0 0
      %3675 = vmatmul.mubr.bf16.gmra.mrb[0].mxu0 %v3433
      %v3676 = vpop.f32.mrb[0].mxu0
      %v3677 = vadd.f32 %v3348, %v3676
      %v3678 = vpop.f32.mrb[0].mxu0
      %v3679 = vpop.f32.mrb[0].mxu0
      %v3680 = vadd.f32 %v3348, %v3679
      %v3681 = vpop.f32.mrb[0].mxu0
      %3682 = vmatprep.mubr.bf16.mxu0 0
      %3683 = vmatmul.mubr.bf16.gmra.mrb[0].mxu0 %v3436
      %v3684 = vpop.f32.mrb[0].mxu0
      %v3685 = vadd.f32 %v3348, %v3684
      %v3686 = vpop.f32.mrb[0].mxu0
      %v3687 = vpop.f32.mrb[0].mxu0
      %v3688 = vadd.f32 %v3348, %v3687
      %v3689 = vpop.f32.mrb[0].mxu0
      %3690 = vmatprep.mubr.bf16.mxu0 0
      %3691 = vmatmul.mubr.bf16.gmra.mrb[0].mxu0 %v3439
      %v3692 = vpop.f32.mrb[0].mxu0
      %v3693 = vadd.f32 %v3348, %v3692
      %v3694 = vpop.f32.mrb[0].mxu0
      %v3695 = vpop.f32.mrb[0].mxu0
      %v3696 = vadd.f32 %v3348, %v3695
      %v3697 = vpop.f32.mrb[0].mxu0
      %3698 = vmatprep.mubr.bf16.mxu0 0
      %3699 = vmatmul.mubr.bf16.gmra.mrb[0].mxu0 %v3442
      %v3700 = vpop.f32.mrb[0].mxu0
      %v3701 = vadd.f32 %v3348, %v3700
      %v3702 = vpop.f32.mrb[0].mxu0
      %v3703 = vpop.f32.mrb[0].mxu0
      %v3704 = vadd.f32 %v3348, %v3703
      %v3705 = vpop.f32.mrb[0].mxu0
      %3706 = vmatprep.mubr.bf16.mxu0 0
      %3707 = vmatmul.mubr.bf16.gmra.mrb[0].mxu0 %v3445
      %v3708 = vpop.f32.mrb[0].mxu0
      %v3709 = vadd.f32 %v3348, %v3708
      %v3710 = vpop.f32.mrb[0].mxu0
      %v3711 = vpop.f32.mrb[0].mxu0
      %v3712 = vadd.f32 %v3348, %v3711
      %v3713 = vpop.f32.mrb[0].mxu0
      %3714 = vmatprep.mubr.bf16.mxu0 0
      %3715 = vmatmul.mubr.bf16.gmra.mrb[0].mxu0 %v3448
      %v3716 = vpop.f32.mrb[0].mxu0
      %v3717 = vadd.f32 %v3348, %v3716
      %v3718 = vpop.f32.mrb[0].mxu0
      %v3719 = vpop.f32.mrb[0].mxu0
      %v3720 = vadd.f32 %v3348, %v3719
      %v3721 = vpop.f32.mrb[0].mxu0
      %3722 = vmatprep.mubr.bf16.mxu0 0
      %3723 = vmatmul.mubr.bf16.gmra.mrb[0].mxu0 %v3451
      %v3724 = vpop.f32.mrb[0].mxu0
      %v3725 = vadd.f32 %v3348, %v3724
      %v3726 = vpop.f32.mrb[0].mxu0
      %v3727 = vpop.f32.mrb[0].mxu0
      %v3728 = vadd.f32 %v3348, %v3727
      %v3729 = vpop.f32.mrb[0].mxu0
      %3730 = vmatprep.mubr.bf16.mxu0 0
      %3731 = vmatmul.mubr.bf16.gmra.mrb[0].mxu0 %v3454
      %v3732 = vpop.f32.mrb[0].mxu0
      %v3733 = vadd.f32 %v3348, %v3732
      %v3734 = vpop.f32.mrb[0].mxu0
      %v3735 = vpop.f32.mrb[0].mxu0
      %v3736 = vadd.f32 %v3348, %v3735
      %v3737 = vpop.f32.mrb[0].mxu0
      %3738 = vmatprep.mubr.bf16.mxu0 0
      %3739 = vmatmul.mubr.bf16.gmra.mrb[0].mxu0 %v3457
      %v3740 = vpop.f32.mrb[0].mxu0
      %v3741 = vadd.f32 %v3348, %v3740
      %v3742 = vpop.f32.mrb[0].mxu0
      %v3743 = vpop.f32.mrb[0].mxu0
      %v3744 = vadd.f32 %v3348, %v3743
      %v3745 = vpop.f32.mrb[0].mxu0
      %3746 = vmatprep.mubr.bf16.mxu0 0
      %3747 = vmatmul.mubr.bf16.gmra.mrb[0].mxu0 %v3460
      %v3748 = vpop.f32.mrb[0].mxu0
      %v3749 = vadd.f32 %v3348, %v3748
      %v3750 = vpop.f32.mrb[0].mxu0
      %v3751 = vpop.f32.mrb[0].mxu0
      %v3752 = vadd.f32 %v3348, %v3751
      %v3753 = vpop.f32.mrb[0].mxu0
      %3754 = vdwg.mxu0
      %v3755 = vxor.u32 %v3501, 2147483648
      %v3756 = vxor.u32 %v3504, 2147483648
      %v3757 = vxor.u32 %v3509, 2147483648
      %v3758 = vxor.u32 %v3512, 2147483648
      %v3759 = vxor.u32 %v3517, 2147483648
      %v3760 = vxor.u32 %v3520, 2147483648
      %v3761 = vxor.u32 %v3525, 2147483648
      %v3762 = vxor.u32 %v3528, 2147483648
      %v3763 = vxor.u32 %v3533, 2147483648
      %v3764 = vxor.u32 %v3536, 2147483648
      %v3765 = vxor.u32 %v3541, 2147483648
      %v3766 = vxor.u32 %v3544, 2147483648
      %v3767 = vxor.u32 %v3549, 2147483648
      %v3768 = vxor.u32 %v3552, 2147483648
      %v3769 = vxor.u32 %v3557, 2147483648
      %v3770 = vxor.u32 %v3560, 2147483648
      %v3771 = vxor.u32 %v3565, 2147483648
      %v3772 = vxor.u32 %v3568, 2147483648
      %v3773 = vxor.u32 %v3573, 2147483648
      %v3774 = vxor.u32 %v3576, 2147483648
      %v3775 = vxor.u32 %v3581, 2147483648
      %v3776 = vxor.u32 %v3584, 2147483648
      %v3777 = vxor.u32 %v3589, 2147483648
      %v3778 = vxor.u32 %v3592, 2147483648
      %v3779 = vxor.u32 %v3597, 2147483648
      %v3780 = vxor.u32 %v3600, 2147483648
      %v3781 = vxor.u32 %v3605, 2147483648
      %v3782 = vxor.u32 %v3608, 2147483648
      %v3783 = vxor.u32 %v3613, 2147483648
      %v3784 = vxor.u32 %v3616, 2147483648
      %v3785 = vxor.u32 %v3621, 2147483648
      %v3786 = vxor.u32 %v3624, 2147483648
      %v3787 = vxor.u32 %v3629, 2147483648
      %v3788 = vxor.u32 %v3632, 2147483648
      %v3789 = vxor.u32 %v3637, 2147483648
      %v3790 = vxor.u32 %v3640, 2147483648
      %v3791 = vxor.u32 %v3645, 2147483648
      %v3792 = vxor.u32 %v3648, 2147483648
      %v3793 = vxor.u32 %v3653, 2147483648
      %v3794 = vxor.u32 %v3656, 2147483648
      %v3795 = vxor.u32 %v3661, 2147483648
      %v3796 = vxor.u32 %v3664, 2147483648
      %v3797 = vxor.u32 %v3669, 2147483648
      %v3798 = vxor.u32 %v3672, 2147483648
      %v3799 = vxor.u32 %v3677, 2147483648
      %v3800 = vxor.u32 %v3680, 2147483648
      %v3801 = vxor.u32 %v3685, 2147483648
      %v3802 = vxor.u32 %v3688, 2147483648
      %v3803 = vxor.u32 %v3693, 2147483648
      %v3804 = vxor.u32 %v3696, 2147483648
      %v3805 = vxor.u32 %v3701, 2147483648
      %v3806 = vxor.u32 %v3704, 2147483648
      %v3807 = vxor.u32 %v3709, 2147483648
      %v3808 = vxor.u32 %v3712, 2147483648
      %v3809 = vxor.u32 %v3717, 2147483648
      %v3810 = vxor.u32 %v3720, 2147483648
      %v3811 = vxor.u32 %v3725, 2147483648
      %v3812 = vxor.u32 %v3728, 2147483648
      %v3813 = vxor.u32 %v3733, 2147483648
      %v3814 = vxor.u32 %v3736, 2147483648
      %v3815 = vxor.u32 %v3741, 2147483648
      %v3816 = vxor.u32 %v3744, 2147483648
      %v3817 = vxor.u32 %v3749, 2147483648
      %v3818 = vxor.u32 %v3752, 2147483648
      %v3819 = vmul.f32 %v3755, 1.442695
      %v3820 = vpow.pop %v3819
      %v3821 = vmul.f32 %v3756, 1.442695
      %v3822 = vpow.pop %v3821
      %v3823 = vmul.f32 %v3757, 1.442695
      %v3824 = vpow.pop %v3823
      %v3825 = vmul.f32 %v3758, 1.442695
      %v3826 = vpow.pop %v3825
      %v3827 = vmul.f32 %v3759, 1.442695
      %v3828 = vpow.pop %v3827
      %v3829 = vmul.f32 %v3760, 1.442695
      %v3830 = vpow.pop %v3829
      %v3831 = vmul.f32 %v3761, 1.442695
      %v3832 = vpow.pop %v3831
      %v3833 = vmul.f32 %v3762, 1.442695
      %v3834 = vpow.pop %v3833
      %v3835 = vmul.f32 %v3763, 1.442695
      %v3836 = vpow.pop %v3835
      %v3837 = vmul.f32 %v3764, 1.442695
      %v3838 = vpow.pop %v3837
      %v3839 = vmul.f32 %v3765, 1.442695
      %v3840 = vpow.pop %v3839
      %v3841 = vmul.f32 %v3766, 1.442695
      %v3842 = vpow.pop %v3841
      %v3843 = vmul.f32 %v3767, 1.442695
      %v3844 = vpow.pop %v3843
      %v3845 = vmul.f32 %v3768, 1.442695
      %v3846 = vpow.pop %v3845
      %v3847 = vmul.f32 %v3769, 1.442695
      %v3848 = vpow.pop %v3847
      %v3849 = vmul.f32 %v3770, 1.442695
      %v3850 = vpow.pop %v3849
      %v3851 = vmul.f32 %v3771, 1.442695
      %v3852 = vpow.pop %v3851
      %v3853 = vmul.f32 %v3772, 1.442695
      %v3854 = vpow.pop %v3853
      %v3855 = vmul.f32 %v3773, 1.442695
      %v3856 = vpow.pop %v3855
      %v3857 = vmul.f32 %v3774, 1.442695
      %v3858 = vpow.pop %v3857
      %v3859 = vmul.f32 %v3775, 1.442695
      %v3860 = vpow.pop %v3859
      %v3861 = vmul.f32 %v3776, 1.442695
      %v3862 = vpow.pop %v3861
      %v3863 = vmul.f32 %v3777, 1.442695
      %v3864 = vpow.pop %v3863
      %v3865 = vmul.f32 %v3778, 1.442695
      %v3866 = vpow.pop %v3865
      %v3867 = vmul.f32 %v3779, 1.442695
      %v3868 = vpow.pop %v3867
      %v3869 = vmul.f32 %v3780, 1.442695
      %v3870 = vpow.pop %v3869
      %v3871 = vmul.f32 %v3781, 1.442695
      %v3872 = vpow.pop %v3871
      %v3873 = vmul.f32 %v3782, 1.442695
      %v3874 = vpow.pop %v3873
      %v3875 = vmul.f32 %v3783, 1.442695
      %v3876 = vpow.pop %v3875
      %v3877 = vmul.f32 %v3784, 1.442695
      %v3878 = vpow.pop %v3877
      %v3879 = vmul.f32 %v3785, 1.442695
      %v3880 = vpow.pop %v3879
      %v3881 = vmul.f32 %v3786, 1.442695
      %v3882 = vpow.pop %v3881
      %v3883 = vmul.f32 %v3787, 1.442695
      %v3884 = vpow.pop %v3883
      %v3885 = vmul.f32 %v3788, 1.442695
      %v3886 = vpow.pop %v3885
      %v3887 = vmul.f32 %v3789, 1.442695
      %v3888 = vpow.pop %v3887
      %v3889 = vmul.f32 %v3790, 1.442695
      %v3890 = vpow.pop %v3889
      %v3891 = vmul.f32 %v3791, 1.442695
      %v3892 = vpow.pop %v3891
      %v3893 = vmul.f32 %v3792, 1.442695
      %v3894 = vpow.pop %v3893
      %v3895 = vmul.f32 %v3793, 1.442695
      %v3896 = vpow.pop %v3895
      %v3897 = vmul.f32 %v3794, 1.442695
      %v3898 = vpow.pop %v3897
      %v3899 = vmul.f32 %v3795, 1.442695
      %v3900 = vpow.pop %v3899
      %v3901 = vmul.f32 %v3796, 1.442695
      %v3902 = vpow.pop %v3901
      %v3903 = vmul.f32 %v3797, 1.442695
      %v3904 = vpow.pop %v3903
      %v3905 = vmul.f32 %v3798, 1.442695
      %v3906 = vpow.pop %v3905
      %v3907 = vmul.f32 %v3799, 1.442695
      %v3908 = vpow.pop %v3907
      %v3909 = vmul.f32 %v3800, 1.442695
      %v3910 = vpow.pop %v3909
      %v3911 = vmul.f32 %v3801, 1.442695
      %v3912 = vpow.pop %v3911
      %v3913 = vmul.f32 %v3802, 1.442695
      %v3914 = vpow.pop %v3913
      %v3915 = vmul.f32 %v3803, 1.442695
      %v3916 = vpow.pop %v3915
      %v3917 = vmul.f32 %v3804, 1.442695
      %v3918 = vpow.pop %v3917
      %v3919 = vmul.f32 %v3805, 1.442695
      %v3920 = vpow.pop %v3919
      %v3921 = vmul.f32 %v3806, 1.442695
      %v3922 = vpow.pop %v3921
      %v3923 = vmul.f32 %v3807, 1.442695
      %v3924 = vpow.pop %v3923
      %v3925 = vmul.f32 %v3808, 1.442695
      %v3926 = vpow.pop %v3925
      %v3927 = vmul.f32 %v3809, 1.442695
      %v3928 = vpow.pop %v3927
      %v3929 = vmul.f32 %v3810, 1.442695
      %v3930 = vpow.pop %v3929
      %v3931 = vmul.f32 %v3811, 1.442695
      %v3932 = vpow.pop %v3931
      %v3933 = vmul.f32 %v3812, 1.442695
      %v3934 = vpow.pop %v3933
      %v3935 = vmul.f32 %v3813, 1.442695
      %v3936 = vpow.pop %v3935
      %v3937 = vmul.f32 %v3814, 1.442695
      %v3938 = vpow.pop %v3937
      %v3939 = vmul.f32 %v3815, 1.442695
      %v3940 = vpow.pop %v3939
      %v3941 = vmul.f32 %v3816, 1.442695
      %v3942 = vpow.pop %v3941
      %v3943 = vmul.f32 %v3817, 1.442695
      %v3944 = vpow.pop %v3943
      %v3945 = vmul.f32 %v3818, 1.442695
      %v3946 = vpow.pop %v3945
      %v3947 = vadd.f32 %v3820, 1.0
      %v3948 = vadd.f32 %v3822, 1.0
      %v3949 = vadd.f32 %v3824, 1.0
      %v3950 = vadd.f32 %v3826, 1.0
      %v3951 = vadd.f32 %v3828, 1.0
      %v3952 = vadd.f32 %v3830, 1.0
      %v3953 = vadd.f32 %v3832, 1.0
      %v3954 = vadd.f32 %v3834, 1.0
      %v3955 = vadd.f32 %v3836, 1.0
      %v3956 = vadd.f32 %v3838, 1.0
      %v3957 = vadd.f32 %v3840, 1.0
      %v3958 = vadd.f32 %v3842, 1.0
      %v3959 = vadd.f32 %v3844, 1.0
      %v3960 = vadd.f32 %v3846, 1.0
      %v3961 = vadd.f32 %v3848, 1.0
      %v3962 = vadd.f32 %v3850, 1.0
      %v3963 = vadd.f32 %v3852, 1.0
      %v3964 = vadd.f32 %v3854, 1.0
      %v3965 = vadd.f32 %v3856, 1.0
      %v3966 = vadd.f32 %v3858, 1.0
      %v3967 = vadd.f32 %v3860, 1.0
      %v3968 = vadd.f32 %v3862, 1.0
      %v3969 = vadd.f32 %v3864, 1.0
      %v3970 = vadd.f32 %v3866, 1.0
      %v3971 = vadd.f32 %v3868, 1.0
      %v3972 = vadd.f32 %v3870, 1.0
      %v3973 = vadd.f32 %v3872, 1.0
      %v3974 = vadd.f32 %v3874, 1.0
      %v3975 = vadd.f32 %v3876, 1.0
      %v3976 = vadd.f32 %v3878, 1.0
      %v3977 = vadd.f32 %v3880, 1.0
      %v3978 = vadd.f32 %v3882, 1.0
      %v3979 = vadd.f32 %v3884, 1.0
      %v3980 = vadd.f32 %v3886, 1.0
      %v3981 = vadd.f32 %v3888, 1.0
      %v3982 = vadd.f32 %v3890, 1.0
      %v3983 = vadd.f32 %v3892, 1.0
      %v3984 = vadd.f32 %v3894, 1.0
      %v3985 = vadd.f32 %v3896, 1.0
      %v3986 = vadd.f32 %v3898, 1.0
      %v3987 = vadd.f32 %v3900, 1.0
      %v3988 = vadd.f32 %v3902, 1.0
      %v3989 = vadd.f32 %v3904, 1.0
      %v3990 = vadd.f32 %v3906, 1.0
      %v3991 = vadd.f32 %v3908, 1.0
      %v3992 = vadd.f32 %v3910, 1.0
      %v3993 = vadd.f32 %v3912, 1.0
      %v3994 = vadd.f32 %v3914, 1.0
      %v3995 = vadd.f32 %v3916, 1.0
      %v3996 = vadd.f32 %v3918, 1.0
      %v3997 = vadd.f32 %v3920, 1.0
      %v3998 = vadd.f32 %v3922, 1.0
      %v3999 = vadd.f32 %v3924, 1.0
      %v4000 = vadd.f32 %v3926, 1.0
      %v4001 = vadd.f32 %v3928, 1.0
      %v4002 = vadd.f32 %v3930, 1.0
      %v4003 = vadd.f32 %v3932, 1.0
      %v4004 = vadd.f32 %v3934, 1.0
      %v4005 = vadd.f32 %v3936, 1.0
      %v4006 = vadd.f32 %v3938, 1.0
      %v4007 = vadd.f32 %v3940, 1.0
      %v4008 = vadd.f32 %v3942, 1.0
      %v4009 = vadd.f32 %v3944, 1.0
      %v4010 = vadd.f32 %v3946, 1.0
      %v4011 = vrcp.pop %v3947
      %v4012 = vmul.f32 1.0, %v4011
      %v4013 = vrcp.pop %v3948
      %v4014 = vmul.f32 1.0, %v4013
      %v4015 = vrcp.pop %v3949
      %v4016 = vmul.f32 1.0, %v4015
      %v4017 = vrcp.pop %v3950
      %v4018 = vmul.f32 1.0, %v4017
      %v4019 = vrcp.pop %v3951
      %v4020 = vmul.f32 1.0, %v4019
      %v4021 = vrcp.pop %v3952
      %v4022 = vmul.f32 1.0, %v4021
      %v4023 = vrcp.pop %v3953
      %v4024 = vmul.f32 1.0, %v4023
      %v4025 = vrcp.pop %v3954
      %v4026 = vmul.f32 1.0, %v4025
      %v4027 = vrcp.pop %v3955
      %v4028 = vmul.f32 1.0, %v4027
      %v4029 = vrcp.pop %v3956
      %v4030 = vmul.f32 1.0, %v4029
      %v4031 = vrcp.pop %v3957
      %v4032 = vmul.f32 1.0, %v4031
      %v4033 = vrcp.pop %v3958
      %v4034 = vmul.f32 1.0, %v4033
      %v4035 = vrcp.pop %v3959
      %v4036 = vmul.f32 1.0, %v4035
      %v4037 = vrcp.pop %v3960
      %v4038 = vmul.f32 1.0, %v4037
      %v4039 = vrcp.pop %v3961
      %v4040 = vmul.f32 1.0, %v4039
      %v4041 = vrcp.pop %v3962
      %v4042 = vmul.f32 1.0, %v4041
      %v4043 = vrcp.pop %v3963
      %v4044 = vmul.f32 1.0, %v4043
      %v4045 = vrcp.pop %v3964
      %v4046 = vmul.f32 1.0, %v4045
      %v4047 = vrcp.pop %v3965
      %v4048 = vmul.f32 1.0, %v4047
      %v4049 = vrcp.pop %v3966
      %v4050 = vmul.f32 1.0, %v4049
      %v4051 = vrcp.pop %v3967
      %v4052 = vmul.f32 1.0, %v4051
      %v4053 = vrcp.pop %v3968
      %v4054 = vmul.f32 1.0, %v4053
      %v4055 = vrcp.pop %v3969
      %v4056 = vmul.f32 1.0, %v4055
      %v4057 = vrcp.pop %v3970
      %v4058 = vmul.f32 1.0, %v4057
      %v4059 = vrcp.pop %v3971
      %v4060 = vmul.f32 1.0, %v4059
      %v4061 = vrcp.pop %v3972
      %v4062 = vmul.f32 1.0, %v4061
      %v4063 = vrcp.pop %v3973
      %v4064 = vmul.f32 1.0, %v4063
      %v4065 = vrcp.pop %v3974
      %v4066 = vmul.f32 1.0, %v4065
      %v4067 = vrcp.pop %v3975
      %v4068 = vmul.f32 1.0, %v4067
      %v4069 = vrcp.pop %v3976
      %v4070 = vmul.f32 1.0, %v4069
      %v4071 = vrcp.pop %v3977
      %v4072 = vmul.f32 1.0, %v4071
      %v4073 = vrcp.pop %v3978
      %v4074 = vmul.f32 1.0, %v4073
      %v4075 = vrcp.pop %v3979
      %v4076 = vmul.f32 1.0, %v4075
      %v4077 = vrcp.pop %v3980
      %v4078 = vmul.f32 1.0, %v4077
      %v4079 = vrcp.pop %v3981
      %v4080 = vmul.f32 1.0, %v4079
      %v4081 = vrcp.pop %v3982
      %v4082 = vmul.f32 1.0, %v4081
      %v4083 = vrcp.pop %v3983
      %v4084 = vmul.f32 1.0, %v4083
      %v4085 = vrcp.pop %v3984
      %v4086 = vmul.f32 1.0, %v4085
      %v4087 = vrcp.pop %v3985
      %v4088 = vmul.f32 1.0, %v4087
      %v4089 = vrcp.pop %v3986
      %v4090 = vmul.f32 1.0, %v4089
      %v4091 = vrcp.pop %v3987
      %v4092 = vmul.f32 1.0, %v4091
      %v4093 = vrcp.pop %v3988
      %v4094 = vmul.f32 1.0, %v4093
      %v4095 = vrcp.pop %v3989
      %v4096 = vmul.f32 1.0, %v4095
      %v4097 = vrcp.pop %v3990
      %v4098 = vmul.f32 1.0, %v4097
      %v4099 = vrcp.pop %v3991
      %v4100 = vmul.f32 1.0, %v4099
      %v4101 = vrcp.pop %v3992
      %v4102 = vmul.f32 1.0, %v4101
      %v4103 = vrcp.pop %v3993
      %v4104 = vmul.f32 1.0, %v4103
      %v4105 = vrcp.pop %v3994
      %v4106 = vmul.f32 1.0, %v4105
      %v4107 = vrcp.pop %v3995
      %v4108 = vmul.f32 1.0, %v4107
      %v4109 = vrcp.pop %v3996
      %v4110 = vmul.f32 1.0, %v4109
      %v4111 = vrcp.pop %v3997
      %v4112 = vmul.f32 1.0, %v4111
      %v4113 = vrcp.pop %v3998
      %v4114 = vmul.f32 1.0, %v4113
      %v4115 = vrcp.pop %v3999
      %v4116 = vmul.f32 1.0, %v4115
      %v4117 = vrcp.pop %v4000
      %v4118 = vmul.f32 1.0, %v4117
      %v4119 = vrcp.pop %v4001
      %v4120 = vmul.f32 1.0, %v4119
      %v4121 = vrcp.pop %v4002
      %v4122 = vmul.f32 1.0, %v4121
      %v4123 = vrcp.pop %v4003
      %v4124 = vmul.f32 1.0, %v4123
      %v4125 = vrcp.pop %v4004
      %v4126 = vmul.f32 1.0, %v4125
      %v4127 = vrcp.pop %v4005
      %v4128 = vmul.f32 1.0, %v4127
      %v4129 = vrcp.pop %v4006
      %v4130 = vmul.f32 1.0, %v4129
      %v4131 = vrcp.pop %v4007
      %v4132 = vmul.f32 1.0, %v4131
      %v4133 = vrcp.pop %v4008
      %v4134 = vmul.f32 1.0, %v4133
      %v4135 = vrcp.pop %v4009
      %v4136 = vmul.f32 1.0, %v4135
      %v4137 = vrcp.pop %v4010
      %v4138 = vmul.f32 1.0, %v4137
      %v4139 = vmul.f32 %v3501, %v4012
      %v4140 = vmul.f32 %v3504, %v4014
      %v4141 = vmul.f32 %v3509, %v4016
      %v4142 = vmul.f32 %v3512, %v4018
      %v4143 = vmul.f32 %v3517, %v4020
      %v4144 = vmul.f32 %v3520, %v4022
      %v4145 = vmul.f32 %v3525, %v4024
      %v4146 = vmul.f32 %v3528, %v4026
      %v4147 = vmul.f32 %v3533, %v4028
      %v4148 = vmul.f32 %v3536, %v4030
      %v4149 = vmul.f32 %v3541, %v4032
      %v4150 = vmul.f32 %v3544, %v4034
      %v4151 = vmul.f32 %v3549, %v4036
      %v4152 = vmul.f32 %v3552, %v4038
      %v4153 = vmul.f32 %v3557, %v4040
      %v4154 = vmul.f32 %v3560, %v4042
      %v4155 = vmul.f32 %v3565, %v4044
      %v4156 = vmul.f32 %v3568, %v4046
      %v4157 = vmul.f32 %v3573, %v4048
      %v4158 = vmul.f32 %v3576, %v4050
      %v4159 = vmul.f32 %v3581, %v4052
      %v4160 = vmul.f32 %v3584, %v4054
      %v4161 = vmul.f32 %v3589, %v4056
      %v4162 = vmul.f32 %v3592, %v4058
      %v4163 = vmul.f32 %v3597, %v4060
      %v4164 = vmul.f32 %v3600, %v4062
      %v4165 = vmul.f32 %v3605, %v4064
      %v4166 = vmul.f32 %v3608, %v4066
      %v4167 = vmul.f32 %v3613, %v4068
      %v4168 = vmul.f32 %v3616, %v4070
      %v4169 = vmul.f32 %v3621, %v4072
      %v4170 = vmul.f32 %v3624, %v4074
      %v4171 = vmul.f32 %v3629, %v4076
      %v4172 = vmul.f32 %v3632, %v4078
      %v4173 = vmul.f32 %v3637, %v4080
      %v4174 = vmul.f32 %v3640, %v4082
      %v4175 = vmul.f32 %v3645, %v4084
      %v4176 = vmul.f32 %v3648, %v4086
      %v4177 = vmul.f32 %v3653, %v4088
      %v4178 = vmul.f32 %v3656, %v4090
      %v4179 = vmul.f32 %v3661, %v4092
      %v4180 = vmul.f32 %v3664, %v4094
      %v4181 = vmul.f32 %v3669, %v4096
      %v4182 = vmul.f32 %v3672, %v4098
      %v4183 = vmul.f32 %v3677, %v4100
      %v4184 = vmul.f32 %v3680, %v4102
      %v4185 = vmul.f32 %v3685, %v4104
      %v4186 = vmul.f32 %v3688, %v4106
      %v4187 = vmul.f32 %v3693, %v4108
      %v4188 = vmul.f32 %v3696, %v4110
      %v4189 = vmul.f32 %v3701, %v4112
      %v4190 = vmul.f32 %v3704, %v4114
      %v4191 = vmul.f32 %v3709, %v4116
      %v4192 = vmul.f32 %v3712, %v4118
      %v4193 = vmul.f32 %v3717, %v4120
      %v4194 = vmul.f32 %v3720, %v4122
      %v4195 = vmul.f32 %v3725, %v4124
      %v4196 = vmul.f32 %v3728, %v4126
      %v4197 = vmul.f32 %v3733, %v4128
      %v4198 = vmul.f32 %v3736, %v4130
      %v4199 = vmul.f32 %v3741, %v4132
      %v4200 = vmul.f32 %v3744, %v4134
      %v4201 = vmul.f32 %v3749, %v4136
      %v4202 = vmul.f32 %v3752, %v4138
      %v4203 = vpack.c.bf16 %v4140, %v4139
      %v4204 = vpack.c.bf16 %v4142, %v4141
      %v4205 = vpack.c.bf16 %v4144, %v4143
      %v4206 = vpack.c.bf16 %v4146, %v4145
      %v4207 = vpack.c.bf16 %v4148, %v4147
      %v4208 = vpack.c.bf16 %v4150, %v4149
      %v4209 = vpack.c.bf16 %v4152, %v4151
      %v4210 = vpack.c.bf16 %v4154, %v4153
      %v4211 = vpack.c.bf16 %v4156, %v4155
      %v4212 = vpack.c.bf16 %v4158, %v4157
      %v4213 = vpack.c.bf16 %v4160, %v4159
      %v4214 = vpack.c.bf16 %v4162, %v4161
      %v4215 = vpack.c.bf16 %v4164, %v4163
      %v4216 = vpack.c.bf16 %v4166, %v4165
      %v4217 = vpack.c.bf16 %v4168, %v4167
      %v4218 = vpack.c.bf16 %v4170, %v4169
      %v4219 = vpack.c.bf16 %v4172, %v4171
      %v4220 = vpack.c.bf16 %v4174, %v4173
      %v4221 = vpack.c.bf16 %v4176, %v4175
      %v4222 = vpack.c.bf16 %v4178, %v4177
      %v4223 = vpack.c.bf16 %v4180, %v4179
      %v4224 = vpack.c.bf16 %v4182, %v4181
      %v4225 = vpack.c.bf16 %v4184, %v4183
      %v4226 = vpack.c.bf16 %v4186, %v4185
      %v4227 = vpack.c.bf16 %v4188, %v4187
      %v4228 = vpack.c.bf16 %v4190, %v4189
      %v4229 = vpack.c.bf16 %v4192, %v4191
      %v4230 = vpack.c.bf16 %v4194, %v4193
      %v4231 = vpack.c.bf16 %v4196, %v4195
      %v4232 = vpack.c.bf16 %v4198, %v4197
      %v4233 = vpack.c.bf16 %v4200, %v4199
      %v4234 = vpack.c.bf16 %v4202, %v4201
      %v4267 = vunpack.c.l.b16 %v4203
      %v4268 = vunpack.c.h.b16 %v4203
      %v4269 = vunpack.c.l.b16 %v4204
      %v4270 = vunpack.c.h.b16 %v4204
      %v4271 = vunpack.c.l.b16 %v4205
      %v4272 = vunpack.c.h.b16 %v4205
      %v4273 = vunpack.c.l.b16 %v4206
      %v4274 = vunpack.c.h.b16 %v4206
      %v4275 = vunpack.c.l.b16 %v4207
      %v4276 = vunpack.c.h.b16 %v4207
      %v4277 = vunpack.c.l.b16 %v4208
      %v4278 = vunpack.c.h.b16 %v4208
      %v4279 = vunpack.c.l.b16 %v4209
      %v4280 = vunpack.c.h.b16 %v4209
      %v4281 = vunpack.c.l.b16 %v4210
      %v4282 = vunpack.c.h.b16 %v4210
      %v4283 = vunpack.c.l.b16 %v4211
      %v4284 = vunpack.c.h.b16 %v4211
      %v4285 = vunpack.c.l.b16 %v4212
      %v4286 = vunpack.c.h.b16 %v4212
      %v4287 = vunpack.c.l.b16 %v4213
      %v4288 = vunpack.c.h.b16 %v4213
      %v4289 = vunpack.c.l.b16 %v4214
      %v4290 = vunpack.c.h.b16 %v4214
      %v4291 = vunpack.c.l.b16 %v4215
      %v4292 = vunpack.c.h.b16 %v4215
      %v4293 = vunpack.c.l.b16 %v4216
      %v4294 = vunpack.c.h.b16 %v4216
      %v4295 = vunpack.c.l.b16 %v4217
      %v4296 = vunpack.c.h.b16 %v4217
      %v4297 = vunpack.c.l.b16 %v4218
      %v4298 = vunpack.c.h.b16 %v4218
      %v4299 = vunpack.c.l.b16 %v4219
      %v4300 = vunpack.c.h.b16 %v4219
      %v4301 = vunpack.c.l.b16 %v4220
      %v4302 = vunpack.c.h.b16 %v4220
      %v4303 = vunpack.c.l.b16 %v4221
      %v4304 = vunpack.c.h.b16 %v4221
      %v4305 = vunpack.c.l.b16 %v4222
      %v4306 = vunpack.c.h.b16 %v4222
      %v4307 = vunpack.c.l.b16 %v4223
      %v4308 = vunpack.c.h.b16 %v4223
      %v4309 = vunpack.c.l.b16 %v4224
      %v4310 = vunpack.c.h.b16 %v4224
      %v4311 = vunpack.c.l.b16 %v4225
      %v4312 = vunpack.c.h.b16 %v4225
      %v4313 = vunpack.c.l.b16 %v4226
      %v4314 = vunpack.c.h.b16 %v4226
      %v4315 = vunpack.c.l.b16 %v4227
      %v4316 = vunpack.c.h.b16 %v4227
      %v4317 = vunpack.c.l.b16 %v4228
      %v4318 = vunpack.c.h.b16 %v4228
      %v4319 = vunpack.c.l.b16 %v4229
      %v4320 = vunpack.c.h.b16 %v4229
      %v4321 = vunpack.c.l.b16 %v4230
      %v4322 = vunpack.c.h.b16 %v4230
      %v4323 = vunpack.c.l.b16 %v4231
      %v4324 = vunpack.c.h.b16 %v4231
      %v4325 = vunpack.c.l.b16 %v4232
      %v4326 = vunpack.c.h.b16 %v4232
      %v4327 = vunpack.c.l.b16 %v4233
      %v4328 = vunpack.c.h.b16 %v4233
      %v4329 = vunpack.c.l.b16 %v4234
      %v4330 = vunpack.c.h.b16 %v4234
      %v4331 = vpack.c.b16 %v4267, %v4267
      %v4332 = vpack.c.b16 %v4268, %v4268
      %v4333 = vpack.c.b16 %v4269, %v4269
      %v4334 = vpack.c.b16 %v4270, %v4270
      %v4335 = vpack.c.b16 %v4271, %v4271
      %v4336 = vpack.c.b16 %v4272, %v4272
      %v4337 = vpack.c.b16 %v4273, %v4273
      %v4338 = vpack.c.b16 %v4274, %v4274
      %v4339 = vpack.c.b16 %v4275, %v4275
      %v4340 = vpack.c.b16 %v4276, %v4276
      %v4341 = vpack.c.b16 %v4277, %v4277
      %v4342 = vpack.c.b16 %v4278, %v4278
      %v4343 = vpack.c.b16 %v4279, %v4279
      %v4344 = vpack.c.b16 %v4280, %v4280
      %v4345 = vpack.c.b16 %v4281, %v4281
      %v4346 = vpack.c.b16 %v4282, %v4282
      %v4347 = vpack.c.b16 %v4283, %v4283
      %v4348 = vpack.c.b16 %v4284, %v4284
      %v4349 = vpack.c.b16 %v4285, %v4285
      %v4350 = vpack.c.b16 %v4286, %v4286
      %v4351 = vpack.c.b16 %v4287, %v4287
      %v4352 = vpack.c.b16 %v4288, %v4288
      %v4353 = vpack.c.b16 %v4289, %v4289
      %v4354 = vpack.c.b16 %v4290, %v4290
      %v4355 = vpack.c.b16 %v4291, %v4291
      %v4356 = vpack.c.b16 %v4292, %v4292
      %v4357 = vpack.c.b16 %v4293, %v4293
      %v4358 = vpack.c.b16 %v4294, %v4294
      %v4359 = vpack.c.b16 %v4295, %v4295
      %v4360 = vpack.c.b16 %v4296, %v4296
      %v4361 = vpack.c.b16 %v4297, %v4297
      %v4362 = vpack.c.b16 %v4298, %v4298
      %v4363 = vpack.c.b16 %v4299, %v4299
      %v4364 = vpack.c.b16 %v4300, %v4300
      %v4365 = vpack.c.b16 %v4301, %v4301
      %v4366 = vpack.c.b16 %v4302, %v4302
      %v4367 = vpack.c.b16 %v4303, %v4303
      %v4368 = vpack.c.b16 %v4304, %v4304
      %v4369 = vpack.c.b16 %v4305, %v4305
      %v4370 = vpack.c.b16 %v4306, %v4306
      %v4371 = vpack.c.b16 %v4307, %v4307
      %v4372 = vpack.c.b16 %v4308, %v4308
      %v4373 = vpack.c.b16 %v4309, %v4309
      %v4374 = vpack.c.b16 %v4310, %v4310
      %v4375 = vpack.c.b16 %v4311, %v4311
      %v4376 = vpack.c.b16 %v4312, %v4312
      %v4377 = vpack.c.b16 %v4313, %v4313
      %v4378 = vpack.c.b16 %v4314, %v4314
      %v4379 = vpack.c.b16 %v4315, %v4315
      %v4380 = vpack.c.b16 %v4316, %v4316
      %v4381 = vpack.c.b16 %v4317, %v4317
      %v4382 = vpack.c.b16 %v4318, %v4318
      %v4383 = vpack.c.b16 %v4319, %v4319
      %v4384 = vpack.c.b16 %v4320, %v4320
      %v4385 = vpack.c.b16 %v4321, %v4321
      %v4386 = vpack.c.b16 %v4322, %v4322
      %v4387 = vpack.c.b16 %v4323, %v4323
      %v4388 = vpack.c.b16 %v4324, %v4324
      %v4389 = vpack.c.b16 %v4325, %v4325
      %v4390 = vpack.c.b16 %v4326, %v4326
      %v4391 = vpack.c.b16 %v4327, %v4327
      %v4392 = vpack.c.b16 %v4328, %v4328
      %v4393 = vpack.c.b16 %v4329, %v4329
      %v4394 = vpack.c.b16 %v4330, %v4330
      %4459 = vst [vmem:[%s270] sm:$0xf] %v4331
      %4460 = vst [vmem:[%s270 + $0x4] sm:$0xf] %v4332
      %4461 = vst [vmem:[%s270 + $0x8] sm:$0xf] %v4333
      %4462 = vst [vmem:[%s270 + $0xc] sm:$0xf] %v4334
      %4463 = vst [vmem:[%s270 + $0x10] sm:$0xf] %v4335
      %4464 = vst [vmem:[%s270 + $0x14] sm:$0xf] %v4336
      %4465 = vst [vmem:[%s270 + $0x18] sm:$0xf] %v4337
      %4466 = vst [vmem:[%s270 + $0x1c] sm:$0xf] %v4338
      %4467 = vst [vmem:[%s270 + $0x20] sm:$0xf] %v4339
      %4468 = vst [vmem:[%s270 + $0x24] sm:$0xf] %v4340
      %4469 = vst [vmem:[%s270 + $0x28] sm:$0xf] %v4341
      %4470 = vst [vmem:[%s270 + $0x2c] sm:$0xf] %v4342
      %4471 = vst [vmem:[%s270 + $0x30] sm:$0xf] %v4343
      %4472 = vst [vmem:[%s270 + $0x34] sm:$0xf] %v4344
      %4473 = vst [vmem:[%s270 + $0x38] sm:$0xf] %v4345
      %4474 = vst [vmem:[%s270 + $0x3c] sm:$0xf] %v4346
      %4475 = vst [vmem:[%s270 + $0x40] sm:$0xf] %v4347
      %4476 = vst [vmem:[%s270 + $0x44] sm:$0xf] %v4348
      %4477 = vst [vmem:[%s270 + $0x48] sm:$0xf] %v4349
      %4478 = vst [vmem:[%s270 + $0x4c] sm:$0xf] %v4350
      %4479 = vst [vmem:[%s270 + $0x50] sm:$0xf] %v4351
      %4480 = vst [vmem:[%s270 + $0x54] sm:$0xf] %v4352
      %4481 = vst [vmem:[%s270 + $0x58] sm:$0xf] %v4353
      %4482 = vst [vmem:[%s270 + $0x5c] sm:$0xf] %v4354
      %4483 = vst [vmem:[%s270 + $0x60] sm:$0xf] %v4355
      %4484 = vst [vmem:[%s270 + $0x64] sm:$0xf] %v4356
      %4485 = vst [vmem:[%s270 + $0x68] sm:$0xf] %v4357
      %4486 = vst [vmem:[%s270 + $0x6c] sm:$0xf] %v4358
      %4487 = vst [vmem:[%s270 + $0x70] sm:$0xf] %v4359
      %4488 = vst [vmem:[%s270 + $0x74] sm:$0xf] %v4360
      %4489 = vst [vmem:[%s270 + $0x78] sm:$0xf] %v4361
      %4490 = vst [vmem:[%s270 + $0x7c] sm:$0xf] %v4362
      %4491 = vst [vmem:[%s270 + $0x80] sm:$0xf] %v4363
      %4492 = vst [vmem:[%s270 + $0x84] sm:$0xf] %v4364
      %4493 = vst [vmem:[%s270 + $0x88] sm:$0xf] %v4365
      %4494 = vst [vmem:[%s270 + $0x8c] sm:$0xf] %v4366
      %4495 = vst [vmem:[%s270 + $0x90] sm:$0xf] %v4367
      %4496 = vst [vmem:[%s270 + $0x94] sm:$0xf] %v4368
      %4497 = vst [vmem:[%s270 + $0x98] sm:$0xf] %v4369
      %4498 = vst [vmem:[%s270 + $0x9c] sm:$0xf] %v4370
      %4499 = vst [vmem:[%s270 + $0xa0] sm:$0xf] %v4371
      %4500 = vst [vmem:[%s270 + $0xa4] sm:$0xf] %v4372
      %4501 = vst [vmem:[%s270 + $0xa8] sm:$0xf] %v4373
      %4502 = vst [vmem:[%s270 + $0xac] sm:$0xf] %v4374
      %4503 = vst [vmem:[%s270 + $0xb0] sm:$0xf] %v4375
      %4504 = vst [vmem:[%s270 + $0xb4] sm:$0xf] %v4376
      %4505 = vst [vmem:[%s270 + $0xb8] sm:$0xf] %v4377
      %4506 = vst [vmem:[%s270 + $0xbc] sm:$0xf] %v4378
      %4507 = vst [vmem:[%s270 + $0xc0] sm:$0xf] %v4379
      %4508 = vst [vmem:[%s270 + $0xc4] sm:$0xf] %v4380
      %4509 = vst [vmem:[%s270 + $0xc8] sm:$0xf] %v4381
      %4510 = vst [vmem:[%s270 + $0xcc] sm:$0xf] %v4382
      %4511 = vst [vmem:[%s270 + $0xd0] sm:$0xf] %v4383
      %4512 = vst [vmem:[%s270 + $0xd4] sm:$0xf] %v4384
      %4513 = vst [vmem:[%s270 + $0xd8] sm:$0xf] %v4385
      %4514 = vst [vmem:[%s270 + $0xdc] sm:$0xf] %v4386
      %4515 = vst [vmem:[%s270 + $0xe0] sm:$0xf] %v4387
      %4516 = vst [vmem:[%s270 + $0xe4] sm:$0xf] %v4388
      %4517 = vst [vmem:[%s270 + $0xe8] sm:$0xf] %v4389
      %4518 = vst [vmem:[%s270 + $0xec] sm:$0xf] %v4390
      %4519 = vst [vmem:[%s270 + $0xf0] sm:$0xf] %v4391
      %4520 = vst [vmem:[%s270 + $0xf4] sm:$0xf] %v4392
      %4521 = vst [vmem:[%s270 + $0xf8] sm:$0xf] %v4393
      %4522 = vst [vmem:[%s270 + $0xfc] sm:$0xf] %v4394
      %s4523 = smul.u32 64, %s20
      %p4524 = scmp.lt.s32.totalorder %s4523, 127
      %s4525 = scalar_select %p4524, %s4523, 127
      %p4526 = scmp.lt.s32.totalorder %s19, 0
      %s4527 = scalar_select %p4526, %s19, 0
      %s4528 = sadd.s32 %s4527, %s4525
      %s4529 = smul.addr %s4528, 4
      %s4530 = scalar_lea.vmem %s4, %s4529
      // Predicated region
      $region37: #{conv_bn_act.1} parent=35 // pred_check
        %p4531 = pneg %p151
      $region38: #{conv_bn_act.1} parent=35 // pred_check_branch
        %4533 = sbr.rel (%p4531) target = $region40
      $region39: #{conv_bn_act.1} parent=35 // pred_region
        %s4534 = smul.u32 64, %s20
      $region40: #{conv_bn_act.1} parent=35 // pred_fallthru
        _
    $region36: #{conv_bn_act.1} parent=5 // pred_fallthru
      _
    %p4535 = scmp.le.s32.totalorder 2, %s10
    // Predicated region
    $region41: #{conv_bn_act.1} parent=5 // pred_check
      %p4536 = pneg %p4535
    $region42: #{conv_bn_act.1} parent=5 // pred_check_branch
      %4538 = sbr.rel (%p4536) target = $region44
    $region43: #{conv_bn_act.1} parent=5 // pred_region
      %s4539 = ssub.s32 %s10, 2
      // Predicated region
      $region45: #{conv_bn_act.1} parent=43 // pred_check
        %p4540 = pneg %p157
      $region46: #{conv_bn_act.1} parent=43 // pred_check_branch
        %4542 = sbr.rel (%p4540) target = $region48
      $region47: #{conv_bn_act.1} parent=43 // pred_region
        %s4543 = smul.u32 64, %s22
        %p4544 = scmp.lt.s32.totalorder %s4543, 127
        %s4545 = scalar_select %p4544, %s4543, 127
        %p4546 = scmp.lt.s32.totalorder %s21, 0
        %s4547 = scalar_select %p4546, %s21, 0
        %s4548 = sadd.s32 %s4547, %s4545
        %s4549 = smul.addr %s4548, 4
        %s4550 = scalar_lea.vmem %s4, %s4549
      $region48: #{conv_bn_act.1} parent=43 // pred_fallthru
        _
    $region44: #{conv_bn_act.1} parent=5 // pred_fallthru
      _
  $region6: #{conv_bn_act.1} parent=0 // loop_footer
    %s14 = sadd.s32 1, %s10
  $region7: #{conv_bn_act.1} parent=0 // loop_footer_branch
    %9 = sbr.rel target = $region3
  $region8: #{conv_bn_act.1} parent=0 // loop_exit
    _

</llo_original>
